<compile_context>
chip_gen: v7x
topology: tpu7x:2x2x1
jax: 0.10.0
libtpu: 0.0.40
codegen_flags: <defaults>
</compile_context>

<pallas_src>
import functools

import jax
import jax.numpy as jnp
from jax.experimental import pallas as pl
from jax.experimental.pallas import tpu as pltpu


# ---------------------------------------------------------------------------
# Pallas kernel
# ---------------------------------------------------------------------------
def _bilstm_fused_kernel(x_ref,
                         w0_ih_ref, w0_hh_ref, b0_ref,
                         w1_ih_ref, w1_hh_ref, b1_ref,
                         fcw_ref, fcb_ref,
                         out_ref,
                         xp_scr, seq_scr,
                         *, T, Bt, H, unroll):
    """Fused 2-layer bidirectional LSTM + Linear for one batch tile.

    x_ref:    (T*Bt, E)   bf16  time-major within the tile
    w*_ih:    (D, 8H)     bf16  [fwd 4H | bwd 4H] fused input projection
    w*_hh:    (H, 8H)     bf16  [fwd 4H | bwd 4H] fused recurrent weights
    b*:       (1, 8H)     f32   [fwd 4H | bwd 4H] (b_ih + b_hh)
    fcw:      (2H, 128)   f32   zero-padded to a lane-dense output
    fcb:      (1, 128)    f32
    out_ref:  (Bt, 128)   f32   logits live in the first 2 lanes
    xp_scr:   (T*Bt, 8H)  f32   hoisted gate pre-activations (reused by layer 1)
    seq_scr:  (T*Bt, 2H)  bf16  layer-0 bidirectional hidden sequence
    """
    f32 = jnp.float32
    bf16 = jnp.bfloat16

    def run_bidir_layer(w_hh_ref, write_seq):
        def step(s, carry):
            h, c = carry                                    # (2Bt, H) f32, rows [fwd | bwd]
            row_f = pl.multiple_of(s * Bt, Bt)              # forward reads time s
            row_b = pl.multiple_of((T - 1 - s) * Bt, Bt)    # backward reads time T-1-s
            # One fused MXU dot for both directions (loop-invariant 256-wide RHS).
            gh = jnp.dot(h.astype(bf16), w_hh_ref[...],
                         preferred_element_type=f32)        # (2Bt, 8H)
            gates_f = xp_scr[pl.ds(row_f, Bt), pl.ds(0, 4 * H)] + gh[0:Bt, 0:4 * H]
            gates_b = xp_scr[pl.ds(row_b, Bt), pl.ds(4 * H, 4 * H)] + gh[Bt:2 * Bt, 4 * H:8 * H]
            gates = jnp.concatenate([gates_f, gates_b], axis=0)   # (2Bt, 4H) f32
            # Full-tile transcendentals; gate order (i, f, g, o).
            sig = jax.nn.sigmoid(gates)
            tnh = jnp.tanh(gates)
            i = sig[:, 0 * H:1 * H]
            f = sig[:, 1 * H:2 * H]
            g = tnh[:, 2 * H:3 * H]
            o = sig[:, 3 * H:4 * H]
            c_new = f * c + i * g
            h_new = o * jnp.tanh(c_new)
            if write_seq:  # layer-0 sequence stays in VMEM (bf16) for layer 1
                seq_scr[pl.ds(row_f, Bt), pl.ds(0, H)] = h_new[0:Bt].astype(bf16)
                seq_scr[pl.ds(row_b, Bt), pl.ds(H, H)] = h_new[Bt:2 * Bt].astype(bf16)
            return h_new, c_new

        z = jnp.zeros((2 * Bt, H), f32)
        return jax.lax.fori_loop(0, T, step, (z, z), unroll=unroll)

    # ---- Layer 0: hoisted input projection (all T, both directions, bias folded) ----
    xp_scr[...] = (jnp.dot(x_ref[...], w0_ih_ref[...], preferred_element_type=f32)
                   + b0_ref[...])
    run_bidir_layer(w0_hh_ref, write_seq=True)

    # ---- Layer 1: project the VMEM-resident bf16 layer-0 sequence, then recur ----
    # TODO(synk): inter-layer dropout (p=0.1) applies only in training mode;
    # eval-mode semantics (no dropout) are implemented here.
    xp_scr[...] = (jnp.dot(seq_scr[...], w1_ih_ref[...], preferred_element_type=f32)
                   + b1_ref[...])
    h1, _ = run_bidir_layer(w1_hh_ref, write_seq=False)

    # ---- Fused FC on torch.cat((h_n[-1], h_n[-2])) = [layer1-bwd | layer1-fwd] ----
    feat = jnp.concatenate([h1[Bt:2 * Bt], h1[0:Bt]], axis=-1)   # (Bt, 2H)
    out_ref[...] = (jnp.dot(feat, fcw_ref[...], preferred_element_type=f32)
                    + fcb_ref[...])


# ---------------------------------------------------------------------------
# Wrapper
# ---------------------------------------------------------------------------
def _fuse_direction_params(pf, pb):
    (w_ih_f, w_hh_f, b_f), (w_ih_b, w_hh_b, b_b) = pf, pb
    w_ih = jnp.concatenate([w_ih_f, w_ih_b], axis=1).astype(jnp.bfloat16)   # (D, 8H)
    w_hh = jnp.concatenate([w_hh_f, w_hh_b], axis=1).astype(jnp.bfloat16)   # (H, 8H)
    b = jnp.concatenate([b_f, b_b], axis=1)                                 # (1, 8H) f32
    return w_ih, w_hh, b


def _vmem_limit_bytes(T, Bt, E, H):
    """Explicit VMEM budget (review item for v7x's 64 MiB / 32 MiB scoped default)."""
    xp = T * Bt * 8 * H * 4                       # f32 gate pre-activations
    seq = T * Bt * 2 * H * 2                      # bf16 layer-0 sequence
    xin = 2 * T * Bt * E * 2                      # double-buffered bf16 input block
    wgt = 2 * ((E + H + 2 * H + H) * 8 * H * 2    # bf16 weight blocks
               + 2 * 8 * H * 4 + 2 * H * 128 * 4 + 2 * 128 * 4)
    out = 2 * Bt * 128 * 4
    need = xp + seq + xin + wgt + out
    return int(min(max(2 * need, 16 << 20), 96 << 20))


def bilstm_forward(tokens, params):
    """Full BiLSTM.forward (eval mode). tokens: (B, S) int32 -> logits (B, 2)."""
    B, S = tokens.shape
    H = params["l0_f"][1].shape[0]
    E = params["embedding"].shape[1]

    Bt = 16                                       # batch tile: bf16 packed-row aligned
    Bp = ((B + Bt - 1) // Bt) * Bt
    nb = Bp // Bt

    # Embedding gather + layout plumbing are glue (plain JAX); the matmul /
    # recurrence hot path runs in one fused Pallas kernel below.
    emb = jnp.take(params["embedding"], tokens, axis=0)       # (B, S, E)
    x = jnp.transpose(emb, (1, 0, 2))                         # (S, B, E) time-major
    if Bp != B:
        x = jnp.pad(x, ((0, 0), (0, Bp - B), (0, 0)))
    # (S, Bp, E) -> (nb, S*Bt, E): batch-tile-major, time-major within a tile.
    x = x.reshape(S, nb, Bt, E).transpose(1, 0, 2, 3).reshape(nb * S * Bt, E)
    x = x.astype(jnp.bfloat16)

    w0_ih, w0_hh, b0 = _fuse_direction_params(params["l0_f"], params["l0_b"])
    w1_ih, w1_hh, b1 = _fuse_direction_params(params["l1_f"], params["l1_b"])
    fcw = jnp.zeros((2 * H, 128), jnp.float32).at[:, :2].set(params["fc_w"])
    fcb = jnp.zeros((1, 128), jnp.float32).at[:, :2].set(params["fc_b"])

    grid_spec = pltpu.PrefetchScalarGridSpec(
        num_scalar_prefetch=0,
        grid=(nb,),                                          # batch tiles (v7x: 2 TCs)
        in_specs=[
            pl.BlockSpec((S * Bt, E), lambda b: (b, 0)),     # per-tile input slab
            pl.BlockSpec((E, 8 * H), lambda b: (0, 0)),
            pl.BlockSpec((H, 8 * H), lambda b: (0, 0)),
            pl.BlockSpec((1, 8 * H), lambda b: (0, 0)),
            pl.BlockSpec((2 * H, 8 * H), lambda b: (0, 0)),
            pl.BlockSpec((H, 8 * H), lambda b: (0, 0)),
            pl.BlockSpec((1, 8 * H), lambda b: (0, 0)),
            pl.BlockSpec((2 * H, 128), lambda b: (0, 0)),
            pl.BlockSpec((1, 128), lambda b: (0, 0)),
        ],
        out_specs=pl.BlockSpec((Bt, 128), lambda b: (b, 0)),
        scratch_shapes=[
            pltpu.VMEM((S * Bt, 8 * H), jnp.float32),        # gate pre-activations
            pltpu.VMEM((S * Bt, 2 * H), jnp.bfloat16),       # layer-0 bidir sequence
        ],
    )

    logits = pl.pallas_call(
        functools.partial(_bilstm_fused_kernel, T=S, Bt=Bt, H=H, unroll=min(S, 8)),
        out_shape=jax.ShapeDtypeStruct((Bp, 128), jnp.float32),
        grid_spec=grid_spec,
        compiler_params=pltpu.CompilerParams(
            dimension_semantics=("parallel",),
            vmem_limit_bytes=_vmem_limit_bytes(S, Bt, E, H),
        ),
    )(x, w0_ih, w0_hh, b0, w1_ih, w1_hh, b1, fcw, fcb)

    return logits[:B, :2]                                    # drop padding + lane pad


# ---------------------------------------------------------------------------
# Deterministic parameter init (xavier-uniform for matrices, like _reset_parameters)
# ---------------------------------------------------------------------------
def xavier_uniform(key, shape, fan_in, fan_out):
    bound = jnp.sqrt(6.0 / (fan_in + fan_out))
    return jax.random.uniform(key, shape, jnp.float32, -bound, bound)


def make_params(key, vocab_size, embed_size, hidden_size, pad_idx=0):
    keys = iter(jax.random.split(key, 32))
    H = hidden_size

    emb = xavier_uniform(next(keys), (vocab_size, embed_size), vocab_size, embed_size)
    emb = emb.at[pad_idx].set(0.0)

    def lstm_dir_params(d_in):
        w_ih = xavier_uniform(next(keys), (d_in, 4 * H), d_in, 4 * H)
        w_hh = xavier_uniform(next(keys), (H, 4 * H), H, 4 * H)
        k = 1.0 / jnp.sqrt(H)
        b = (jax.random.uniform(next(keys), (1, 4 * H), jnp.float32, -k, k)
             + jax.random.uniform(next(keys), (1, 4 * H), jnp.float32, -k, k))
        return (w_ih, w_hh, b)

    return {
        "embedding": emb,
        "l0_f": lstm_dir_params(embed_size),
        "l0_b": lstm_dir_params(embed_size),
        "l1_f": lstm_dir_params(2 * H),
        "l1_b": lstm_dir_params(2 * H),
        "fc_w": xavier_uniform(next(keys), (2 * H, 2), 2 * H, 2),
        "fc_b": jnp.zeros((1, 2), jnp.float32),
    }


# ---------------------------------------------------------------------------
# Pure-JAX reference (same math incl. bf16 matmul operands) for correctness check
# ---------------------------------------------------------------------------
def _lstm_dir_ref(x_seq, w_ih, w_hh, b):
    T, B, D = x_seq.shape
    H = w_hh.shape[0]
    w_ih16 = w_ih.astype(jnp.bfloat16)
    w_hh16 = w_hh.astype(jnp.bfloat16)

    def step(carry, x_t):
        h, c = carry
        g = (jnp.dot(x_t.astype(jnp.bfloat16), w_ih16,
                     preferred_element_type=jnp.float32)
             + jnp.dot(h.astype(jnp.bfloat16), w_hh16,
                       preferred_element_type=jnp.float32)
             + b[0])
        i = jax.nn.sigmoid(g[:, 0 * H:1 * H])
        f = jax.nn.sigmoid(g[:, 1 * H:2 * H])
        gg = jnp.tanh(g[:, 2 * H:3 * H])
        o = jax.nn.sigmoid(g[:, 3 * H:4 * H])
        c = f * c + i * gg
        h = o * jnp.tanh(c)
        return (h, c), h

    init = (jnp.zeros((B, H), jnp.float32), jnp.zeros((B, H), jnp.float32))
    _, hs = jax.lax.scan(step, init, x_seq)
    return hs


def bilstm_forward_ref(tokens, params):
    emb = jnp.take(params["embedding"], tokens, axis=0)
    x_seq = jnp.transpose(emb, (1, 0, 2))

    def layer(x_seq, pf, pb):
        h_f = _lstm_dir_ref(x_seq, *pf)
        h_b_rev = _lstm_dir_ref(x_seq[::-1], *pb)
        return (jnp.concatenate([h_f, h_b_rev[::-1]], axis=-1),
                h_f[-1], h_b_rev[-1])

    seq0, _, _ = layer(x_seq, params["l0_f"], params["l0_b"])
    _, h_n_fwd, h_n_bwd = layer(seq0, params["l1_f"], params["l1_b"])
    feat = jnp.concatenate([h_n_bwd, h_n_fwd], axis=-1)   # torch.cat((h_n[-1], h_n[-2]))
    return feat @ params["fc_w"] + params["fc_b"]


# ---------------------------------------------------------------------------
if __name__ == "__main__":
    VOCAB, EMBED, HIDDEN = 50, 32, 32
    BATCH, SEQ = 4, 8

    key = jax.random.PRNGKey(0)
    k_params, k_tokens = jax.random.split(key)
    params = make_params(k_params, VOCAB, EMBED, HIDDEN, pad_idx=0)
    tokens = jax.random.randint(k_tokens, (BATCH, SEQ), 1, VOCAB, dtype=jnp.int32)

    logits = jax.block_until_ready(jax.jit(bilstm_forward)(tokens, params))
    ref = jax.block_until_ready(bilstm_forward_ref(tokens, params))

    assert logits.shape == (BATCH, 2), logits.shape
    assert jnp.allclose(logits, ref, rtol=2e-3, atol=2e-3), (logits, ref)
    print("KERNEL_OK")
</pallas_src>

<mosaic_0001>
module attributes {stable_mosaic.version = 11 : i64} {
  func.func @_bilstm_fused_kernel(%arg0: i32, %arg1: memref<128x32xbf16, #tpu.memory_space<vmem>>, %arg2: memref<32x256xbf16, #tpu.memory_space<vmem>>, %arg3: memref<32x256xbf16, #tpu.memory_space<vmem>>, %arg4: memref<1x256xf32, #tpu.memory_space<vmem>>, %arg5: memref<64x256xbf16, #tpu.memory_space<vmem>>, %arg6: memref<32x256xbf16, #tpu.memory_space<vmem>>, %arg7: memref<1x256xf32, #tpu.memory_space<vmem>>, %arg8: memref<64x128xf32, #tpu.memory_space<vmem>>, %arg9: memref<1x128xf32, #tpu.memory_space<vmem>>, %arg10: memref<16x128xf32, #tpu.memory_space<vmem>>, %arg11: memref<128x256xf32, #tpu.memory_space<vmem>>, %arg12: memref<128x64xbf16, #tpu.memory_space<vmem>>) attributes {dimension_semantics = [#tpu.dimension_semantics<parallel>], iteration_bounds = array<i64: 1>, scalar_prefetch = 0 : i64, scratch_operands = 2 : i64, tpu.core_type = #tpu.core_type<tc>, window_params = [{transform_indices = @transform_0, window_bounds = array<i64: 128, 32>}, {pipeline_mode = #tpu.pipeline_mode<synchronous>, transform_indices = @transform_1, window_bounds = array<i64: 32, 256>}, {pipeline_mode = #tpu.pipeline_mode<synchronous>, transform_indices = @transform_2, window_bounds = array<i64: 32, 256>}, {pipeline_mode = #tpu.pipeline_mode<synchronous>, transform_indices = @transform_3, window_bounds = array<i64: 1, 256>}, {pipeline_mode = #tpu.pipeline_mode<synchronous>, transform_indices = @transform_4, window_bounds = array<i64: 64, 256>}, {pipeline_mode = #tpu.pipeline_mode<synchronous>, transform_indices = @transform_5, window_bounds = array<i64: 32, 256>}, {pipeline_mode = #tpu.pipeline_mode<synchronous>, transform_indices = @transform_6, window_bounds = array<i64: 1, 256>}, {pipeline_mode = #tpu.pipeline_mode<synchronous>, transform_indices = @transform_7, window_bounds = array<i64: 64, 128>}, {pipeline_mode = #tpu.pipeline_mode<synchronous>, transform_indices = @transform_8, window_bounds = array<i64: 1, 128>}, {transform_indices = @transform_9, window_bounds = array<i64: 16, 128>}]} {
    %c0 = arith.constant 0 : index
    %c0_0 = arith.constant 0 : index
    %0 = vector.load %arg1[%c0, %c0_0] : memref<128x32xbf16, #tpu.memory_space<vmem>>, vector<128x32xbf16>
    %c0_1 = arith.constant 0 : index
    %c0_2 = arith.constant 0 : index
    %1 = vector.load %arg2[%c0_1, %c0_2] : memref<32x256xbf16, #tpu.memory_space<vmem>>, vector<32x256xbf16>
    %cst = arith.constant dense<0.000000e+00> : vector<128x256xf32>
    %2 = tpu.matmul %0, %1, %cst {dimension_numbers = #tpu.dot_dimension_numbers<[1], [0], [0], [1], [0, 0, 1, 1], [], []>} : vector<128x32xbf16>, vector<32x256xbf16>, vector<128x256xf32> -> vector<128x256xf32>
    %c0_3 = arith.constant 0 : index
    %c0_4 = arith.constant 0 : index
    %3 = vector.load %arg4[%c0_3, %c0_4] : memref<1x256xf32, #tpu.memory_space<vmem>>, vector<1x256xf32>
    %4 = vector.broadcast %3 : vector<1x256xf32> to vector<128x256xf32>
    %5 = arith.addf %2, %4 : vector<128x256xf32>
    %c0_5 = arith.constant 0 : index
    %c0_6 = arith.constant 0 : index
    %6 = vector.load %arg11[%c0_5, %c0_6] : memref<128x256xf32, #tpu.memory_space<vmem>>, vector<128x256xf32>
    tpu.vector_store %arg11[%c0_5, %c0_6], %5 {strides = array<i32>} : memref<128x256xf32, #tpu.memory_space<vmem>>, vector<128x256xf32>,
    %cst_7 = arith.constant 0.000000e+00 : f32
    %7 = vector.broadcast %cst_7 : f32 to vector<32x32xf32>
    %c0_i32 = arith.constant 0 : i32
    %c16_i32 = arith.constant 16 : i32
    %8 = arith.muli %c0_i32, %c16_i32 : i32
    %9 = tpu.assume_multiple %8, 16 : i32
    %c7_i32 = arith.constant 7 : i32
    %10 = arith.subi %c7_i32, %c0_i32 : i32
    %c16_i32_8 = arith.constant 16 : i32
    %11 = arith.muli %10, %c16_i32_8 : i32
    %12 = tpu.assume_multiple %11, 16 : i32
    %13 = arith.truncf %7 : vector<32x32xf32> to vector<32x32xbf16>
    %c0_9 = arith.constant 0 : index
    %c0_10 = arith.constant 0 : index
    %14 = vector.load %arg3[%c0_9, %c0_10] : memref<32x256xbf16, #tpu.memory_space<vmem>>, vector<32x256xbf16>
    %cst_11 = arith.constant dense<0.000000e+00> : vector<32x256xf32>
    %15 = tpu.matmul %13, %14, %cst_11 {dimension_numbers = #tpu.dot_dimension_numbers<[1], [0], [0], [1], [0, 0, 1, 1], [], []>} : vector<32x32xbf16>, vector<32x256xbf16>, vector<32x256xf32> -> vector<32x256xf32>
    %16 = arith.index_cast %9 : i32 to index
    %c0_12 = arith.constant 0 : index
    %17 = vector.load %arg11[%16, %c0_12] : memref<128x256xf32, #tpu.memory_space<vmem>>, vector<16x128xf32>
    %18 = vector.extract_strided_slice %15 {offsets = [0, 0], sizes = [16, 128], strides = [1, 1]} : vector<32x256xf32> to vector<16x128xf32>
    %19 = arith.addf %17, %18 : vector<16x128xf32>
    %20 = arith.index_cast %12 : i32 to index
    %c128 = arith.constant 128 : index
    %21 = vector.load %arg11[%20, %c128] : memref<128x256xf32, #tpu.memory_space<vmem>>, vector<16x128xf32>
    %22 = vector.extract_strided_slice %15 {offsets = [16, 128], sizes = [16, 128], strides = [1, 1]} : vector<32x256xf32> to vector<16x128xf32>
    %23 = arith.addf %21, %22 : vector<16x128xf32>
    %24 = tpu.concatenate %19, %23 in 0 : vector<16x128xf32>, vector<16x128xf32> -> vector<32x128xf32>
    %25 = arith.negf %24 : vector<32x128xf32>
    %26 = math.exp %25 : vector<32x128xf32>
    %cst_13 = arith.constant 1.000000e+00 : f32
    %27 = vector.broadcast %cst_13 : f32 to vector<32x128xf32>
    %28 = arith.addf %27, %26 : vector<32x128xf32>
    %29 = arith.divf %27, %28 : vector<32x128xf32>
    %30 = math.tanh %24 : vector<32x128xf32>
    %31 = vector.extract_strided_slice %29 {offsets = [0, 0], sizes = [32, 32], strides = [1, 1]} : vector<32x128xf32> to vector<32x32xf32>
    %32 = vector.extract_strided_slice %29 {offsets = [0, 32], sizes = [32, 32], strides = [1, 1]} : vector<32x128xf32> to vector<32x32xf32>
    %33 = vector.extract_strided_slice %30 {offsets = [0, 64], sizes = [32, 32], strides = [1, 1]} : vector<32x128xf32> to vector<32x32xf32>
    %34 = vector.extract_strided_slice %29 {offsets = [0, 96], sizes = [32, 32], strides = [1, 1]} : vector<32x128xf32> to vector<32x32xf32>
    %35 = arith.mulf %32, %7 : vector<32x32xf32>
    %36 = arith.mulf %31, %33 : vector<32x32xf32>
    %37 = arith.addf %35, %36 : vector<32x32xf32>
    %38 = math.tanh %37 : vector<32x32xf32>
    %39 = arith.mulf %34, %38 : vector<32x32xf32>
    %40 = vector.extract_strided_slice %39 {offsets = [0, 0], sizes = [16, 32], strides = [1, 1]} : vector<32x32xf32> to vector<16x32xf32>
    %41 = arith.truncf %40 : vector<16x32xf32> to vector<16x32xbf16>
    %42 = arith.index_cast %9 : i32 to index
    %c0_14 = arith.constant 0 : index
    %43 = vector.load %arg12[%42, %c0_14] : memref<128x64xbf16, #tpu.memory_space<vmem>>, vector<16x32xbf16>
    tpu.vector_store %arg12[%42, %c0_14], %41 {strides = array<i32>} : memref<128x64xbf16, #tpu.memory_space<vmem>>, vector<16x32xbf16>,
    %44 = vector.extract_strided_slice %39 {offsets = [16, 0], sizes = [16, 32], strides = [1, 1]} : vector<32x32xf32> to vector<16x32xf32>
    %45 = arith.truncf %44 : vector<16x32xf32> to vector<16x32xbf16>
    %46 = arith.index_cast %12 : i32 to index
    %c32 = arith.constant 32 : index
    %47 = vector.load %arg12[%46, %c32] : memref<128x64xbf16, #tpu.memory_space<vmem>>, vector<16x32xbf16>
    tpu.vector_store %arg12[%46, %c32], %45 {strides = array<i32>} : memref<128x64xbf16, #tpu.memory_space<vmem>>, vector<16x32xbf16>,
    %c1_i32 = arith.constant 1 : i32
    %c16_i32_15 = arith.constant 16 : i32
    %48 = arith.muli %c1_i32, %c16_i32_15 : i32
    %49 = tpu.assume_multiple %48, 16 : i32
    %c7_i32_16 = arith.constant 7 : i32
    %50 = arith.subi %c7_i32_16, %c1_i32 : i32
    %c16_i32_17 = arith.constant 16 : i32
    %51 = arith.muli %50, %c16_i32_17 : i32
    %52 = tpu.assume_multiple %51, 16 : i32
    %53 = arith.truncf %39 : vector<32x32xf32> to vector<32x32xbf16>
    %c0_18 = arith.constant 0 : index
    %c0_19 = arith.constant 0 : index
    %54 = vector.load %arg3[%c0_18, %c0_19] : memref<32x256xbf16, #tpu.memory_space<vmem>>, vector<32x256xbf16>
    %cst_20 = arith.constant dense<0.000000e+00> : vector<32x256xf32>
    %55 = tpu.matmul %53, %54, %cst_20 {dimension_numbers = #tpu.dot_dimension_numbers<[1], [0], [0], [1], [0, 0, 1, 1], [], []>} : vector<32x32xbf16>, vector<32x256xbf16>, vector<32x256xf32> -> vector<32x256xf32>
    %56 = arith.index_cast %49 : i32 to index
    %c0_21 = arith.constant 0 : index
    %57 = vector.load %arg11[%56, %c0_21] : memref<128x256xf32, #tpu.memory_space<vmem>>, vector<16x128xf32>
    %58 = vector.extract_strided_slice %55 {offsets = [0, 0], sizes = [16, 128], strides = [1, 1]} : vector<32x256xf32> to vector<16x128xf32>
    %59 = arith.addf %57, %58 : vector<16x128xf32>
    %60 = arith.index_cast %52 : i32 to index
    %c128_22 = arith.constant 128 : index
    %61 = vector.load %arg11[%60, %c128_22] : memref<128x256xf32, #tpu.memory_space<vmem>>, vector<16x128xf32>
    %62 = vector.extract_strided_slice %55 {offsets = [16, 128], sizes = [16, 128], strides = [1, 1]} : vector<32x256xf32> to vector<16x128xf32>
    %63 = arith.addf %61, %62 : vector<16x128xf32>
    %64 = tpu.concatenate %59, %63 in 0 : vector<16x128xf32>, vector<16x128xf32> -> vector<32x128xf32>
    %65 = arith.negf %64 : vector<32x128xf32>
    %66 = math.exp %65 : vector<32x128xf32>
    %cst_23 = arith.constant 1.000000e+00 : f32
    %67 = vector.broadcast %cst_23 : f32 to vector<32x128xf32>
    %68 = arith.addf %67, %66 : vector<32x128xf32>
    %69 = arith.divf %67, %68 : vector<32x128xf32>
    %70 = math.tanh %64 : vector<32x128xf32>
    %71 = vector.extract_strided_slice %69 {offsets = [0, 0], sizes = [32, 32], strides = [1, 1]} : vector<32x128xf32> to vector<32x32xf32>
    %72 = vector.extract_strided_slice %69 {offsets = [0, 32], sizes = [32, 32], strides = [1, 1]} : vector<32x128xf32> to vector<32x32xf32>
    %73 = vector.extract_strided_slice %70 {offsets = [0, 64], sizes = [32, 32], strides = [1, 1]} : vector<32x128xf32> to vector<32x32xf32>
    %74 = vector.extract_strided_slice %69 {offsets = [0, 96], sizes = [32, 32], strides = [1, 1]} : vector<32x128xf32> to vector<32x32xf32>
    %75 = arith.mulf %72, %37 : vector<32x32xf32>
    %76 = arith.mulf %71, %73 : vector<32x32xf32>
    %77 = arith.addf %75, %76 : vector<32x32xf32>
    %78 = math.tanh %77 : vector<32x32xf32>
    %79 = arith.mulf %74, %78 : vector<32x32xf32>
    %80 = vector.extract_strided_slice %79 {offsets = [0, 0], sizes = [16, 32], strides = [1, 1]} : vector<32x32xf32> to vector<16x32xf32>
    %81 = arith.truncf %80 : vector<16x32xf32> to vector<16x32xbf16>
    %82 = arith.index_cast %49 : i32 to index
    %c0_24 = arith.constant 0 : index
    %83 = vector.load %arg12[%82, %c0_24] : memref<128x64xbf16, #tpu.memory_space<vmem>>, vector<16x32xbf16>
    tpu.vector_store %arg12[%82, %c0_24], %81 {strides = array<i32>} : memref<128x64xbf16, #tpu.memory_space<vmem>>, vector<16x32xbf16>,
    %84 = vector.extract_strided_slice %79 {offsets = [16, 0], sizes = [16, 32], strides = [1, 1]} : vector<32x32xf32> to vector<16x32xf32>
    %85 = arith.truncf %84 : vector<16x32xf32> to vector<16x32xbf16>
    %86 = arith.index_cast %52 : i32 to index
    %c32_25 = arith.constant 32 : index
    %87 = vector.load %arg12[%86, %c32_25] : memref<128x64xbf16, #tpu.memory_space<vmem>>, vector<16x32xbf16>
    tpu.vector_store %arg12[%86, %c32_25], %85 {strides = array<i32>} : memref<128x64xbf16, #tpu.memory_space<vmem>>, vector<16x32xbf16>,
    %c2_i32 = arith.constant 2 : i32
    %c16_i32_26 = arith.constant 16 : i32
    %88 = arith.muli %c2_i32, %c16_i32_26 : i32
    %89 = tpu.assume_multiple %88, 16 : i32
    %c7_i32_27 = arith.constant 7 : i32
    %90 = arith.subi %c7_i32_27, %c2_i32 : i32
    %c16_i32_28 = arith.constant 16 : i32
    %91 = arith.muli %90, %c16_i32_28 : i32
    %92 = tpu.assume_multiple %91, 16 : i32
    %93 = arith.truncf %79 : vector<32x32xf32> to vector<32x32xbf16>
    %c0_29 = arith.constant 0 : index
    %c0_30 = arith.constant 0 : index
    %94 = vector.load %arg3[%c0_29, %c0_30] : memref<32x256xbf16, #tpu.memory_space<vmem>>, vector<32x256xbf16>
    %cst_31 = arith.constant dense<0.000000e+00> : vector<32x256xf32>
    %95 = tpu.matmul %93, %94, %cst_31 {dimension_numbers = #tpu.dot_dimension_numbers<[1], [0], [0], [1], [0, 0, 1, 1], [], []>} : vector<32x32xbf16>, vector<32x256xbf16>, vector<32x256xf32> -> vector<32x256xf32>
    %96 = arith.index_cast %89 : i32 to index
    %c0_32 = arith.constant 0 : index
    %97 = vector.load %arg11[%96, %c0_32] : memref<128x256xf32, #tpu.memory_space<vmem>>, vector<16x128xf32>
    %98 = vector.extract_strided_slice %95 {offsets = [0, 0], sizes = [16, 128], strides = [1, 1]} : vector<32x256xf32> to vector<16x128xf32>
    %99 = arith.addf %97, %98 : vector<16x128xf32>
    %100 = arith.index_cast %92 : i32 to index
    %c128_33 = arith.constant 128 : index
    %101 = vector.load %arg11[%100, %c128_33] : memref<128x256xf32, #tpu.memory_space<vmem>>, vector<16x128xf32>
    %102 = vector.extract_strided_slice %95 {offsets = [16, 128], sizes = [16, 128], strides = [1, 1]} : vector<32x256xf32> to vector<16x128xf32>
    %103 = arith.addf %101, %102 : vector<16x128xf32>
    %104 = tpu.concatenate %99, %103 in 0 : vector<16x128xf32>, vector<16x128xf32> -> vector<32x128xf32>
    %105 = arith.negf %104 : vector<32x128xf32>
    %106 = math.exp %105 : vector<32x128xf32>
    %cst_34 = arith.constant 1.000000e+00 : f32
    %107 = vector.broadcast %cst_34 : f32 to vector<32x128xf32>
    %108 = arith.addf %107, %106 : vector<32x128xf32>
    %109 = arith.divf %107, %108 : vector<32x128xf32>
    %110 = math.tanh %104 : vector<32x128xf32>
    %111 = vector.extract_strided_slice %109 {offsets = [0, 0], sizes = [32, 32], strides = [1, 1]} : vector<32x128xf32> to vector<32x32xf32>
    %112 = vector.extract_strided_slice %109 {offsets = [0, 32], sizes = [32, 32], strides = [1, 1]} : vector<32x128xf32> to vector<32x32xf32>
    %113 = vector.extract_strided_slice %110 {offsets = [0, 64], sizes = [32, 32], strides = [1, 1]} : vector<32x128xf32> to vector<32x32xf32>
    %114 = vector.extract_strided_slice %109 {offsets = [0, 96], sizes = [32, 32], strides = [1, 1]} : vector<32x128xf32> to vector<32x32xf32>
    %115 = arith.mulf %112, %77 : vector<32x32xf32>
    %116 = arith.mulf %111, %113 : vector<32x32xf32>
    %117 = arith.addf %115, %116 : vector<32x32xf32>
    %118 = math.tanh %117 : vector<32x32xf32>
    %119 = arith.mulf %114, %118 : vector<32x32xf32>
    %120 = vector.extract_strided_slice %119 {offsets = [0, 0], sizes = [16, 32], strides = [1, 1]} : vector<32x32xf32> to vector<16x32xf32>
    %121 = arith.truncf %120 : vector<16x32xf32> to vector<16x32xbf16>
    %122 = arith.index_cast %89 : i32 to index
    %c0_35 = arith.constant 0 : index
    %123 = vector.load %arg12[%122, %c0_35] : memref<128x64xbf16, #tpu.memory_space<vmem>>, vector<16x32xbf16>
    tpu.vector_store %arg12[%122, %c0_35], %121 {strides = array<i32>} : memref<128x64xbf16, #tpu.memory_space<vmem>>, vector<16x32xbf16>,
    %124 = vector.extract_strided_slice %119 {offsets = [16, 0], sizes = [16, 32], strides = [1, 1]} : vector<32x32xf32> to vector<16x32xf32>
    %125 = arith.truncf %124 : vector<16x32xf32> to vector<16x32xbf16>
    %126 = arith.index_cast %92 : i32 to index
    %c32_36 = arith.constant 32 : index
    %127 = vector.load %arg12[%126, %c32_36] : memref<128x64xbf16, #tpu.memory_space<vmem>>, vector<16x32xbf16>
    tpu.vector_store %arg12[%126, %c32_36], %125 {strides = array<i32>} : memref<128x64xbf16, #tpu.memory_space<vmem>>, vector<16x32xbf16>,
    %c3_i32 = arith.constant 3 : i32
    %c16_i32_37 = arith.constant 16 : i32
    %128 = arith.muli %c3_i32, %c16_i32_37 : i32
    %129 = tpu.assume_multiple %128, 16 : i32
    %c7_i32_38 = arith.constant 7 : i32
    %130 = arith.subi %c7_i32_38, %c3_i32 : i32
    %c16_i32_39 = arith.constant 16 : i32
    %131 = arith.muli %130, %c16_i32_39 : i32
    %132 = tpu.assume_multiple %131, 16 : i32
    %133 = arith.truncf %119 : vector<32x32xf32> to vector<32x32xbf16>
    %c0_40 = arith.constant 0 : index
    %c0_41 = arith.constant 0 : index
    %134 = vector.load %arg3[%c0_40, %c0_41] : memref<32x256xbf16, #tpu.memory_space<vmem>>, vector<32x256xbf16>
    %cst_42 = arith.constant dense<0.000000e+00> : vector<32x256xf32>
    %135 = tpu.matmul %133, %134, %cst_42 {dimension_numbers = #tpu.dot_dimension_numbers<[1], [0], [0], [1], [0, 0, 1, 1], [], []>} : vector<32x32xbf16>, vector<32x256xbf16>, vector<32x256xf32> -> vector<32x256xf32>
    %136 = arith.index_cast %129 : i32 to index
    %c0_43 = arith.constant 0 : index
    %137 = vector.load %arg11[%136, %c0_43] : memref<128x256xf32, #tpu.memory_space<vmem>>, vector<16x128xf32>
    %138 = vector.extract_strided_slice %135 {offsets = [0, 0], sizes = [16, 128], strides = [1, 1]} : vector<32x256xf32> to vector<16x128xf32>
    %139 = arith.addf %137, %138 : vector<16x128xf32>
    %140 = arith.index_cast %132 : i32 to index
    %c128_44 = arith.constant 128 : index
    %141 = vector.load %arg11[%140, %c128_44] : memref<128x256xf32, #tpu.memory_space<vmem>>, vector<16x128xf32>
    %142 = vector.extract_strided_slice %135 {offsets = [16, 128], sizes = [16, 128], strides = [1, 1]} : vector<32x256xf32> to vector<16x128xf32>
    %143 = arith.addf %141, %142 : vector<16x128xf32>
    %144 = tpu.concatenate %139, %143 in 0 : vector<16x128xf32>, vector<16x128xf32> -> vector<32x128xf32>
    %145 = arith.negf %144 : vector<32x128xf32>
    %146 = math.exp %145 : vector<32x128xf32>
    %cst_45 = arith.constant 1.000000e+00 : f32
    %147 = vector.broadcast %cst_45 : f32 to vector<32x128xf32>
    %148 = arith.addf %147, %146 : vector<32x128xf32>
    %149 = arith.divf %147, %148 : vector<32x128xf32>
    %150 = math.tanh %144 : vector<32x128xf32>
    %151 = vector.extract_strided_slice %149 {offsets = [0, 0], sizes = [32, 32], strides = [1, 1]} : vector<32x128xf32> to vector<32x32xf32>
    %152 = vector.extract_strided_slice %149 {offsets = [0, 32], sizes = [32, 32], strides = [1, 1]} : vector<32x128xf32> to vector<32x32xf32>
    %153 = vector.extract_strided_slice %150 {offsets = [0, 64], sizes = [32, 32], strides = [1, 1]} : vector<32x128xf32> to vector<32x32xf32>
    %154 = vector.extract_strided_slice %149 {offsets = [0, 96], sizes = [32, 32], strides = [1, 1]} : vector<32x128xf32> to vector<32x32xf32>
    %155 = arith.mulf %152, %117 : vector<32x32xf32>
    %156 = arith.mulf %151, %153 : vector<32x32xf32>
    %157 = arith.addf %155, %156 : vector<32x32xf32>
    %158 = math.tanh %157 : vector<32x32xf32>
    %159 = arith.mulf %154, %158 : vector<32x32xf32>
    %160 = vector.extract_strided_slice %159 {offsets = [0, 0], sizes = [16, 32], strides = [1, 1]} : vector<32x32xf32> to vector<16x32xf32>
    %161 = arith.truncf %160 : vector<16x32xf32> to vector<16x32xbf16>
    %162 = arith.index_cast %129 : i32 to index
    %c0_46 = arith.constant 0 : index
    %163 = vector.load %arg12[%162, %c0_46] : memref<128x64xbf16, #tpu.memory_space<vmem>>, vector<16x32xbf16>
    tpu.vector_store %arg12[%162, %c0_46], %161 {strides = array<i32>} : memref<128x64xbf16, #tpu.memory_space<vmem>>, vector<16x32xbf16>,
    %164 = vector.extract_strided_slice %159 {offsets = [16, 0], sizes = [16, 32], strides = [1, 1]} : vector<32x32xf32> to vector<16x32xf32>
    %165 = arith.truncf %164 : vector<16x32xf32> to vector<16x32xbf16>
    %166 = arith.index_cast %132 : i32 to index
    %c32_47 = arith.constant 32 : index
    %167 = vector.load %arg12[%166, %c32_47] : memref<128x64xbf16, #tpu.memory_space<vmem>>, vector<16x32xbf16>
    tpu.vector_store %arg12[%166, %c32_47], %165 {strides = array<i32>} : memref<128x64xbf16, #tpu.memory_space<vmem>>, vector<16x32xbf16>,
    %c4_i32 = arith.constant 4 : i32
    %c16_i32_48 = arith.constant 16 : i32
    %168 = arith.muli %c4_i32, %c16_i32_48 : i32
    %169 = tpu.assume_multiple %168, 16 : i32
    %c7_i32_49 = arith.constant 7 : i32
    %170 = arith.subi %c7_i32_49, %c4_i32 : i32
    %c16_i32_50 = arith.constant 16 : i32
    %171 = arith.muli %170, %c16_i32_50 : i32
    %172 = tpu.assume_multiple %171, 16 : i32
    %173 = arith.truncf %159 : vector<32x32xf32> to vector<32x32xbf16>
    %c0_51 = arith.constant 0 : index
    %c0_52 = arith.constant 0 : index
    %174 = vector.load %arg3[%c0_51, %c0_52] : memref<32x256xbf16, #tpu.memory_space<vmem>>, vector<32x256xbf16>
    %cst_53 = arith.constant dense<0.000000e+00> : vector<32x256xf32>
    %175 = tpu.matmul %173, %174, %cst_53 {dimension_numbers = #tpu.dot_dimension_numbers<[1], [0], [0], [1], [0, 0, 1, 1], [], []>} : vector<32x32xbf16>, vector<32x256xbf16>, vector<32x256xf32> -> vector<32x256xf32>
    %176 = arith.index_cast %169 : i32 to index
    %c0_54 = arith.constant 0 : index
    %177 = vector.load %arg11[%176, %c0_54] : memref<128x256xf32, #tpu.memory_space<vmem>>, vector<16x128xf32>
    %178 = vector.extract_strided_slice %175 {offsets = [0, 0], sizes = [16, 128], strides = [1, 1]} : vector<32x256xf32> to vector<16x128xf32>
    %179 = arith.addf %177, %178 : vector<16x128xf32>
    %180 = arith.index_cast %172 : i32 to index
    %c128_55 = arith.constant 128 : index
    %181 = vector.load %arg11[%180, %c128_55] : memref<128x256xf32, #tpu.memory_space<vmem>>, vector<16x128xf32>
    %182 = vector.extract_strided_slice %175 {offsets = [16, 128], sizes = [16, 128], strides = [1, 1]} : vector<32x256xf32> to vector<16x128xf32>
    %183 = arith.addf %181, %182 : vector<16x128xf32>
    %184 = tpu.concatenate %179, %183 in 0 : vector<16x128xf32>, vector<16x128xf32> -> vector<32x128xf32>
    %185 = arith.negf %184 : vector<32x128xf32>
    %186 = math.exp %185 : vector<32x128xf32>
    %cst_56 = arith.constant 1.000000e+00 : f32
    %187 = vector.broadcast %cst_56 : f32 to vector<32x128xf32>
    %188 = arith.addf %187, %186 : vector<32x128xf32>
    %189 = arith.divf %187, %188 : vector<32x128xf32>
    %190 = math.tanh %184 : vector<32x128xf32>
    %191 = vector.extract_strided_slice %189 {offsets = [0, 0], sizes = [32, 32], strides = [1, 1]} : vector<32x128xf32> to vector<32x32xf32>
    %192 = vector.extract_strided_slice %189 {offsets = [0, 32], sizes = [32, 32], strides = [1, 1]} : vector<32x128xf32> to vector<32x32xf32>
    %193 = vector.extract_strided_slice %190 {offsets = [0, 64], sizes = [32, 32], strides = [1, 1]} : vector<32x128xf32> to vector<32x32xf32>
    %194 = vector.extract_strided_slice %189 {offsets = [0, 96], sizes = [32, 32], strides = [1, 1]} : vector<32x128xf32> to vector<32x32xf32>
    %195 = arith.mulf %192, %157 : vector<32x32xf32>
    %196 = arith.mulf %191, %193 : vector<32x32xf32>
    %197 = arith.addf %195, %196 : vector<32x32xf32>
    %198 = math.tanh %197 : vector<32x32xf32>
    %199 = arith.mulf %194, %198 : vector<32x32xf32>
    %200 = vector.extract_strided_slice %199 {offsets = [0, 0], sizes = [16, 32], strides = [1, 1]} : vector<32x32xf32> to vector<16x32xf32>
    %201 = arith.truncf %200 : vector<16x32xf32> to vector<16x32xbf16>
    %202 = arith.index_cast %169 : i32 to index
    %c0_57 = arith.constant 0 : index
    %203 = vector.load %arg12[%202, %c0_57] : memref<128x64xbf16, #tpu.memory_space<vmem>>, vector<16x32xbf16>
    tpu.vector_store %arg12[%202, %c0_57], %201 {strides = array<i32>} : memref<128x64xbf16, #tpu.memory_space<vmem>>, vector<16x32xbf16>,
    %204 = vector.extract_strided_slice %199 {offsets = [16, 0], sizes = [16, 32], strides = [1, 1]} : vector<32x32xf32> to vector<16x32xf32>
    %205 = arith.truncf %204 : vector<16x32xf32> to vector<16x32xbf16>
    %206 = arith.index_cast %172 : i32 to index
    %c32_58 = arith.constant 32 : index
    %207 = vector.load %arg12[%206, %c32_58] : memref<128x64xbf16, #tpu.memory_space<vmem>>, vector<16x32xbf16>
    tpu.vector_store %arg12[%206, %c32_58], %205 {strides = array<i32>} : memref<128x64xbf16, #tpu.memory_space<vmem>>, vector<16x32xbf16>,
    %c5_i32 = arith.constant 5 : i32
    %c16_i32_59 = arith.constant 16 : i32
    %208 = arith.muli %c5_i32, %c16_i32_59 : i32
    %209 = tpu.assume_multiple %208, 16 : i32
    %c7_i32_60 = arith.constant 7 : i32
    %210 = arith.subi %c7_i32_60, %c5_i32 : i32
    %c16_i32_61 = arith.constant 16 : i32
    %211 = arith.muli %210, %c16_i32_61 : i32
    %212 = tpu.assume_multiple %211, 16 : i32
    %213 = arith.truncf %199 : vector<32x32xf32> to vector<32x32xbf16>
    %c0_62 = arith.constant 0 : index
    %c0_63 = arith.constant 0 : index
    %214 = vector.load %arg3[%c0_62, %c0_63] : memref<32x256xbf16, #tpu.memory_space<vmem>>, vector<32x256xbf16>
    %cst_64 = arith.constant dense<0.000000e+00> : vector<32x256xf32>
    %215 = tpu.matmul %213, %214, %cst_64 {dimension_numbers = #tpu.dot_dimension_numbers<[1], [0], [0], [1], [0, 0, 1, 1], [], []>} : vector<32x32xbf16>, vector<32x256xbf16>, vector<32x256xf32> -> vector<32x256xf32>
    %216 = arith.index_cast %209 : i32 to index
    %c0_65 = arith.constant 0 : index
    %217 = vector.load %arg11[%216, %c0_65] : memref<128x256xf32, #tpu.memory_space<vmem>>, vector<16x128xf32>
    %218 = vector.extract_strided_slice %215 {offsets = [0, 0], sizes = [16, 128], strides = [1, 1]} : vector<32x256xf32> to vector<16x128xf32>
    %219 = arith.addf %217, %218 : vector<16x128xf32>
    %220 = arith.index_cast %212 : i32 to index
    %c128_66 = arith.constant 128 : index
    %221 = vector.load %arg11[%220, %c128_66] : memref<128x256xf32, #tpu.memory_space<vmem>>, vector<16x128xf32>
    %222 = vector.extract_strided_slice %215 {offsets = [16, 128], sizes = [16, 128], strides = [1, 1]} : vector<32x256xf32> to vector<16x128xf32>
    %223 = arith.addf %221, %222 : vector<16x128xf32>
    %224 = tpu.concatenate %219, %223 in 0 : vector<16x128xf32>, vector<16x128xf32> -> vector<32x128xf32>
    %225 = arith.negf %224 : vector<32x128xf32>
    %226 = math.exp %225 : vector<32x128xf32>
    %cst_67 = arith.constant 1.000000e+00 : f32
    %227 = vector.broadcast %cst_67 : f32 to vector<32x128xf32>
    %228 = arith.addf %227, %226 : vector<32x128xf32>
    %229 = arith.divf %227, %228 : vector<32x128xf32>
    %230 = math.tanh %224 : vector<32x128xf32>
    %231 = vector.extract_strided_slice %229 {offsets = [0, 0], sizes = [32, 32], strides = [1, 1]} : vector<32x128xf32> to vector<32x32xf32>
    %232 = vector.extract_strided_slice %229 {offsets = [0, 32], sizes = [32, 32], strides = [1, 1]} : vector<32x128xf32> to vector<32x32xf32>
    %233 = vector.extract_strided_slice %230 {offsets = [0, 64], sizes = [32, 32], strides = [1, 1]} : vector<32x128xf32> to vector<32x32xf32>
    %234 = vector.extract_strided_slice %229 {offsets = [0, 96], sizes = [32, 32], strides = [1, 1]} : vector<32x128xf32> to vector<32x32xf32>
    %235 = arith.mulf %232, %197 : vector<32x32xf32>
    %236 = arith.mulf %231, %233 : vector<32x32xf32>
    %237 = arith.addf %235, %236 : vector<32x32xf32>
    %238 = math.tanh %237 : vector<32x32xf32>
    %239 = arith.mulf %234, %238 : vector<32x32xf32>
    %240 = vector.extract_strided_slice %239 {offsets = [0, 0], sizes = [16, 32], strides = [1, 1]} : vector<32x32xf32> to vector<16x32xf32>
    %241 = arith.truncf %240 : vector<16x32xf32> to vector<16x32xbf16>
    %242 = arith.index_cast %209 : i32 to index
    %c0_68 = arith.constant 0 : index
    %243 = vector.load %arg12[%242, %c0_68] : memref<128x64xbf16, #tpu.memory_space<vmem>>, vector<16x32xbf16>
    tpu.vector_store %arg12[%242, %c0_68], %241 {strides = array<i32>} : memref<128x64xbf16, #tpu.memory_space<vmem>>, vector<16x32xbf16>,
    %244 = vector.extract_strided_slice %239 {offsets = [16, 0], sizes = [16, 32], strides = [1, 1]} : vector<32x32xf32> to vector<16x32xf32>
    %245 = arith.truncf %244 : vector<16x32xf32> to vector<16x32xbf16>
    %246 = arith.index_cast %212 : i32 to index
    %c32_69 = arith.constant 32 : index
    %247 = vector.load %arg12[%246, %c32_69] : memref<128x64xbf16, #tpu.memory_space<vmem>>, vector<16x32xbf16>
    tpu.vector_store %arg12[%246, %c32_69], %245 {strides = array<i32>} : memref<128x64xbf16, #tpu.memory_space<vmem>>, vector<16x32xbf16>,
    %c6_i32 = arith.constant 6 : i32
    %c16_i32_70 = arith.constant 16 : i32
    %248 = arith.muli %c6_i32, %c16_i32_70 : i32
    %249 = tpu.assume_multiple %248, 16 : i32
    %c7_i32_71 = arith.constant 7 : i32
    %250 = arith.subi %c7_i32_71, %c6_i32 : i32
    %c16_i32_72 = arith.constant 16 : i32
    %251 = arith.muli %250, %c16_i32_72 : i32
    %252 = tpu.assume_multiple %251, 16 : i32
    %253 = arith.truncf %239 : vector<32x32xf32> to vector<32x32xbf16>
    %c0_73 = arith.constant 0 : index
    %c0_74 = arith.constant 0 : index
    %254 = vector.load %arg3[%c0_73, %c0_74] : memref<32x256xbf16, #tpu.memory_space<vmem>>, vector<32x256xbf16>
    %cst_75 = arith.constant dense<0.000000e+00> : vector<32x256xf32>
    %255 = tpu.matmul %253, %254, %cst_75 {dimension_numbers = #tpu.dot_dimension_numbers<[1], [0], [0], [1], [0, 0, 1, 1], [], []>} : vector<32x32xbf16>, vector<32x256xbf16>, vector<32x256xf32> -> vector<32x256xf32>
    %256 = arith.index_cast %249 : i32 to index
    %c0_76 = arith.constant 0 : index
    %257 = vector.load %arg11[%256, %c0_76] : memref<128x256xf32, #tpu.memory_space<vmem>>, vector<16x128xf32>
    %258 = vector.extract_strided_slice %255 {offsets = [0, 0], sizes = [16, 128], strides = [1, 1]} : vector<32x256xf32> to vector<16x128xf32>
    %259 = arith.addf %257, %258 : vector<16x128xf32>
    %260 = arith.index_cast %252 : i32 to index
    %c128_77 = arith.constant 128 : index
    %261 = vector.load %arg11[%260, %c128_77] : memref<128x256xf32, #tpu.memory_space<vmem>>, vector<16x128xf32>
    %262 = vector.extract_strided_slice %255 {offsets = [16, 128], sizes = [16, 128], strides = [1, 1]} : vector<32x256xf32> to vector<16x128xf32>
    %263 = arith.addf %261, %262 : vector<16x128xf32>
    %264 = tpu.concatenate %259, %263 in 0 : vector<16x128xf32>, vector<16x128xf32> -> vector<32x128xf32>
    %265 = arith.negf %264 : vector<32x128xf32>
    %266 = math.exp %265 : vector<32x128xf32>
    %cst_78 = arith.constant 1.000000e+00 : f32
    %267 = vector.broadcast %cst_78 : f32 to vector<32x128xf32>
    %268 = arith.addf %267, %266 : vector<32x128xf32>
    %269 = arith.divf %267, %268 : vector<32x128xf32>
    %270 = math.tanh %264 : vector<32x128xf32>
    %271 = vector.extract_strided_slice %269 {offsets = [0, 0], sizes = [32, 32], strides = [1, 1]} : vector<32x128xf32> to vector<32x32xf32>
    %272 = vector.extract_strided_slice %269 {offsets = [0, 32], sizes = [32, 32], strides = [1, 1]} : vector<32x128xf32> to vector<32x32xf32>
    %273 = vector.extract_strided_slice %270 {offsets = [0, 64], sizes = [32, 32], strides = [1, 1]} : vector<32x128xf32> to vector<32x32xf32>
    %274 = vector.extract_strided_slice %269 {offsets = [0, 96], sizes = [32, 32], strides = [1, 1]} : vector<32x128xf32> to vector<32x32xf32>
    %275 = arith.mulf %272, %237 : vector<32x32xf32>
    %276 = arith.mulf %271, %273 : vector<32x32xf32>
    %277 = arith.addf %275, %276 : vector<32x32xf32>
    %278 = math.tanh %277 : vector<32x32xf32>
    %279 = arith.mulf %274, %278 : vector<32x32xf32>
    %280 = vector.extract_strided_slice %279 {offsets = [0, 0], sizes = [16, 32], strides = [1, 1]} : vector<32x32xf32> to vector<16x32xf32>
    %281 = arith.truncf %280 : vector<16x32xf32> to vector<16x32xbf16>
    %282 = arith.index_cast %249 : i32 to index
    %c0_79 = arith.constant 0 : index
    %283 = vector.load %arg12[%282, %c0_79] : memref<128x64xbf16, #tpu.memory_space<vmem>>, vector<16x32xbf16>
    tpu.vector_store %arg12[%282, %c0_79], %281 {strides = array<i32>} : memref<128x64xbf16, #tpu.memory_space<vmem>>, vector<16x32xbf16>,
    %284 = vector.extract_strided_slice %279 {offsets = [16, 0], sizes = [16, 32], strides = [1, 1]} : vector<32x32xf32> to vector<16x32xf32>
    %285 = arith.truncf %284 : vector<16x32xf32> to vector<16x32xbf16>
    %286 = arith.index_cast %252 : i32 to index
    %c32_80 = arith.constant 32 : index
    %287 = vector.load %arg12[%286, %c32_80] : memref<128x64xbf16, #tpu.memory_space<vmem>>, vector<16x32xbf16>
    tpu.vector_store %arg12[%286, %c32_80], %285 {strides = array<i32>} : memref<128x64xbf16, #tpu.memory_space<vmem>>, vector<16x32xbf16>,
    %c7_i32_81 = arith.constant 7 : i32
    %c16_i32_82 = arith.constant 16 : i32
    %288 = arith.muli %c7_i32_81, %c16_i32_82 : i32
    %289 = tpu.assume_multiple %288, 16 : i32
    %c7_i32_83 = arith.constant 7 : i32
    %290 = arith.subi %c7_i32_83, %c7_i32_81 : i32
    %c16_i32_84 = arith.constant 16 : i32
    %291 = arith.muli %290, %c16_i32_84 : i32
    %292 = tpu.assume_multiple %291, 16 : i32
    %293 = arith.truncf %279 : vector<32x32xf32> to vector<32x32xbf16>
    %c0_85 = arith.constant 0 : index
    %c0_86 = arith.constant 0 : index
    %294 = vector.load %arg3[%c0_85, %c0_86] : memref<32x256xbf16, #tpu.memory_space<vmem>>, vector<32x256xbf16>
    %cst_87 = arith.constant dense<0.000000e+00> : vector<32x256xf32>
    %295 = tpu.matmul %293, %294, %cst_87 {dimension_numbers = #tpu.dot_dimension_numbers<[1], [0], [0], [1], [0, 0, 1, 1], [], []>} : vector<32x32xbf16>, vector<32x256xbf16>, vector<32x256xf32> -> vector<32x256xf32>
    %296 = arith.index_cast %289 : i32 to index
    %c0_88 = arith.constant 0 : index
    %297 = vector.load %arg11[%296, %c0_88] : memref<128x256xf32, #tpu.memory_space<vmem>>, vector<16x128xf32>
    %298 = vector.extract_strided_slice %295 {offsets = [0, 0], sizes = [16, 128], strides = [1, 1]} : vector<32x256xf32> to vector<16x128xf32>
    %299 = arith.addf %297, %298 : vector<16x128xf32>
    %300 = arith.index_cast %292 : i32 to index
    %c128_89 = arith.constant 128 : index
    %301 = vector.load %arg11[%300, %c128_89] : memref<128x256xf32, #tpu.memory_space<vmem>>, vector<16x128xf32>
    %302 = vector.extract_strided_slice %295 {offsets = [16, 128], sizes = [16, 128], strides = [1, 1]} : vector<32x256xf32> to vector<16x128xf32>
    %303 = arith.addf %301, %302 : vector<16x128xf32>
    %304 = tpu.concatenate %299, %303 in 0 : vector<16x128xf32>, vector<16x128xf32> -> vector<32x128xf32>
    %305 = arith.negf %304 : vector<32x128xf32>
    %306 = math.exp %305 : vector<32x128xf32>
    %cst_90 = arith.constant 1.000000e+00 : f32
    %307 = vector.broadcast %cst_90 : f32 to vector<32x128xf32>
    %308 = arith.addf %307, %306 : vector<32x128xf32>
    %309 = arith.divf %307, %308 : vector<32x128xf32>
    %310 = math.tanh %304 : vector<32x128xf32>
    %311 = vector.extract_strided_slice %309 {offsets = [0, 0], sizes = [32, 32], strides = [1, 1]} : vector<32x128xf32> to vector<32x32xf32>
    %312 = vector.extract_strided_slice %309 {offsets = [0, 32], sizes = [32, 32], strides = [1, 1]} : vector<32x128xf32> to vector<32x32xf32>
    %313 = vector.extract_strided_slice %310 {offsets = [0, 64], sizes = [32, 32], strides = [1, 1]} : vector<32x128xf32> to vector<32x32xf32>
    %314 = vector.extract_strided_slice %309 {offsets = [0, 96], sizes = [32, 32], strides = [1, 1]} : vector<32x128xf32> to vector<32x32xf32>
    %315 = arith.mulf %312, %277 : vector<32x32xf32>
    %316 = arith.mulf %311, %313 : vector<32x32xf32>
    %317 = arith.addf %315, %316 : vector<32x32xf32>
    %318 = math.tanh %317 : vector<32x32xf32>
    %319 = arith.mulf %314, %318 : vector<32x32xf32>
    %320 = vector.extract_strided_slice %319 {offsets = [0, 0], sizes = [16, 32], strides = [1, 1]} : vector<32x32xf32> to vector<16x32xf32>
    %321 = arith.truncf %320 : vector<16x32xf32> to vector<16x32xbf16>
    %322 = arith.index_cast %289 : i32 to index
    %c0_91 = arith.constant 0 : index
    %323 = vector.load %arg12[%322, %c0_91] : memref<128x64xbf16, #tpu.memory_space<vmem>>, vector<16x32xbf16>
    tpu.vector_store %arg12[%322, %c0_91], %321 {strides = array<i32>} : memref<128x64xbf16, #tpu.memory_space<vmem>>, vector<16x32xbf16>,
    %324 = vector.extract_strided_slice %319 {offsets = [16, 0], sizes = [16, 32], strides = [1, 1]} : vector<32x32xf32> to vector<16x32xf32>
    %325 = arith.truncf %324 : vector<16x32xf32> to vector<16x32xbf16>
    %326 = arith.index_cast %292 : i32 to index
    %c32_92 = arith.constant 32 : index
    %327 = vector.load %arg12[%326, %c32_92] : memref<128x64xbf16, #tpu.memory_space<vmem>>, vector<16x32xbf16>
    tpu.vector_store %arg12[%326, %c32_92], %325 {strides = array<i32>} : memref<128x64xbf16, #tpu.memory_space<vmem>>, vector<16x32xbf16>,
    %c8_i32 = arith.constant 8 : i32
    %c0_93 = arith.constant 0 : index
    %c0_94 = arith.constant 0 : index
    %328 = vector.load %arg12[%c0_93, %c0_94] : memref<128x64xbf16, #tpu.memory_space<vmem>>, vector<128x64xbf16>
    %c0_95 = arith.constant 0 : index
    %c0_96 = arith.constant 0 : index
    %329 = vector.load %arg5[%c0_95, %c0_96] : memref<64x256xbf16, #tpu.memory_space<vmem>>, vector<64x256xbf16>
    %cst_97 = arith.constant dense<0.000000e+00> : vector<128x256xf32>
    %330 = tpu.matmul %328, %329, %cst_97 {dimension_numbers = #tpu.dot_dimension_numbers<[1], [0], [0], [1], [0, 0, 1, 1], [], []>} : vector<128x64xbf16>, vector<64x256xbf16>, vector<128x256xf32> -> vector<128x256xf32>
    %c0_98 = arith.constant 0 : index
    %c0_99 = arith.constant 0 : index
    %331 = vector.load %arg7[%c0_98, %c0_99] : memref<1x256xf32, #tpu.memory_space<vmem>>, vector<1x256xf32>
    %332 = vector.broadcast %331 : vector<1x256xf32> to vector<128x256xf32>
    %333 = arith.addf %330, %332 : vector<128x256xf32>
    %c0_100 = arith.constant 0 : index
    %c0_101 = arith.constant 0 : index
    %334 = vector.load %arg11[%c0_100, %c0_101] : memref<128x256xf32, #tpu.memory_space<vmem>>, vector<128x256xf32>
    tpu.vector_store %arg11[%c0_100, %c0_101], %333 {strides = array<i32>} : memref<128x256xf32, #tpu.memory_space<vmem>>, vector<128x256xf32>,
    %cst_102 = arith.constant 0.000000e+00 : f32
    %335 = vector.broadcast %cst_102 : f32 to vector<32x32xf32>
    %c0_i32_103 = arith.constant 0 : i32
    %c16_i32_104 = arith.constant 16 : i32
    %336 = arith.muli %c0_i32_103, %c16_i32_104 : i32
    %337 = tpu.assume_multiple %336, 16 : i32
    %c7_i32_105 = arith.constant 7 : i32
    %338 = arith.subi %c7_i32_105, %c0_i32_103 : i32
    %c16_i32_106 = arith.constant 16 : i32
    %339 = arith.muli %338, %c16_i32_106 : i32
    %340 = tpu.assume_multiple %339, 16 : i32
    %341 = arith.truncf %335 : vector<32x32xf32> to vector<32x32xbf16>
    %c0_107 = arith.constant 0 : index
    %c0_108 = arith.constant 0 : index
    %342 = vector.load %arg6[%c0_107, %c0_108] : memref<32x256xbf16, #tpu.memory_space<vmem>>, vector<32x256xbf16>
    %cst_109 = arith.constant dense<0.000000e+00> : vector<32x256xf32>
    %343 = tpu.matmul %341, %342, %cst_109 {dimension_numbers = #tpu.dot_dimension_numbers<[1], [0], [0], [1], [0, 0, 1, 1], [], []>} : vector<32x32xbf16>, vector<32x256xbf16>, vector<32x256xf32> -> vector<32x256xf32>
    %344 = arith.index_cast %337 : i32 to index
    %c0_110 = arith.constant 0 : index
    %345 = vector.load %arg11[%344, %c0_110] : memref<128x256xf32, #tpu.memory_space<vmem>>, vector<16x128xf32>
    %346 = vector.extract_strided_slice %343 {offsets = [0, 0], sizes = [16, 128], strides = [1, 1]} : vector<32x256xf32> to vector<16x128xf32>
    %347 = arith.addf %345, %346 : vector<16x128xf32>
    %348 = arith.index_cast %340 : i32 to index
    %c128_111 = arith.constant 128 : index
    %349 = vector.load %arg11[%348, %c128_111] : memref<128x256xf32, #tpu.memory_space<vmem>>, vector<16x128xf32>
    %350 = vector.extract_strided_slice %343 {offsets = [16, 128], sizes = [16, 128], strides = [1, 1]} : vector<32x256xf32> to vector<16x128xf32>
    %351 = arith.addf %349, %350 : vector<16x128xf32>
    %352 = tpu.concatenate %347, %351 in 0 : vector<16x128xf32>, vector<16x128xf32> -> vector<32x128xf32>
    %353 = arith.negf %352 : vector<32x128xf32>
    %354 = math.exp %353 : vector<32x128xf32>
    %cst_112 = arith.constant 1.000000e+00 : f32
    %355 = vector.broadcast %cst_112 : f32 to vector<32x128xf32>
    %356 = arith.addf %355, %354 : vector<32x128xf32>
    %357 = arith.divf %355, %356 : vector<32x128xf32>
    %358 = math.tanh %352 : vector<32x128xf32>
    %359 = vector.extract_strided_slice %357 {offsets = [0, 0], sizes = [32, 32], strides = [1, 1]} : vector<32x128xf32> to vector<32x32xf32>
    %360 = vector.extract_strided_slice %357 {offsets = [0, 32], sizes = [32, 32], strides = [1, 1]} : vector<32x128xf32> to vector<32x32xf32>
    %361 = vector.extract_strided_slice %358 {offsets = [0, 64], sizes = [32, 32], strides = [1, 1]} : vector<32x128xf32> to vector<32x32xf32>
    %362 = vector.extract_strided_slice %357 {offsets = [0, 96], sizes = [32, 32], strides = [1, 1]} : vector<32x128xf32> to vector<32x32xf32>
    %363 = arith.mulf %360, %335 : vector<32x32xf32>
    %364 = arith.mulf %359, %361 : vector<32x32xf32>
    %365 = arith.addf %363, %364 : vector<32x32xf32>
    %366 = math.tanh %365 : vector<32x32xf32>
    %367 = arith.mulf %362, %366 : vector<32x32xf32>
    %c1_i32_113 = arith.constant 1 : i32
    %c16_i32_114 = arith.constant 16 : i32
    %368 = arith.muli %c1_i32_113, %c16_i32_114 : i32
    %369 = tpu.assume_multiple %368, 16 : i32
    %c7_i32_115 = arith.constant 7 : i32
    %370 = arith.subi %c7_i32_115, %c1_i32_113 : i32
    %c16_i32_116 = arith.constant 16 : i32
    %371 = arith.muli %370, %c16_i32_116 : i32
    %372 = tpu.assume_multiple %371, 16 : i32
    %373 = arith.truncf %367 : vector<32x32xf32> to vector<32x32xbf16>
    %c0_117 = arith.constant 0 : index
    %c0_118 = arith.constant 0 : index
    %374 = vector.load %arg6[%c0_117, %c0_118] : memref<32x256xbf16, #tpu.memory_space<vmem>>, vector<32x256xbf16>
    %cst_119 = arith.constant dense<0.000000e+00> : vector<32x256xf32>
    %375 = tpu.matmul %373, %374, %cst_119 {dimension_numbers = #tpu.dot_dimension_numbers<[1], [0], [0], [1], [0, 0, 1, 1], [], []>} : vector<32x32xbf16>, vector<32x256xbf16>, vector<32x256xf32> -> vector<32x256xf32>
    %376 = arith.index_cast %369 : i32 to index
    %c0_120 = arith.constant 0 : index
    %377 = vector.load %arg11[%376, %c0_120] : memref<128x256xf32, #tpu.memory_space<vmem>>, vector<16x128xf32>
    %378 = vector.extract_strided_slice %375 {offsets = [0, 0], sizes = [16, 128], strides = [1, 1]} : vector<32x256xf32> to vector<16x128xf32>
    %379 = arith.addf %377, %378 : vector<16x128xf32>
    %380 = arith.index_cast %372 : i32 to index
    %c128_121 = arith.constant 128 : index
    %381 = vector.load %arg11[%380, %c128_121] : memref<128x256xf32, #tpu.memory_space<vmem>>, vector<16x128xf32>
    %382 = vector.extract_strided_slice %375 {offsets = [16, 128], sizes = [16, 128], strides = [1, 1]} : vector<32x256xf32> to vector<16x128xf32>
    %383 = arith.addf %381, %382 : vector<16x128xf32>
    %384 = tpu.concatenate %379, %383 in 0 : vector<16x128xf32>, vector<16x128xf32> -> vector<32x128xf32>
    %385 = arith.negf %384 : vector<32x128xf32>
    %386 = math.exp %385 : vector<32x128xf32>
    %cst_122 = arith.constant 1.000000e+00 : f32
    %387 = vector.broadcast %cst_122 : f32 to vector<32x128xf32>
    %388 = arith.addf %387, %386 : vector<32x128xf32>
    %389 = arith.divf %387, %388 : vector<32x128xf32>
    %390 = math.tanh %384 : vector<32x128xf32>
    %391 = vector.extract_strided_slice %389 {offsets = [0, 0], sizes = [32, 32], strides = [1, 1]} : vector<32x128xf32> to vector<32x32xf32>
    %392 = vector.extract_strided_slice %389 {offsets = [0, 32], sizes = [32, 32], strides = [1, 1]} : vector<32x128xf32> to vector<32x32xf32>
    %393 = vector.extract_strided_slice %390 {offsets = [0, 64], sizes = [32, 32], strides = [1, 1]} : vector<32x128xf32> to vector<32x32xf32>
    %394 = vector.extract_strided_slice %389 {offsets = [0, 96], sizes = [32, 32], strides = [1, 1]} : vector<32x128xf32> to vector<32x32xf32>
    %395 = arith.mulf %392, %365 : vector<32x32xf32>
    %396 = arith.mulf %391, %393 : vector<32x32xf32>
    %397 = arith.addf %395, %396 : vector<32x32xf32>
    %398 = math.tanh %397 : vector<32x32xf32>
    %399 = arith.mulf %394, %398 : vector<32x32xf32>
    %c2_i32_123 = arith.constant 2 : i32
    %c16_i32_124 = arith.constant 16 : i32
    %400 = arith.muli %c2_i32_123, %c16_i32_124 : i32
    %401 = tpu.assume_multiple %400, 16 : i32
    %c7_i32_125 = arith.constant 7 : i32
    %402 = arith.subi %c7_i32_125, %c2_i32_123 : i32
    %c16_i32_126 = arith.constant 16 : i32
    %403 = arith.muli %402, %c16_i32_126 : i32
    %404 = tpu.assume_multiple %403, 16 : i32
    %405 = arith.truncf %399 : vector<32x32xf32> to vector<32x32xbf16>
    %c0_127 = arith.constant 0 : index
    %c0_128 = arith.constant 0 : index
    %406 = vector.load %arg6[%c0_127, %c0_128] : memref<32x256xbf16, #tpu.memory_space<vmem>>, vector<32x256xbf16>
    %cst_129 = arith.constant dense<0.000000e+00> : vector<32x256xf32>
    %407 = tpu.matmul %405, %406, %cst_129 {dimension_numbers = #tpu.dot_dimension_numbers<[1], [0], [0], [1], [0, 0, 1, 1], [], []>} : vector<32x32xbf16>, vector<32x256xbf16>, vector<32x256xf32> -> vector<32x256xf32>
    %408 = arith.index_cast %401 : i32 to index
    %c0_130 = arith.constant 0 : index
    %409 = vector.load %arg11[%408, %c0_130] : memref<128x256xf32, #tpu.memory_space<vmem>>, vector<16x128xf32>
    %410 = vector.extract_strided_slice %407 {offsets = [0, 0], sizes = [16, 128], strides = [1, 1]} : vector<32x256xf32> to vector<16x128xf32>
    %411 = arith.addf %409, %410 : vector<16x128xf32>
    %412 = arith.index_cast %404 : i32 to index
    %c128_131 = arith.constant 128 : index
    %413 = vector.load %arg11[%412, %c128_131] : memref<128x256xf32, #tpu.memory_space<vmem>>, vector<16x128xf32>
    %414 = vector.extract_strided_slice %407 {offsets = [16, 128], sizes = [16, 128], strides = [1, 1]} : vector<32x256xf32> to vector<16x128xf32>
    %415 = arith.addf %413, %414 : vector<16x128xf32>
    %416 = tpu.concatenate %411, %415 in 0 : vector<16x128xf32>, vector<16x128xf32> -> vector<32x128xf32>
    %417 = arith.negf %416 : vector<32x128xf32>
    %418 = math.exp %417 : vector<32x128xf32>
    %cst_132 = arith.constant 1.000000e+00 : f32
    %419 = vector.broadcast %cst_132 : f32 to vector<32x128xf32>
    %420 = arith.addf %419, %418 : vector<32x128xf32>
    %421 = arith.divf %419, %420 : vector<32x128xf32>
    %422 = math.tanh %416 : vector<32x128xf32>
    %423 = vector.extract_strided_slice %421 {offsets = [0, 0], sizes = [32, 32], strides = [1, 1]} : vector<32x128xf32> to vector<32x32xf32>
    %424 = vector.extract_strided_slice %421 {offsets = [0, 32], sizes = [32, 32], strides = [1, 1]} : vector<32x128xf32> to vector<32x32xf32>
    %425 = vector.extract_strided_slice %422 {offsets = [0, 64], sizes = [32, 32], strides = [1, 1]} : vector<32x128xf32> to vector<32x32xf32>
    %426 = vector.extract_strided_slice %421 {offsets = [0, 96], sizes = [32, 32], strides = [1, 1]} : vector<32x128xf32> to vector<32x32xf32>
    %427 = arith.mulf %424, %397 : vector<32x32xf32>
    %428 = arith.mulf %423, %425 : vector<32x32xf32>
    %429 = arith.addf %427, %428 : vector<32x32xf32>
    %430 = math.tanh %429 : vector<32x32xf32>
    %431 = arith.mulf %426, %430 : vector<32x32xf32>
    %c3_i32_133 = arith.constant 3 : i32
    %c16_i32_134 = arith.constant 16 : i32
    %432 = arith.muli %c3_i32_133, %c16_i32_134 : i32
    %433 = tpu.assume_multiple %432, 16 : i32
    %c7_i32_135 = arith.constant 7 : i32
    %434 = arith.subi %c7_i32_135, %c3_i32_133 : i32
    %c16_i32_136 = arith.constant 16 : i32
    %435 = arith.muli %434, %c16_i32_136 : i32
    %436 = tpu.assume_multiple %435, 16 : i32
    %437 = arith.truncf %431 : vector<32x32xf32> to vector<32x32xbf16>
    %c0_137 = arith.constant 0 : index
    %c0_138 = arith.constant 0 : index
    %438 = vector.load %arg6[%c0_137, %c0_138] : memref<32x256xbf16, #tpu.memory_space<vmem>>, vector<32x256xbf16>
    %cst_139 = arith.constant dense<0.000000e+00> : vector<32x256xf32>
    %439 = tpu.matmul %437, %438, %cst_139 {dimension_numbers = #tpu.dot_dimension_numbers<[1], [0], [0], [1], [0, 0, 1, 1], [], []>} : vector<32x32xbf16>, vector<32x256xbf16>, vector<32x256xf32> -> vector<32x256xf32>
    %440 = arith.index_cast %433 : i32 to index
    %c0_140 = arith.constant 0 : index
    %441 = vector.load %arg11[%440, %c0_140] : memref<128x256xf32, #tpu.memory_space<vmem>>, vector<16x128xf32>
    %442 = vector.extract_strided_slice %439 {offsets = [0, 0], sizes = [16, 128], strides = [1, 1]} : vector<32x256xf32> to vector<16x128xf32>
    %443 = arith.addf %441, %442 : vector<16x128xf32>
    %444 = arith.index_cast %436 : i32 to index
    %c128_141 = arith.constant 128 : index
    %445 = vector.load %arg11[%444, %c128_141] : memref<128x256xf32, #tpu.memory_space<vmem>>, vector<16x128xf32>
    %446 = vector.extract_strided_slice %439 {offsets = [16, 128], sizes = [16, 128], strides = [1, 1]} : vector<32x256xf32> to vector<16x128xf32>
    %447 = arith.addf %445, %446 : vector<16x128xf32>
    %448 = tpu.concatenate %443, %447 in 0 : vector<16x128xf32>, vector<16x128xf32> -> vector<32x128xf32>
    %449 = arith.negf %448 : vector<32x128xf32>
    %450 = math.exp %449 : vector<32x128xf32>
    %cst_142 = arith.constant 1.000000e+00 : f32
    %451 = vector.broadcast %cst_142 : f32 to vector<32x128xf32>
    %452 = arith.addf %451, %450 : vector<32x128xf32>
    %453 = arith.divf %451, %452 : vector<32x128xf32>
    %454 = math.tanh %448 : vector<32x128xf32>
    %455 = vector.extract_strided_slice %453 {offsets = [0, 0], sizes = [32, 32], strides = [1, 1]} : vector<32x128xf32> to vector<32x32xf32>
    %456 = vector.extract_strided_slice %453 {offsets = [0, 32], sizes = [32, 32], strides = [1, 1]} : vector<32x128xf32> to vector<32x32xf32>
    %457 = vector.extract_strided_slice %454 {offsets = [0, 64], sizes = [32, 32], strides = [1, 1]} : vector<32x128xf32> to vector<32x32xf32>
    %458 = vector.extract_strided_slice %453 {offsets = [0, 96], sizes = [32, 32], strides = [1, 1]} : vector<32x128xf32> to vector<32x32xf32>
    %459 = arith.mulf %456, %429 : vector<32x32xf32>
    %460 = arith.mulf %455, %457 : vector<32x32xf32>
    %461 = arith.addf %459, %460 : vector<32x32xf32>
    %462 = math.tanh %461 : vector<32x32xf32>
    %463 = arith.mulf %458, %462 : vector<32x32xf32>
    %c4_i32_143 = arith.constant 4 : i32
    %c16_i32_144 = arith.constant 16 : i32
    %464 = arith.muli %c4_i32_143, %c16_i32_144 : i32
    %465 = tpu.assume_multiple %464, 16 : i32
    %c7_i32_145 = arith.constant 7 : i32
    %466 = arith.subi %c7_i32_145, %c4_i32_143 : i32
    %c16_i32_146 = arith.constant 16 : i32
    %467 = arith.muli %466, %c16_i32_146 : i32
    %468 = tpu.assume_multiple %467, 16 : i32
    %469 = arith.truncf %463 : vector<32x32xf32> to vector<32x32xbf16>
    %c0_147 = arith.constant 0 : index
    %c0_148 = arith.constant 0 : index
    %470 = vector.load %arg6[%c0_147, %c0_148] : memref<32x256xbf16, #tpu.memory_space<vmem>>, vector<32x256xbf16>
    %cst_149 = arith.constant dense<0.000000e+00> : vector<32x256xf32>
    %471 = tpu.matmul %469, %470, %cst_149 {dimension_numbers = #tpu.dot_dimension_numbers<[1], [0], [0], [1], [0, 0, 1, 1], [], []>} : vector<32x32xbf16>, vector<32x256xbf16>, vector<32x256xf32> -> vector<32x256xf32>
    %472 = arith.index_cast %465 : i32 to index
    %c0_150 = arith.constant 0 : index
    %473 = vector.load %arg11[%472, %c0_150] : memref<128x256xf32, #tpu.memory_space<vmem>>, vector<16x128xf32>
    %474 = vector.extract_strided_slice %471 {offsets = [0, 0], sizes = [16, 128], strides = [1, 1]} : vector<32x256xf32> to vector<16x128xf32>
    %475 = arith.addf %473, %474 : vector<16x128xf32>
    %476 = arith.index_cast %468 : i32 to index
    %c128_151 = arith.constant 128 : index
    %477 = vector.load %arg11[%476, %c128_151] : memref<128x256xf32, #tpu.memory_space<vmem>>, vector<16x128xf32>
    %478 = vector.extract_strided_slice %471 {offsets = [16, 128], sizes = [16, 128], strides = [1, 1]} : vector<32x256xf32> to vector<16x128xf32>
    %479 = arith.addf %477, %478 : vector<16x128xf32>
    %480 = tpu.concatenate %475, %479 in 0 : vector<16x128xf32>, vector<16x128xf32> -> vector<32x128xf32>
    %481 = arith.negf %480 : vector<32x128xf32>
    %482 = math.exp %481 : vector<32x128xf32>
    %cst_152 = arith.constant 1.000000e+00 : f32
    %483 = vector.broadcast %cst_152 : f32 to vector<32x128xf32>
    %484 = arith.addf %483, %482 : vector<32x128xf32>
    %485 = arith.divf %483, %484 : vector<32x128xf32>
    %486 = math.tanh %480 : vector<32x128xf32>
    %487 = vector.extract_strided_slice %485 {offsets = [0, 0], sizes = [32, 32], strides = [1, 1]} : vector<32x128xf32> to vector<32x32xf32>
    %488 = vector.extract_strided_slice %485 {offsets = [0, 32], sizes = [32, 32], strides = [1, 1]} : vector<32x128xf32> to vector<32x32xf32>
    %489 = vector.extract_strided_slice %486 {offsets = [0, 64], sizes = [32, 32], strides = [1, 1]} : vector<32x128xf32> to vector<32x32xf32>
    %490 = vector.extract_strided_slice %485 {offsets = [0, 96], sizes = [32, 32], strides = [1, 1]} : vector<32x128xf32> to vector<32x32xf32>
    %491 = arith.mulf %488, %461 : vector<32x32xf32>
    %492 = arith.mulf %487, %489 : vector<32x32xf32>
    %493 = arith.addf %491, %492 : vector<32x32xf32>
    %494 = math.tanh %493 : vector<32x32xf32>
    %495 = arith.mulf %490, %494 : vector<32x32xf32>
    %c5_i32_153 = arith.constant 5 : i32
    %c16_i32_154 = arith.constant 16 : i32
    %496 = arith.muli %c5_i32_153, %c16_i32_154 : i32
    %497 = tpu.assume_multiple %496, 16 : i32
    %c7_i32_155 = arith.constant 7 : i32
    %498 = arith.subi %c7_i32_155, %c5_i32_153 : i32
    %c16_i32_156 = arith.constant 16 : i32
    %499 = arith.muli %498, %c16_i32_156 : i32
    %500 = tpu.assume_multiple %499, 16 : i32
    %501 = arith.truncf %495 : vector<32x32xf32> to vector<32x32xbf16>
    %c0_157 = arith.constant 0 : index
    %c0_158 = arith.constant 0 : index
    %502 = vector.load %arg6[%c0_157, %c0_158] : memref<32x256xbf16, #tpu.memory_space<vmem>>, vector<32x256xbf16>
    %cst_159 = arith.constant dense<0.000000e+00> : vector<32x256xf32>
    %503 = tpu.matmul %501, %502, %cst_159 {dimension_numbers = #tpu.dot_dimension_numbers<[1], [0], [0], [1], [0, 0, 1, 1], [], []>} : vector<32x32xbf16>, vector<32x256xbf16>, vector<32x256xf32> -> vector<32x256xf32>
    %504 = arith.index_cast %497 : i32 to index
    %c0_160 = arith.constant 0 : index
    %505 = vector.load %arg11[%504, %c0_160] : memref<128x256xf32, #tpu.memory_space<vmem>>, vector<16x128xf32>
    %506 = vector.extract_strided_slice %503 {offsets = [0, 0], sizes = [16, 128], strides = [1, 1]} : vector<32x256xf32> to vector<16x128xf32>
    %507 = arith.addf %505, %506 : vector<16x128xf32>
    %508 = arith.index_cast %500 : i32 to index
    %c128_161 = arith.constant 128 : index
    %509 = vector.load %arg11[%508, %c128_161] : memref<128x256xf32, #tpu.memory_space<vmem>>, vector<16x128xf32>
    %510 = vector.extract_strided_slice %503 {offsets = [16, 128], sizes = [16, 128], strides = [1, 1]} : vector<32x256xf32> to vector<16x128xf32>
    %511 = arith.addf %509, %510 : vector<16x128xf32>
    %512 = tpu.concatenate %507, %511 in 0 : vector<16x128xf32>, vector<16x128xf32> -> vector<32x128xf32>
    %513 = arith.negf %512 : vector<32x128xf32>
    %514 = math.exp %513 : vector<32x128xf32>
    %cst_162 = arith.constant 1.000000e+00 : f32
    %515 = vector.broadcast %cst_162 : f32 to vector<32x128xf32>
    %516 = arith.addf %515, %514 : vector<32x128xf32>
    %517 = arith.divf %515, %516 : vector<32x128xf32>
    %518 = math.tanh %512 : vector<32x128xf32>
    %519 = vector.extract_strided_slice %517 {offsets = [0, 0], sizes = [32, 32], strides = [1, 1]} : vector<32x128xf32> to vector<32x32xf32>
    %520 = vector.extract_strided_slice %517 {offsets = [0, 32], sizes = [32, 32], strides = [1, 1]} : vector<32x128xf32> to vector<32x32xf32>
    %521 = vector.extract_strided_slice %518 {offsets = [0, 64], sizes = [32, 32], strides = [1, 1]} : vector<32x128xf32> to vector<32x32xf32>
    %522 = vector.extract_strided_slice %517 {offsets = [0, 96], sizes = [32, 32], strides = [1, 1]} : vector<32x128xf32> to vector<32x32xf32>
    %523 = arith.mulf %520, %493 : vector<32x32xf32>
    %524 = arith.mulf %519, %521 : vector<32x32xf32>
    %525 = arith.addf %523, %524 : vector<32x32xf32>
    %526 = math.tanh %525 : vector<32x32xf32>
    %527 = arith.mulf %522, %526 : vector<32x32xf32>
    %c6_i32_163 = arith.constant 6 : i32
    %c16_i32_164 = arith.constant 16 : i32
    %528 = arith.muli %c6_i32_163, %c16_i32_164 : i32
    %529 = tpu.assume_multiple %528, 16 : i32
    %c7_i32_165 = arith.constant 7 : i32
    %530 = arith.subi %c7_i32_165, %c6_i32_163 : i32
    %c16_i32_166 = arith.constant 16 : i32
    %531 = arith.muli %530, %c16_i32_166 : i32
    %532 = tpu.assume_multiple %531, 16 : i32
    %533 = arith.truncf %527 : vector<32x32xf32> to vector<32x32xbf16>
    %c0_167 = arith.constant 0 : index
    %c0_168 = arith.constant 0 : index
    %534 = vector.load %arg6[%c0_167, %c0_168] : memref<32x256xbf16, #tpu.memory_space<vmem>>, vector<32x256xbf16>
    %cst_169 = arith.constant dense<0.000000e+00> : vector<32x256xf32>
    %535 = tpu.matmul %533, %534, %cst_169 {dimension_numbers = #tpu.dot_dimension_numbers<[1], [0], [0], [1], [0, 0, 1, 1], [], []>} : vector<32x32xbf16>, vector<32x256xbf16>, vector<32x256xf32> -> vector<32x256xf32>
    %536 = arith.index_cast %529 : i32 to index
    %c0_170 = arith.constant 0 : index
    %537 = vector.load %arg11[%536, %c0_170] : memref<128x256xf32, #tpu.memory_space<vmem>>, vector<16x128xf32>
    %538 = vector.extract_strided_slice %535 {offsets = [0, 0], sizes = [16, 128], strides = [1, 1]} : vector<32x256xf32> to vector<16x128xf32>
    %539 = arith.addf %537, %538 : vector<16x128xf32>
    %540 = arith.index_cast %532 : i32 to index
    %c128_171 = arith.constant 128 : index
    %541 = vector.load %arg11[%540, %c128_171] : memref<128x256xf32, #tpu.memory_space<vmem>>, vector<16x128xf32>
    %542 = vector.extract_strided_slice %535 {offsets = [16, 128], sizes = [16, 128], strides = [1, 1]} : vector<32x256xf32> to vector<16x128xf32>
    %543 = arith.addf %541, %542 : vector<16x128xf32>
    %544 = tpu.concatenate %539, %543 in 0 : vector<16x128xf32>, vector<16x128xf32> -> vector<32x128xf32>
    %545 = arith.negf %544 : vector<32x128xf32>
    %546 = math.exp %545 : vector<32x128xf32>
    %cst_172 = arith.constant 1.000000e+00 : f32
    %547 = vector.broadcast %cst_172 : f32 to vector<32x128xf32>
    %548 = arith.addf %547, %546 : vector<32x128xf32>
    %549 = arith.divf %547, %548 : vector<32x128xf32>
    %550 = math.tanh %544 : vector<32x128xf32>
    %551 = vector.extract_strided_slice %549 {offsets = [0, 0], sizes = [32, 32], strides = [1, 1]} : vector<32x128xf32> to vector<32x32xf32>
    %552 = vector.extract_strided_slice %549 {offsets = [0, 32], sizes = [32, 32], strides = [1, 1]} : vector<32x128xf32> to vector<32x32xf32>
    %553 = vector.extract_strided_slice %550 {offsets = [0, 64], sizes = [32, 32], strides = [1, 1]} : vector<32x128xf32> to vector<32x32xf32>
    %554 = vector.extract_strided_slice %549 {offsets = [0, 96], sizes = [32, 32], strides = [1, 1]} : vector<32x128xf32> to vector<32x32xf32>
    %555 = arith.mulf %552, %525 : vector<32x32xf32>
    %556 = arith.mulf %551, %553 : vector<32x32xf32>
    %557 = arith.addf %555, %556 : vector<32x32xf32>
    %558 = math.tanh %557 : vector<32x32xf32>
    %559 = arith.mulf %554, %558 : vector<32x32xf32>
    %c7_i32_173 = arith.constant 7 : i32
    %c16_i32_174 = arith.constant 16 : i32
    %560 = arith.muli %c7_i32_173, %c16_i32_174 : i32
    %561 = tpu.assume_multiple %560, 16 : i32
    %c7_i32_175 = arith.constant 7 : i32
    %562 = arith.subi %c7_i32_175, %c7_i32_173 : i32
    %c16_i32_176 = arith.constant 16 : i32
    %563 = arith.muli %562, %c16_i32_176 : i32
    %564 = tpu.assume_multiple %563, 16 : i32
    %565 = arith.truncf %559 : vector<32x32xf32> to vector<32x32xbf16>
    %c0_177 = arith.constant 0 : index
    %c0_178 = arith.constant 0 : index
    %566 = vector.load %arg6[%c0_177, %c0_178] : memref<32x256xbf16, #tpu.memory_space<vmem>>, vector<32x256xbf16>
    %cst_179 = arith.constant dense<0.000000e+00> : vector<32x256xf32>
    %567 = tpu.matmul %565, %566, %cst_179 {dimension_numbers = #tpu.dot_dimension_numbers<[1], [0], [0], [1], [0, 0, 1, 1], [], []>} : vector<32x32xbf16>, vector<32x256xbf16>, vector<32x256xf32> -> vector<32x256xf32>
    %568 = arith.index_cast %561 : i32 to index
    %c0_180 = arith.constant 0 : index
    %569 = vector.load %arg11[%568, %c0_180] : memref<128x256xf32, #tpu.memory_space<vmem>>, vector<16x128xf32>
    %570 = vector.extract_strided_slice %567 {offsets = [0, 0], sizes = [16, 128], strides = [1, 1]} : vector<32x256xf32> to vector<16x128xf32>
    %571 = arith.addf %569, %570 : vector<16x128xf32>
    %572 = arith.index_cast %564 : i32 to index
    %c128_181 = arith.constant 128 : index
    %573 = vector.load %arg11[%572, %c128_181] : memref<128x256xf32, #tpu.memory_space<vmem>>, vector<16x128xf32>
    %574 = vector.extract_strided_slice %567 {offsets = [16, 128], sizes = [16, 128], strides = [1, 1]} : vector<32x256xf32> to vector<16x128xf32>
    %575 = arith.addf %573, %574 : vector<16x128xf32>
    %576 = tpu.concatenate %571, %575 in 0 : vector<16x128xf32>, vector<16x128xf32> -> vector<32x128xf32>
    %577 = arith.negf %576 : vector<32x128xf32>
    %578 = math.exp %577 : vector<32x128xf32>
    %cst_182 = arith.constant 1.000000e+00 : f32
    %579 = vector.broadcast %cst_182 : f32 to vector<32x128xf32>
    %580 = arith.addf %579, %578 : vector<32x128xf32>
    %581 = arith.divf %579, %580 : vector<32x128xf32>
    %582 = math.tanh %576 : vector<32x128xf32>
    %583 = vector.extract_strided_slice %581 {offsets = [0, 0], sizes = [32, 32], strides = [1, 1]} : vector<32x128xf32> to vector<32x32xf32>
    %584 = vector.extract_strided_slice %581 {offsets = [0, 32], sizes = [32, 32], strides = [1, 1]} : vector<32x128xf32> to vector<32x32xf32>
    %585 = vector.extract_strided_slice %582 {offsets = [0, 64], sizes = [32, 32], strides = [1, 1]} : vector<32x128xf32> to vector<32x32xf32>
    %586 = vector.extract_strided_slice %581 {offsets = [0, 96], sizes = [32, 32], strides = [1, 1]} : vector<32x128xf32> to vector<32x32xf32>
    %587 = arith.mulf %584, %557 : vector<32x32xf32>
    %588 = arith.mulf %583, %585 : vector<32x32xf32>
    %589 = arith.addf %587, %588 : vector<32x32xf32>
    %590 = math.tanh %589 : vector<32x32xf32>
    %591 = arith.mulf %586, %590 : vector<32x32xf32>
    %c8_i32_183 = arith.constant 8 : i32
    %592 = vector.extract_strided_slice %591 {offsets = [16, 0], sizes = [16, 32], strides = [1, 1]} : vector<32x32xf32> to vector<16x32xf32>
    %593 = vector.extract_strided_slice %591 {offsets = [0, 0], sizes = [16, 32], strides = [1, 1]} : vector<32x32xf32> to vector<16x32xf32>
    %594 = tpu.concatenate %592, %593 in 1 : vector<16x32xf32>, vector<16x32xf32> -> vector<16x64xf32>
    %c0_184 = arith.constant 0 : index
    %c0_185 = arith.constant 0 : index
    %595 = vector.load %arg8[%c0_184, %c0_185] : memref<64x128xf32, #tpu.memory_space<vmem>>, vector<64x128xf32>
    %cst_186 = arith.constant dense<0.000000e+00> : vector<16x128xf32>
    %596 = tpu.matmul %594, %595, %cst_186 {dimension_numbers = #tpu.dot_dimension_numbers<[1], [0], [0], [1], [0, 0, 1, 1], [], []>} : vector<16x64xf32>, vector<64x128xf32>, vector<16x128xf32> -> vector<16x128xf32>
    %c0_187 = arith.constant 0 : index
    %c0_188 = arith.constant 0 : index
    %597 = vector.load %arg9[%c0_187, %c0_188] : memref<1x128xf32, #tpu.memory_space<vmem>>, vector<1x128xf32>
    %598 = vector.broadcast %597 : vector<1x128xf32> to vector<16x128xf32>
    %599 = arith.addf %596, %598 : vector<16x128xf32>
    %c0_189 = arith.constant 0 : index
    %c0_190 = arith.constant 0 : index
    %600 = vector.load %arg10[%c0_189, %c0_190] : memref<16x128xf32, #tpu.memory_space<vmem>>, vector<16x128xf32>
    tpu.vector_store %arg10[%c0_189, %c0_190], %599 {strides = array<i32>} : memref<16x128xf32, #tpu.memory_space<vmem>>, vector<16x128xf32>,
    return
  }
  func.func @transform_0(%arg0: i32) -> (i32, i32) {
    %c0_i32 = arith.constant 0 : i32
    %c0_i32_0 = arith.constant 0 : i32
    return %arg0, %c0_i32 : i32, i32
  }
  func.func @transform_1(%arg0: i32) -> (i32, i32) {
    %c0_i32 = arith.constant 0 : i32
    %c0_i32_0 = arith.constant 0 : i32
    %c0_i32_1 = arith.constant 0 : i32
    return %c0_i32, %c0_i32_0 : i32, i32
  }
  func.func @transform_2(%arg0: i32) -> (i32, i32) {
    %c0_i32 = arith.constant 0 : i32
    %c0_i32_0 = arith.constant 0 : i32
    %c0_i32_1 = arith.constant 0 : i32
    return %c0_i32, %c0_i32_0 : i32, i32
  }
  func.func @transform_3(%arg0: i32) -> (i32, i32) {
    %c0_i32 = arith.constant 0 : i32
    %c0_i32_0 = arith.constant 0 : i32
    %c0_i32_1 = arith.constant 0 : i32
    return %c0_i32, %c0_i32_0 : i32, i32
  }
  func.func @transform_4(%arg0: i32) -> (i32, i32) {
    %c0_i32 = arith.constant 0 : i32
    %c0_i32_0 = arith.constant 0 : i32
    %c0_i32_1 = arith.constant 0 : i32
    return %c0_i32, %c0_i32_0 : i32, i32
  }
  func.func @transform_5(%arg0: i32) -> (i32, i32) {
    %c0_i32 = arith.constant 0 : i32
    %c0_i32_0 = arith.constant 0 : i32
    %c0_i32_1 = arith.constant 0 : i32
    return %c0_i32, %c0_i32_0 : i32, i32
  }
  func.func @transform_6(%arg0: i32) -> (i32, i32) {
    %c0_i32 = arith.constant 0 : i32
    %c0_i32_0 = arith.constant 0 : i32
    %c0_i32_1 = arith.constant 0 : i32
    return %c0_i32, %c0_i32_0 : i32, i32
  }
  func.func @transform_7(%arg0: i32) -> (i32, i32) {
    %c0_i32 = arith.constant 0 : i32
    %c0_i32_0 = arith.constant 0 : i32
    %c0_i32_1 = arith.constant 0 : i32
    return %c0_i32, %c0_i32_0 : i32, i32
  }
  func.func @transform_8(%arg0: i32) -> (i32, i32) {
    %c0_i32 = arith.constant 0 : i32
    %c0_i32_0 = arith.constant 0 : i32
    %c0_i32_1 = arith.constant 0 : i32
    return %c0_i32, %c0_i32_0 : i32, i32
  }
  func.func @transform_9(%arg0: i32) -> (i32, i32) {
    %c0_i32 = arith.constant 0 : i32
    %c0_i32_0 = arith.constant 0 : i32
    return %arg0, %c0_i32 : i32, i32
  }
}

</mosaic_0001>

<llo_original>
// kernel: bilstm_forward.1
$region0: #{bilstm_forward.1}
  #allocation0 [shape = 'u32[]', space=smem, size = 0x4, offset = 0x4, fixed_abs, tag = 'smem constant byte address 0x4 - core index']
  #allocation1 [shape = 'u32[144,128]{1,0:T(1,128)}', space=vmem, size = 0x12000, scoped, tag = 'internal scratch']
  #allocation2 [shape = 'f32[128,256]{1,0:T(8,128)}', space=vmem, size = 0x20000, scoped, tag = 'scratch operand']
  #allocation3 [shape = 'bf16[128,64]{1,0:T(16,128)(2,1)}', space=vmem, size = 0x8000, scoped, tag = 'scratch operand']
  %s0 = inlined_call_operand.vmem [shape: bf16[128,32], index: 0, kind: input, shape index: {}]
  %s1 = inlined_call_operand.vmem [shape: bf16[32,256], index: 1, kind: input, shape index: {}]
  %s2 = inlined_call_operand.vmem [shape: bf16[32,256], index: 2, kind: input, shape index: {}]
  %s3 = inlined_call_operand.vmem [shape: f32[1,256], index: 3, kind: input, shape index: {}]
  %s4 = inlined_call_operand.vmem [shape: bf16[64,256], index: 4, kind: input, shape index: {}]
  %s5 = inlined_call_operand.vmem [shape: bf16[32,256], index: 5, kind: input, shape index: {}]
  %s6 = inlined_call_operand.vmem [shape: f32[1,256], index: 6, kind: input, shape index: {}]
  %s7 = inlined_call_operand.vmem [shape: f32[64,128], index: 7, kind: input, shape index: {}]
  %s8 = inlined_call_operand.vmem [shape: f32[1,128], index: 8, kind: input, shape index: {}]
  %s9 = inlined_call_operand.vmem [shape: f32[16,128], index: 9, kind: output, shape index: {}]
  %s10 = sld [smem:[#allocation0]]
  $region46: #{bilstm_forward.1} parent=0
    _
  %s12 = ssub.s32 1, %s10
  %s13 = scalar_select 0, %s12, %s10
  // Predicated region
  $region2: #{bilstm_forward.1} parent=0 // pred_check
    _
  $region3: #{bilstm_forward.1} parent=0 // pred_check_branch
    %15 = sbr.rel (0) target = $region5
  $region4: #{bilstm_forward.1} parent=0 // pred_region
    _
  $region5: #{bilstm_forward.1} parent=0 // pred_fallthru
    _
  // Predicated region
  $region6: #{bilstm_forward.1} parent=0 // pred_check
    _
  $region7: #{bilstm_forward.1} parent=0 // pred_check_branch
    %17 = sbr.rel (0) target = $region9
  $region8: #{bilstm_forward.1} parent=0 // pred_region
    _
  $region9: #{bilstm_forward.1} parent=0 // pred_fallthru
    _
  // Predicated region
  $region10: #{bilstm_forward.1} parent=0 // pred_check
    _
  $region11: #{bilstm_forward.1} parent=0 // pred_check_branch
    %19 = sbr.rel (0) target = $region13
  $region12: #{bilstm_forward.1} parent=0 // pred_region
    _
  $region13: #{bilstm_forward.1} parent=0 // pred_fallthru
    _
  // Predicated region
  $region14: #{bilstm_forward.1} parent=0 // pred_check
    _
  $region15: #{bilstm_forward.1} parent=0 // pred_check_branch
    %21 = sbr.rel (0) target = $region17
  $region16: #{bilstm_forward.1} parent=0 // pred_region
    _
  $region17: #{bilstm_forward.1} parent=0 // pred_fallthru
    _
  // Predicated region
  $region18: #{bilstm_forward.1} parent=0 // pred_check
    _
  $region19: #{bilstm_forward.1} parent=0 // pred_check_branch
    %23 = sbr.rel (0) target = $region21
  $region20: #{bilstm_forward.1} parent=0 // pred_region
    _
  $region21: #{bilstm_forward.1} parent=0 // pred_fallthru
    _
  // Predicated region
  $region22: #{bilstm_forward.1} parent=0 // pred_check
    _
  $region23: #{bilstm_forward.1} parent=0 // pred_check_branch
    %25 = sbr.rel (0) target = $region25
  $region24: #{bilstm_forward.1} parent=0 // pred_region
    _
  $region25: #{bilstm_forward.1} parent=0 // pred_fallthru
    _
  // Predicated region
  $region26: #{bilstm_forward.1} parent=0 // pred_check
    _
  $region27: #{bilstm_forward.1} parent=0 // pred_check_branch
    %27 = sbr.rel (0) target = $region29
  $region28: #{bilstm_forward.1} parent=0 // pred_region
    _
  $region29: #{bilstm_forward.1} parent=0 // pred_fallthru
    _
  // Predicated region
  $region30: #{bilstm_forward.1} parent=0 // pred_check
    _
  $region31: #{bilstm_forward.1} parent=0 // pred_check_branch
    %29 = sbr.rel (0) target = $region33
  $region32: #{bilstm_forward.1} parent=0 // pred_region
    _
  $region33: #{bilstm_forward.1} parent=0 // pred_fallthru
    _
  // Predicated region
  $region34: #{bilstm_forward.1} parent=0 // pred_check
    _
  $region35: #{bilstm_forward.1} parent=0 // pred_check_branch
    %31 = sbr.rel (0) target = $region37
  $region36: #{bilstm_forward.1} parent=0 // pred_region
    _
  $region37: #{bilstm_forward.1} parent=0 // pred_fallthru
    _
  %v33 = vld [vmem:[%s0] sm:$0xf]
  %v34 = vld [vmem:[%s0 + $0x4] sm:$0xf]
  %v35 = vld [vmem:[%s0 + $0x8] sm:$0xf]
  %v36 = vld [vmem:[%s0 + $0xc] sm:$0xf]
  %v37 = vld [vmem:[%s0 + $0x10] sm:$0xf]
  %v38 = vld [vmem:[%s0 + $0x14] sm:$0xf]
  %v39 = vld [vmem:[%s0 + $0x18] sm:$0xf]
  %v40 = vld [vmem:[%s0 + $0x1c] sm:$0xf]
  %v41 = vld [vmem:[%s0 + $0x20] sm:$0xf]
  %v42 = vld [vmem:[%s0 + $0x24] sm:$0xf]
  %v43 = vld [vmem:[%s0 + $0x28] sm:$0xf]
  %v44 = vld [vmem:[%s0 + $0x2c] sm:$0xf]
  %v45 = vld [vmem:[%s0 + $0x30] sm:$0xf]
  %v46 = vld [vmem:[%s0 + $0x34] sm:$0xf]
  %v47 = vld [vmem:[%s0 + $0x38] sm:$0xf]
  %v48 = vld [vmem:[%s0 + $0x3c] sm:$0xf]
  %v49 = vld [vmem:[%s1] sm:$0xff]
  %v50 = vld [vmem:[%s1 + $0x8] sm:$0xff]
  %v51 = vld [vmem:[%s1 + $0x10] sm:$0xff]
  %v52 = vld [vmem:[%s1 + $0x18] sm:$0xff]
  %v53 = vld [vmem:[%s3] sm:$0x3]
  %v55 = vlaneseq
  %v56 = vshrl.u32 %v55, 7
  %v57 = vsub.s32 0, %v56
  %v58 = vrot.slane %v53, %v57
  %v59 = vlaneseq
  %v60 = vshrl.u32 %v59, 7
  %v61 = vsub.s32 1, %v60
  %v62 = vrot.slane %v53, %v61
  %v81 = vunpack.c.l.b16 %v33
  %v82 = vunpack.c.l.b16 %v34
  %v83 = vunpack.c.l.b16 %v35
  %v84 = vunpack.c.l.b16 %v36
  %v85 = vunpack.c.l.b16 %v37
  %v86 = vunpack.c.l.b16 %v38
  %v87 = vunpack.c.l.b16 %v39
  %v88 = vunpack.c.l.b16 %v40
  %v89 = vunpack.c.l.b16 %v41
  %v90 = vunpack.c.l.b16 %v42
  %v91 = vunpack.c.l.b16 %v43
  %v92 = vunpack.c.l.b16 %v44
  %v93 = vunpack.c.l.b16 %v45
  %v94 = vunpack.c.l.b16 %v46
  %v95 = vunpack.c.l.b16 %v47
  %v96 = vunpack.c.l.b16 %v48
  %v97 = vpack.c.b16 %v82, %v81
  %v98 = vpack.c.b16 %v84, %v83
  %v99 = vpack.c.b16 %v86, %v85
  %v100 = vpack.c.b16 %v88, %v87
  %v101 = vpack.c.b16 %v90, %v89
  %v102 = vpack.c.b16 %v92, %v91
  %v103 = vpack.c.b16 %v94, %v93
  %v104 = vpack.c.b16 %v96, %v95
  %v109 = vunpack.c.l.b16 %v49
  %v110 = vunpack.c.h.b16 %v49
  %v111 = vunpack.c.l.b16 %v50
  %v112 = vunpack.c.h.b16 %v50
  %v113 = vunpack.c.l.b16 %v51
  %v114 = vunpack.c.h.b16 %v51
  %v115 = vunpack.c.l.b16 %v52
  %v116 = vunpack.c.h.b16 %v52
  %v117 = vpack.c.b16 %v111, %v109
  %v118 = vpack.c.b16 %v112, %v110
  %v119 = vpack.c.b16 %v115, %v113
  %v120 = vpack.c.b16 %v116, %v114
  %vm125 = vcmask 261120
  %v127 = vsel %vm125, %v97, 0
  %v130 = vsel %vm125, %v98, 0
  %v133 = vsel %vm125, %v99, 0
  %v136 = vsel %vm125, %v100, 0
  %v139 = vsel %vm125, %v101, 0
  %v142 = vsel %vm125, %v102, 0
  %v145 = vsel %vm125, %v103, 0
  %v148 = vsel %vm125, %v104, 0
  %150 = vmatprep.subr.bf16.mxu0 %v118
  %151 = vmatpush1.bf16.msra.mxu0 %v117
  %152 = vmatprep.subr.bf16.mxu0 %v120
  %153 = vmatpush1.bf16.msra.mxu0 %v119
  %154 = vmatprep.subr.bf16.mxu0 0
  %155 = vmatpush1.bf16.msra.mxu0 0
  %156 = vmatprep.subr.bf16.mxu0 0
  %157 = vmatpush1.bf16.msra.mxu0 0
  %158 = vmatprep.subr.bf16.mxu0 0
  %159 = vmatpush1.bf16.msra.mxu0 0
  %160 = vmatprep.subr.bf16.mxu0 0
  %161 = vmatpush1.bf16.msra.mxu0 0
  %162 = vmatprep.subr.bf16.mxu0 0
  %163 = vmatpush1.bf16.msra.mxu0 0
  %164 = vmatprep.subr.bf16.mxu0 0
  %165 = vmatpush1.bf16.msra.mxu0 0
  %166 = vmatprep.subr.bf16.mxu0 0
  %167 = vmatpush1.bf16.msra.mxu0 0
  %168 = vmatprep.subr.bf16.mxu0 0
  %169 = vmatpush1.bf16.msra.mxu0 0
  %170 = vmatprep.subr.bf16.mxu0 0
  %171 = vmatpush1.bf16.msra.mxu0 0
  %172 = vmatprep.subr.bf16.mxu0 0
  %173 = vmatpush1.bf16.msra.mxu0 0
  %174 = vmatprep.subr.bf16.mxu0 0
  %175 = vmatpush1.bf16.msra.mxu0 0
  %176 = vmatprep.subr.bf16.mxu0 0
  %177 = vmatpush1.bf16.msra.mxu0 0
  %178 = vmatprep.subr.bf16.mxu0 0
  %179 = vmatpush1.bf16.msra.mxu0 0
  %180 = vmatprep.subr.bf16.mxu0 0
  %181 = vmatpush1.bf16.msra.mxu0 0
  %182 = vmatprep.mubr.bf16.mxu0 0
  %183 = vmatmul.mubr.bf16.gmra.mrb[0].mxu0 %v127
  %v184 = vpop.f32.mrb[0].mxu0
  %v185 = vadd.f32 %v58, %v184
  %v186 = vpop.f32.mrb[0].mxu0
  %v187 = vadd.f32 %v62, %v186
  %v188 = vpop.f32.mrb[0].mxu0
  %v189 = vadd.f32 %v58, %v188
  %v190 = vpop.f32.mrb[0].mxu0
  %v191 = vadd.f32 %v62, %v190
  %192 = vmatprep.mubr.bf16.mxu0 0
  %193 = vmatmul.mubr.bf16.gmra.mrb[0].mxu0 %v130
  %v194 = vpop.f32.mrb[0].mxu0
  %v195 = vadd.f32 %v58, %v194
  %v196 = vpop.f32.mrb[0].mxu0
  %v197 = vadd.f32 %v62, %v196
  %v198 = vpop.f32.mrb[0].mxu0
  %v199 = vadd.f32 %v58, %v198
  %v200 = vpop.f32.mrb[0].mxu0
  %v201 = vadd.f32 %v62, %v200
  %202 = vmatprep.mubr.bf16.mxu0 0
  %203 = vmatmul.mubr.bf16.gmra.mrb[0].mxu0 %v133
  %v204 = vpop.f32.mrb[0].mxu0
  %v205 = vadd.f32 %v58, %v204
  %v206 = vpop.f32.mrb[0].mxu0
  %v207 = vadd.f32 %v62, %v206
  %v208 = vpop.f32.mrb[0].mxu0
  %v209 = vadd.f32 %v58, %v208
  %v210 = vpop.f32.mrb[0].mxu0
  %v211 = vadd.f32 %v62, %v210
  %212 = vmatprep.mubr.bf16.mxu0 0
  %213 = vmatmul.mubr.bf16.gmra.mrb[0].mxu0 %v136
  %v214 = vpop.f32.mrb[0].mxu0
  %v215 = vadd.f32 %v58, %v214
  %v216 = vpop.f32.mrb[0].mxu0
  %v217 = vadd.f32 %v62, %v216
  %v218 = vpop.f32.mrb[0].mxu0
  %v219 = vadd.f32 %v58, %v218
  %v220 = vpop.f32.mrb[0].mxu0
  %v221 = vadd.f32 %v62, %v220
  %222 = vmatprep.mubr.bf16.mxu0 0
  %223 = vmatmul.mubr.bf16.gmra.mrb[0].mxu0 %v139
  %v224 = vpop.f32.mrb[0].mxu0
  %v225 = vadd.f32 %v58, %v224
  %v226 = vpop.f32.mrb[0].mxu0
  %v227 = vadd.f32 %v62, %v226
  %v228 = vpop.f32.mrb[0].mxu0
  %v229 = vadd.f32 %v58, %v228
  %v230 = vpop.f32.mrb[0].mxu0
  %v231 = vadd.f32 %v62, %v230
  %232 = vmatprep.mubr.bf16.mxu0 0
  %233 = vmatmul.mubr.bf16.gmra.mrb[0].mxu0 %v142
  %v234 = vpop.f32.mrb[0].mxu0
  %v235 = vadd.f32 %v58, %v234
  %v236 = vpop.f32.mrb[0].mxu0
  %v237 = vadd.f32 %v62, %v236
  %v238 = vpop.f32.mrb[0].mxu0
  %v239 = vadd.f32 %v58, %v238
  %v240 = vpop.f32.mrb[0].mxu0
  %v241 = vadd.f32 %v62, %v240
  %242 = vmatprep.mubr.bf16.mxu0 0
  %243 = vmatmul.mubr.bf16.gmra.mrb[0].mxu0 %v145
  %v244 = vpop.f32.mrb[0].mxu0
  %v245 = vadd.f32 %v58, %v244
  %v246 = vpop.f32.mrb[0].mxu0
  %v247 = vadd.f32 %v62, %v246
  %v248 = vpop.f32.mrb[0].mxu0
  %v249 = vadd.f32 %v58, %v248
  %v250 = vpop.f32.mrb[0].mxu0
  %v251 = vadd.f32 %v62, %v250
  %252 = vmatprep.mubr.bf16.mxu0 0
  %253 = vmatmul.mubr.bf16.gmra.mrb[0].mxu0 %v148
  %v254 = vpop.f32.mrb[0].mxu0
  %v255 = vadd.f32 %v58, %v254
  %v256 = vpop.f32.mrb[0].mxu0
  %v257 = vadd.f32 %v62, %v256
  %v258 = vpop.f32.mrb[0].mxu0
  %v259 = vadd.f32 %v58, %v258
  %v260 = vpop.f32.mrb[0].mxu0
  %v261 = vadd.f32 %v62, %v260
  %262 = vdwg.mxu0
  %263 = vst [vmem:[#allocation2] sm:$0xff] %v185
  %264 = vst [vmem:[#allocation2 + $0x8] sm:$0xff] %v187
  %265 = vst [vmem:[#allocation2 + $0x10] sm:$0xff] %v189
  %266 = vst [vmem:[#allocation2 + $0x18] sm:$0xff] %v191
  %267 = vst [vmem:[#allocation2 + $0x20] sm:$0xff] %v195
  %268 = vst [vmem:[#allocation2 + $0x28] sm:$0xff] %v197
  %269 = vst [vmem:[#allocation2 + $0x30] sm:$0xff] %v199
  %270 = vst [vmem:[#allocation2 + $0x38] sm:$0xff] %v201
  %271 = vst [vmem:[#allocation2 + $0x40] sm:$0xff] %v205
  %272 = vst [vmem:[#allocation2 + $0x48] sm:$0xff] %v207
  %273 = vst [vmem:[#allocation2 + $0x50] sm:$0xff] %v209
  %274 = vst [vmem:[#allocation2 + $0x58] sm:$0xff] %v211
  %275 = vst [vmem:[#allocation2 + $0x60] sm:$0xff] %v215
  %276 = vst [vmem:[#allocation2 + $0x68] sm:$0xff] %v217
  %277 = vst [vmem:[#allocation2 + $0x70] sm:$0xff] %v219
  %278 = vst [vmem:[#allocation2 + $0x78] sm:$0xff] %v221
  %279 = vst [vmem:[#allocation2 + $0x80] sm:$0xff] %v225
  %280 = vst [vmem:[#allocation2 + $0x88] sm:$0xff] %v227
  %281 = vst [vmem:[#allocation2 + $0x90] sm:$0xff] %v229
  %282 = vst [vmem:[#allocation2 + $0x98] sm:$0xff] %v231
  %283 = vst [vmem:[#allocation2 + $0xa0] sm:$0xff] %v235
  %284 = vst [vmem:[#allocation2 + $0xa8] sm:$0xff] %v237
  %285 = vst [vmem:[#allocation2 + $0xb0] sm:$0xff] %v239
  %286 = vst [vmem:[#allocation2 + $0xb8] sm:$0xff] %v241
  %287 = vst [vmem:[#allocation2 + $0xc0] sm:$0xff] %v245
  %288 = vst [vmem:[#allocation2 + $0xc8] sm:$0xff] %v247
  %289 = vst [vmem:[#allocation2 + $0xd0] sm:$0xff] %v249
  %290 = vst [vmem:[#allocation2 + $0xd8] sm:$0xff] %v251
  %291 = vst [vmem:[#allocation2 + $0xe0] sm:$0xff] %v255
  %292 = vst [vmem:[#allocation2 + $0xe8] sm:$0xff] %v257
  %293 = vst [vmem:[#allocation2 + $0xf0] sm:$0xff] %v259
  %294 = vst [vmem:[#allocation2 + $0xf8] sm:$0xff] %v261
  %v295 = vld [vmem:[%s2] sm:$0xff]
  %v296 = vld [vmem:[%s2 + $0x8] sm:$0xff]
  %v297 = vld [vmem:[%s2 + $0x10] sm:$0xff]
  %v298 = vld [vmem:[%s2 + $0x18] sm:$0xff]
  %v303 = vunpack.c.l.b16 %v295
  %v304 = vunpack.c.h.b16 %v295
  %v305 = vunpack.c.l.b16 %v296
  %v306 = vunpack.c.h.b16 %v296
  %v307 = vunpack.c.l.b16 %v297
  %v308 = vunpack.c.h.b16 %v297
  %v309 = vunpack.c.l.b16 %v298
  %v310 = vunpack.c.h.b16 %v298
  %v311 = vpack.c.b16 %v305, %v303
  %v312 = vpack.c.b16 %v306, %v304
  %v313 = vpack.c.b16 %v309, %v307
  %v314 = vpack.c.b16 %v310, %v308
  %v320 = vsel %vm125, 0, 0
  %322 = vmatprep.subr.bf16.mxu0 %v312
  %323 = vmatpush1.bf16.msra.mxu0 %v311
  %324 = vmatprep.subr.bf16.mxu0 %v314
  %325 = vmatpush1.bf16.msra.mxu0 %v313
  %326 = vmatprep.subr.bf16.mxu0 0
  %327 = vmatpush1.bf16.msra.mxu0 0
  %328 = vmatprep.subr.bf16.mxu0 0
  %329 = vmatpush1.bf16.msra.mxu0 0
  %330 = vmatprep.subr.bf16.mxu0 0
  %331 = vmatpush1.bf16.msra.mxu0 0
  %332 = vmatprep.subr.bf16.mxu0 0
  %333 = vmatpush1.bf16.msra.mxu0 0
  %334 = vmatprep.subr.bf16.mxu0 0
  %335 = vmatpush1.bf16.msra.mxu0 0
  %336 = vmatprep.subr.bf16.mxu0 0
  %337 = vmatpush1.bf16.msra.mxu0 0
  %338 = vmatprep.subr.bf16.mxu0 0
  %339 = vmatpush1.bf16.msra.mxu0 0
  %340 = vmatprep.subr.bf16.mxu0 0
  %341 = vmatpush1.bf16.msra.mxu0 0
  %342 = vmatprep.subr.bf16.mxu0 0
  %343 = vmatpush1.bf16.msra.mxu0 0
  %344 = vmatprep.subr.bf16.mxu0 0
  %345 = vmatpush1.bf16.msra.mxu0 0
  %346 = vmatprep.subr.bf16.mxu0 0
  %347 = vmatpush1.bf16.msra.mxu0 0
  %348 = vmatprep.subr.bf16.mxu0 0
  %349 = vmatpush1.bf16.msra.mxu0 0
  %350 = vmatprep.subr.bf16.mxu0 0
  %351 = vmatpush1.bf16.msra.mxu0 0
  %352 = vmatprep.subr.bf16.mxu0 0
  %353 = vmatpush1.bf16.msra.mxu0 0
  %354 = vmatprep.mubr.bf16.mxu0 0
  %355 = vmatmul.mubr.bf16.gmra.mrb[0].mxu0 %v320
  %v356 = vpop.f32.mrb[0].mxu0
  %v357 = vadd.f32 0.0, %v356
  %v358 = vpop.f32.mrb[0].mxu0
  %v359 = vpop.f32.mrb[0].mxu0
  %v360 = vadd.f32 0.0, %v359
  %v361 = vpop.f32.mrb[0].mxu0
  %362 = vmatprep.mubr.bf16.mxu0 0
  %363 = vmatmul.mubr.bf16.gmra.mrb[0].mxu0 %v320
  %v364 = vpop.f32.mrb[0].mxu0
  %v365 = vpop.f32.mrb[0].mxu0
  %v366 = vadd.f32 0.0, %v365
  %v367 = vpop.f32.mrb[0].mxu0
  %v368 = vpop.f32.mrb[0].mxu0
  %v369 = vadd.f32 0.0, %v368
  %370 = vdwg.mxu0
  %s371 = smul.u32 0, 2
  %s372 = smul.addr %s371, 8
  %s373 = scalar_lea.vmem [#allocation2], %s372
  %v374 = vld [vmem:[%s373] sm:$0xff]
  %v375 = vld [vmem:[%s373 + $0x10] sm:$0xff]
  %v376 = vadd.f32 %v374, %v357
  %v377 = vadd.f32 %v375, %v360
  %s378 = smul.u32 14, 2
  %s379 = smul.addr %s378, 8
  %s380 = scalar_lea.vmem [#allocation2], %s379
  %v381 = vld [vmem:[%s380 + $0x8] sm:$0xff]
  %v382 = vld [vmem:[%s380 + $0x18] sm:$0xff]
  %v383 = vadd.f32 %v381, %v366
  %v384 = vadd.f32 %v382, %v369
  %v385 = vxor.u32 %v376, 2147483648
  %v386 = vxor.u32 %v377, 2147483648
  %v387 = vxor.u32 %v383, 2147483648
  %v388 = vxor.u32 %v384, 2147483648
  %v389 = vmul.f32 %v385, 1.442695
  %v390 = vpow.pop %v389
  %v391 = vmul.f32 %v386, 1.442695
  %v392 = vpow.pop %v391
  %v393 = vmul.f32 %v387, 1.442695
  %v394 = vpow.pop %v393
  %v395 = vmul.f32 %v388, 1.442695
  %v396 = vpow.pop %v395
  %v397 = vadd.f32 %v390, 1.0
  %v398 = vadd.f32 %v392, 1.0
  %v399 = vadd.f32 %v394, 1.0
  %v400 = vadd.f32 %v396, 1.0
  %v401 = vrcp.pop %v397
  %v402 = vmul.f32 1.0, %v401
  %v403 = vrcp.pop %v398
  %v404 = vmul.f32 1.0, %v403
  %v405 = vrcp.pop %v399
  %v406 = vmul.f32 1.0, %v405
  %v407 = vrcp.pop %v400
  %v408 = vmul.f32 1.0, %v407
  %v409 = vtanh.pop %v376
  %v410 = vtanh.pop %v377
  %v411 = vtanh.pop %v383
  %v412 = vtanh.pop %v384
  %v413 = vmul.f32 %v402, 0.0
  %v414 = vmul.f32 %v404, 0.0
  %v415 = vmul.f32 %v406, 0.0
  %v416 = vmul.f32 %v408, 0.0
  %421 = vrot.lane.b32.xlu0 %v409, 64
  %v422 = vpop.permute.xlu0 %421
  %423 = vrot.lane.b32.xlu0 %v410, 64
  %v424 = vpop.permute.xlu0 %423
  %425 = vrot.lane.b32.xlu0 %v411, 64
  %v426 = vpop.permute.xlu0 %425
  %427 = vrot.lane.b32.xlu0 %v412, 64
  %v428 = vpop.permute.xlu0 %427
  %v433 = vmul.f32 %v402, %v422
  %v434 = vmul.f32 %v404, %v424
  %v435 = vmul.f32 %v406, %v426
  %v436 = vmul.f32 %v408, %v428
  %441 = vrot.lane.b32.xlu0 %v433, 32
  %v442 = vpop.permute.xlu0 %441
  %443 = vrot.lane.b32.xlu0 %v434, 32
  %v444 = vpop.permute.xlu0 %443
  %445 = vrot.lane.b32.xlu0 %v435, 32
  %v446 = vpop.permute.xlu0 %445
  %447 = vrot.lane.b32.xlu0 %v436, 32
  %v448 = vpop.permute.xlu0 %447
  %v453 = vadd.f32 %v413, %v442
  %v454 = vadd.f32 %v414, %v444
  %v455 = vadd.f32 %v415, %v446
  %v456 = vadd.f32 %v416, %v448
  %v457 = vtanh.pop %v453
  %v458 = vtanh.pop %v454
  %v459 = vtanh.pop %v455
  %v460 = vtanh.pop %v456
  %465 = vrot.lane.b32.xlu0 %v457, 64
  %v466 = vpop.permute.xlu0 %465
  %467 = vrot.lane.b32.xlu0 %v458, 64
  %v468 = vpop.permute.xlu0 %467
  %469 = vrot.lane.b32.xlu0 %v459, 64
  %v470 = vpop.permute.xlu0 %469
  %471 = vrot.lane.b32.xlu0 %v460, 64
  %v472 = vpop.permute.xlu0 %471
  %v477 = vmul.f32 %v402, %v466
  %v478 = vmul.f32 %v404, %v468
  %v479 = vmul.f32 %v406, %v470
  %v480 = vmul.f32 %v408, %v472
  %v481 = vpack.c.bf16 %v478, %v477
  %483 = vrot.lane.b32.xlu0 %v481, 32
  %v484 = vpop.permute.xlu0 %483
  %486 = vst.msk [vmem:[#allocation3] sm:$0xff] %vm125, %v484
  %v487 = vpack.c.bf16 %v480, %v479
  %489 = vrot.lane.b32.xlu0 %v487, 64
  %v490 = vpop.permute.xlu0 %489
  %s492 = scalar_lea.vmem [#allocation3], 56
  %vm493 = vcmask 523520
  %494 = vst.msk [vmem:[%s492] sm:$0xff] %vm493, %v490
  %v495 = vld [vmem:[%s2] sm:$0xff]
  %v496 = vld [vmem:[%s2 + $0x8] sm:$0xff]
  %v497 = vld [vmem:[%s2 + $0x10] sm:$0xff]
  %v498 = vld [vmem:[%s2 + $0x18] sm:$0xff]
  %499 = vrot.lane.b32.xlu0 %v487, 32
  %v500 = vpop.permute.xlu0 %499
  %v505 = vunpack.c.l.b16 %v495
  %v506 = vunpack.c.h.b16 %v495
  %v507 = vunpack.c.l.b16 %v496
  %v508 = vunpack.c.h.b16 %v496
  %v509 = vunpack.c.l.b16 %v497
  %v510 = vunpack.c.h.b16 %v497
  %v511 = vunpack.c.l.b16 %v498
  %v512 = vunpack.c.h.b16 %v498
  %v513 = vpack.c.b16 %v507, %v505
  %v514 = vpack.c.b16 %v508, %v506
  %v515 = vpack.c.b16 %v511, %v509
  %v516 = vpack.c.b16 %v512, %v510
  %v522 = vsel %vm125, %v484, 0
  %v525 = vsel %vm125, %v500, 0
  %527 = vmatprep.subr.bf16.mxu0 %v514
  %528 = vmatpush1.bf16.msra.mxu0 %v513
  %529 = vmatprep.subr.bf16.mxu0 %v516
  %530 = vmatpush1.bf16.msra.mxu0 %v515
  %531 = vmatprep.subr.bf16.mxu0 0
  %532 = vmatpush1.bf16.msra.mxu0 0
  %533 = vmatprep.subr.bf16.mxu0 0
  %534 = vmatpush1.bf16.msra.mxu0 0
  %535 = vmatprep.subr.bf16.mxu0 0
  %536 = vmatpush1.bf16.msra.mxu0 0
  %537 = vmatprep.subr.bf16.mxu0 0
  %538 = vmatpush1.bf16.msra.mxu0 0
  %539 = vmatprep.subr.bf16.mxu0 0
  %540 = vmatpush1.bf16.msra.mxu0 0
  %541 = vmatprep.subr.bf16.mxu0 0
  %542 = vmatpush1.bf16.msra.mxu0 0
  %543 = vmatprep.subr.bf16.mxu0 0
  %544 = vmatpush1.bf16.msra.mxu0 0
  %545 = vmatprep.subr.bf16.mxu0 0
  %546 = vmatpush1.bf16.msra.mxu0 0
  %547 = vmatprep.subr.bf16.mxu0 0
  %548 = vmatpush1.bf16.msra.mxu0 0
  %549 = vmatprep.subr.bf16.mxu0 0
  %550 = vmatpush1.bf16.msra.mxu0 0
  %551 = vmatprep.subr.bf16.mxu0 0
  %552 = vmatpush1.bf16.msra.mxu0 0
  %553 = vmatprep.subr.bf16.mxu0 0
  %554 = vmatpush1.bf16.msra.mxu0 0
  %555 = vmatprep.subr.bf16.mxu0 0
  %556 = vmatpush1.bf16.msra.mxu0 0
  %557 = vmatprep.subr.bf16.mxu0 0
  %558 = vmatpush1.bf16.msra.mxu0 0
  %559 = vmatprep.mubr.bf16.mxu0 0
  %560 = vmatmul.mubr.bf16.gmra.mrb[0].mxu0 %v522
  %v561 = vpop.f32.mrb[0].mxu0
  %v562 = vadd.f32 0.0, %v561
  %v563 = vpop.f32.mrb[0].mxu0
  %v564 = vpop.f32.mrb[0].mxu0
  %v565 = vadd.f32 0.0, %v564
  %v566 = vpop.f32.mrb[0].mxu0
  %567 = vmatprep.mubr.bf16.mxu0 0
  %568 = vmatmul.mubr.bf16.gmra.mrb[0].mxu0 %v525
  %v569 = vpop.f32.mrb[0].mxu0
  %v570 = vpop.f32.mrb[0].mxu0
  %v571 = vadd.f32 0.0, %v570
  %v572 = vpop.f32.mrb[0].mxu0
  %v573 = vpop.f32.mrb[0].mxu0
  %v574 = vadd.f32 0.0, %v573
  %575 = vdwg.mxu0
  %s576 = smul.u32 2, 2
  %s577 = smul.addr %s576, 8
  %s578 = scalar_lea.vmem [#allocation2], %s577
  %v579 = vld [vmem:[%s578] sm:$0xff]
  %v580 = vld [vmem:[%s578 + $0x10] sm:$0xff]
  %v581 = vadd.f32 %v579, %v562
  %v582 = vadd.f32 %v580, %v565
  %s583 = smul.u32 12, 2
  %s584 = smul.addr %s583, 8
  %s585 = scalar_lea.vmem [#allocation2], %s584
  %v586 = vld [vmem:[%s585 + $0x8] sm:$0xff]
  %v587 = vld [vmem:[%s585 + $0x18] sm:$0xff]
  %v588 = vadd.f32 %v586, %v571
  %v589 = vadd.f32 %v587, %v574
  %v590 = vxor.u32 %v581, 2147483648
  %v591 = vxor.u32 %v582, 2147483648
  %v592 = vxor.u32 %v588, 2147483648
  %v593 = vxor.u32 %v589, 2147483648
  %v594 = vmul.f32 %v590, 1.442695
  %v595 = vpow.pop %v594
  %v596 = vmul.f32 %v591, 1.442695
  %v597 = vpow.pop %v596
  %v598 = vmul.f32 %v592, 1.442695
  %v599 = vpow.pop %v598
  %v600 = vmul.f32 %v593, 1.442695
  %v601 = vpow.pop %v600
  %v602 = vadd.f32 %v595, 1.0
  %v603 = vadd.f32 %v597, 1.0
  %v604 = vadd.f32 %v599, 1.0
  %v605 = vadd.f32 %v601, 1.0
  %v606 = vrcp.pop %v602
  %v607 = vmul.f32 1.0, %v606
  %v608 = vrcp.pop %v603
  %v609 = vmul.f32 1.0, %v608
  %v610 = vrcp.pop %v604
  %v611 = vmul.f32 1.0, %v610
  %v612 = vrcp.pop %v605
  %v613 = vmul.f32 1.0, %v612
  %v614 = vtanh.pop %v581
  %v615 = vtanh.pop %v582
  %v616 = vtanh.pop %v588
  %v617 = vtanh.pop %v589
  %v618 = vmul.f32 %v607, %v453
  %v619 = vmul.f32 %v609, %v454
  %v620 = vmul.f32 %v611, %v455
  %v621 = vmul.f32 %v613, %v456
  %626 = vrot.lane.b32.xlu0 %v614, 64
  %v627 = vpop.permute.xlu0 %626
  %628 = vrot.lane.b32.xlu0 %v615, 64
  %v629 = vpop.permute.xlu0 %628
  %630 = vrot.lane.b32.xlu0 %v616, 64
  %v631 = vpop.permute.xlu0 %630
  %632 = vrot.lane.b32.xlu0 %v617, 64
  %v633 = vpop.permute.xlu0 %632
  %v638 = vmul.f32 %v607, %v627
  %v639 = vmul.f32 %v609, %v629
  %v640 = vmul.f32 %v611, %v631
  %v641 = vmul.f32 %v613, %v633
  %646 = vrot.lane.b32.xlu0 %v638, 32
  %v647 = vpop.permute.xlu0 %646
  %648 = vrot.lane.b32.xlu0 %v639, 32
  %v649 = vpop.permute.xlu0 %648
  %650 = vrot.lane.b32.xlu0 %v640, 32
  %v651 = vpop.permute.xlu0 %650
  %652 = vrot.lane.b32.xlu0 %v641, 32
  %v653 = vpop.permute.xlu0 %652
  %v658 = vadd.f32 %v618, %v647
  %v659 = vadd.f32 %v619, %v649
  %v660 = vadd.f32 %v620, %v651
  %v661 = vadd.f32 %v621, %v653
  %v662 = vtanh.pop %v658
  %v663 = vtanh.pop %v659
  %v664 = vtanh.pop %v660
  %v665 = vtanh.pop %v661
  %670 = vrot.lane.b32.xlu0 %v662, 64
  %v671 = vpop.permute.xlu0 %670
  %672 = vrot.lane.b32.xlu0 %v663, 64
  %v673 = vpop.permute.xlu0 %672
  %674 = vrot.lane.b32.xlu0 %v664, 64
  %v675 = vpop.permute.xlu0 %674
  %676 = vrot.lane.b32.xlu0 %v665, 64
  %v677 = vpop.permute.xlu0 %676
  %v682 = vmul.f32 %v607, %v671
  %v683 = vmul.f32 %v609, %v673
  %v684 = vmul.f32 %v611, %v675
  %v685 = vmul.f32 %v613, %v677
  %v686 = vpack.c.bf16 %v683, %v682
  %688 = vrot.lane.b32.xlu0 %v686, 32
  %v689 = vpop.permute.xlu0 %688
  %s691 = scalar_lea.vmem [#allocation3], 8
  %692 = vst.msk [vmem:[%s691] sm:$0xff] %vm125, %v689
  %v693 = vpack.c.bf16 %v685, %v684
  %695 = vrot.lane.b32.xlu0 %v693, 64
  %v696 = vpop.permute.xlu0 %695
  %s698 = scalar_lea.vmem [#allocation3], 48
  %699 = vst.msk [vmem:[%s698] sm:$0xff] %vm493, %v696
  %v700 = vld [vmem:[%s2] sm:$0xff]
  %v701 = vld [vmem:[%s2 + $0x8] sm:$0xff]
  %v702 = vld [vmem:[%s2 + $0x10] sm:$0xff]
  %v703 = vld [vmem:[%s2 + $0x18] sm:$0xff]
  %704 = vrot.lane.b32.xlu0 %v693, 32
  %v705 = vpop.permute.xlu0 %704
  %v710 = vunpack.c.l.b16 %v700
  %v711 = vunpack.c.h.b16 %v700
  %v712 = vunpack.c.l.b16 %v701
  %v713 = vunpack.c.h.b16 %v701
  %v714 = vunpack.c.l.b16 %v702
  %v715 = vunpack.c.h.b16 %v702
  %v716 = vunpack.c.l.b16 %v703
  %v717 = vunpack.c.h.b16 %v703
  %v718 = vpack.c.b16 %v712, %v710
  %v719 = vpack.c.b16 %v713, %v711
  %v720 = vpack.c.b16 %v716, %v714
  %v721 = vpack.c.b16 %v717, %v715
  %v727 = vsel %vm125, %v689, 0
  %v730 = vsel %vm125, %v705, 0
  %732 = vmatprep.subr.bf16.mxu0 %v719
  %733 = vmatpush1.bf16.msra.mxu0 %v718
  %734 = vmatprep.subr.bf16.mxu0 %v721
  %735 = vmatpush1.bf16.msra.mxu0 %v720
  %736 = vmatprep.subr.bf16.mxu0 0
  %737 = vmatpush1.bf16.msra.mxu0 0
  %738 = vmatprep.subr.bf16.mxu0 0
  %739 = vmatpush1.bf16.msra.mxu0 0
  %740 = vmatprep.subr.bf16.mxu0 0
  %741 = vmatpush1.bf16.msra.mxu0 0
  %742 = vmatprep.subr.bf16.mxu0 0
  %743 = vmatpush1.bf16.msra.mxu0 0
  %744 = vmatprep.subr.bf16.mxu0 0
  %745 = vmatpush1.bf16.msra.mxu0 0
  %746 = vmatprep.subr.bf16.mxu0 0
  %747 = vmatpush1.bf16.msra.mxu0 0
  %748 = vmatprep.subr.bf16.mxu0 0
  %749 = vmatpush1.bf16.msra.mxu0 0
  %750 = vmatprep.subr.bf16.mxu0 0
  %751 = vmatpush1.bf16.msra.mxu0 0
  %752 = vmatprep.subr.bf16.mxu0 0
  %753 = vmatpush1.bf16.msra.mxu0 0
  %754 = vmatprep.subr.bf16.mxu0 0
  %755 = vmatpush1.bf16.msra.mxu0 0
  %756 = vmatprep.subr.bf16.mxu0 0
  %757 = vmatpush1.bf16.msra.mxu0 0
  %758 = vmatprep.subr.bf16.mxu0 0
  %759 = vmatpush1.bf16.msra.mxu0 0
  %760 = vmatprep.subr.bf16.mxu0 0
  %761 = vmatpush1.bf16.msra.mxu0 0
  %762 = vmatprep.subr.bf16.mxu0 0
  %763 = vmatpush1.bf16.msra.mxu0 0
  %764 = vmatprep.mubr.bf16.mxu0 0
  %765 = vmatmul.mubr.bf16.gmra.mrb[0].mxu0 %v727
  %v766 = vpop.f32.mrb[0].mxu0
  %v767 = vadd.f32 0.0, %v766
  %v768 = vpop.f32.mrb[0].mxu0
  %v769 = vpop.f32.mrb[0].mxu0
  %v770 = vadd.f32 0.0, %v769
  %v771 = vpop.f32.mrb[0].mxu0
  %772 = vmatprep.mubr.bf16.mxu0 0
  %773 = vmatmul.mubr.bf16.gmra.mrb[0].mxu0 %v730
  %v774 = vpop.f32.mrb[0].mxu0
  %v775 = vpop.f32.mrb[0].mxu0
  %v776 = vadd.f32 0.0, %v775
  %v777 = vpop.f32.mrb[0].mxu0
  %v778 = vpop.f32.mrb[0].mxu0
  %v779 = vadd.f32 0.0, %v778
  %780 = vdwg.mxu0
  %s781 = smul.u32 4, 2
  %s782 = smul.addr %s781, 8
  %s783 = scalar_lea.vmem [#allocation2], %s782
  %v784 = vld [vmem:[%s783] sm:$0xff]
  %v785 = vld [vmem:[%s783 + $0x10] sm:$0xff]
  %v786 = vadd.f32 %v784, %v767
  %v787 = vadd.f32 %v785, %v770
  %s788 = smul.u32 10, 2
  %s789 = smul.addr %s788, 8
  %s790 = scalar_lea.vmem [#allocation2], %s789
  %v791 = vld [vmem:[%s790 + $0x8] sm:$0xff]
  %v792 = vld [vmem:[%s790 + $0x18] sm:$0xff]
  %v793 = vadd.f32 %v791, %v776
  %v794 = vadd.f32 %v792, %v779
  %v795 = vxor.u32 %v786, 2147483648
  %v796 = vxor.u32 %v787, 2147483648
  %v797 = vxor.u32 %v793, 2147483648
  %v798 = vxor.u32 %v794, 2147483648
  %v799 = vmul.f32 %v795, 1.442695
  %v800 = vpow.pop %v799
  %v801 = vmul.f32 %v796, 1.442695
  %v802 = vpow.pop %v801
  %v803 = vmul.f32 %v797, 1.442695
  %v804 = vpow.pop %v803
  %v805 = vmul.f32 %v798, 1.442695
  %v806 = vpow.pop %v805
  %v807 = vadd.f32 %v800, 1.0
  %v808 = vadd.f32 %v802, 1.0
  %v809 = vadd.f32 %v804, 1.0
  %v810 = vadd.f32 %v806, 1.0
  %v811 = vrcp.pop %v807
  %v812 = vmul.f32 1.0, %v811
  %v813 = vrcp.pop %v808
  %v814 = vmul.f32 1.0, %v813
  %v815 = vrcp.pop %v809
  %v816 = vmul.f32 1.0, %v815
  %v817 = vrcp.pop %v810
  %v818 = vmul.f32 1.0, %v817
  %v819 = vtanh.pop %v786
  %v820 = vtanh.pop %v787
  %v821 = vtanh.pop %v793
  %v822 = vtanh.pop %v794
  %v823 = vmul.f32 %v812, %v658
  %v824 = vmul.f32 %v814, %v659
  %v825 = vmul.f32 %v816, %v660
  %v826 = vmul.f32 %v818, %v661
  %831 = vrot.lane.b32.xlu0 %v819, 64
  %v832 = vpop.permute.xlu0 %831
  %833 = vrot.lane.b32.xlu0 %v820, 64
  %v834 = vpop.permute.xlu0 %833
  %835 = vrot.lane.b32.xlu0 %v821, 64
  %v836 = vpop.permute.xlu0 %835
  %837 = vrot.lane.b32.xlu0 %v822, 64
  %v838 = vpop.permute.xlu0 %837
  %v843 = vmul.f32 %v812, %v832
  %v844 = vmul.f32 %v814, %v834
  %v845 = vmul.f32 %v816, %v836
  %v846 = vmul.f32 %v818, %v838
  %851 = vrot.lane.b32.xlu0 %v843, 32
  %v852 = vpop.permute.xlu0 %851
  %853 = vrot.lane.b32.xlu0 %v844, 32
  %v854 = vpop.permute.xlu0 %853
  %855 = vrot.lane.b32.xlu0 %v845, 32
  %v856 = vpop.permute.xlu0 %855
  %857 = vrot.lane.b32.xlu0 %v846, 32
  %v858 = vpop.permute.xlu0 %857
  %v863 = vadd.f32 %v823, %v852
  %v864 = vadd.f32 %v824, %v854
  %v865 = vadd.f32 %v825, %v856
  %v866 = vadd.f32 %v826, %v858
  %v867 = vtanh.pop %v863
  %v868 = vtanh.pop %v864
  %v869 = vtanh.pop %v865
  %v870 = vtanh.pop %v866
  %875 = vrot.lane.b32.xlu0 %v867, 64
  %v876 = vpop.permute.xlu0 %875
  %877 = vrot.lane.b32.xlu0 %v868, 64
  %v878 = vpop.permute.xlu0 %877
  %879 = vrot.lane.b32.xlu0 %v869, 64
  %v880 = vpop.permute.xlu0 %879
  %881 = vrot.lane.b32.xlu0 %v870, 64
  %v882 = vpop.permute.xlu0 %881
  %v887 = vmul.f32 %v812, %v876
  %v888 = vmul.f32 %v814, %v878
  %v889 = vmul.f32 %v816, %v880
  %v890 = vmul.f32 %v818, %v882
  %v891 = vpack.c.bf16 %v888, %v887
  %893 = vrot.lane.b32.xlu0 %v891, 32
  %v894 = vpop.permute.xlu0 %893
  %s896 = scalar_lea.vmem [#allocation3], 16
  %897 = vst.msk [vmem:[%s896] sm:$0xff] %vm125, %v894
  %v898 = vpack.c.bf16 %v890, %v889
  %900 = vrot.lane.b32.xlu0 %v898, 64
  %v901 = vpop.permute.xlu0 %900
  %s903 = scalar_lea.vmem [#allocation3], 40
  %904 = vst.msk [vmem:[%s903] sm:$0xff] %vm493, %v901
  %v905 = vld [vmem:[%s2] sm:$0xff]
  %v906 = vld [vmem:[%s2 + $0x8] sm:$0xff]
  %v907 = vld [vmem:[%s2 + $0x10] sm:$0xff]
  %v908 = vld [vmem:[%s2 + $0x18] sm:$0xff]
  %909 = vrot.lane.b32.xlu0 %v898, 32
  %v910 = vpop.permute.xlu0 %909
  %v915 = vunpack.c.l.b16 %v905
  %v916 = vunpack.c.h.b16 %v905
  %v917 = vunpack.c.l.b16 %v906
  %v918 = vunpack.c.h.b16 %v906
  %v919 = vunpack.c.l.b16 %v907
  %v920 = vunpack.c.h.b16 %v907
  %v921 = vunpack.c.l.b16 %v908
  %v922 = vunpack.c.h.b16 %v908
  %v923 = vpack.c.b16 %v917, %v915
  %v924 = vpack.c.b16 %v918, %v916
  %v925 = vpack.c.b16 %v921, %v919
  %v926 = vpack.c.b16 %v922, %v920
  %v932 = vsel %vm125, %v894, 0
  %v935 = vsel %vm125, %v910, 0
  %937 = vmatprep.subr.bf16.mxu0 %v924
  %938 = vmatpush1.bf16.msra.mxu0 %v923
  %939 = vmatprep.subr.bf16.mxu0 %v926
  %940 = vmatpush1.bf16.msra.mxu0 %v925
  %941 = vmatprep.subr.bf16.mxu0 0
  %942 = vmatpush1.bf16.msra.mxu0 0
  %943 = vmatprep.subr.bf16.mxu0 0
  %944 = vmatpush1.bf16.msra.mxu0 0
  %945 = vmatprep.subr.bf16.mxu0 0
  %946 = vmatpush1.bf16.msra.mxu0 0
  %947 = vmatprep.subr.bf16.mxu0 0
  %948 = vmatpush1.bf16.msra.mxu0 0
  %949 = vmatprep.subr.bf16.mxu0 0
  %950 = vmatpush1.bf16.msra.mxu0 0
  %951 = vmatprep.subr.bf16.mxu0 0
  %952 = vmatpush1.bf16.msra.mxu0 0
  %953 = vmatprep.subr.bf16.mxu0 0
  %954 = vmatpush1.bf16.msra.mxu0 0
  %955 = vmatprep.subr.bf16.mxu0 0
  %956 = vmatpush1.bf16.msra.mxu0 0
  %957 = vmatprep.subr.bf16.mxu0 0
  %958 = vmatpush1.bf16.msra.mxu0 0
  %959 = vmatprep.subr.bf16.mxu0 0
  %960 = vmatpush1.bf16.msra.mxu0 0
  %961 = vmatprep.subr.bf16.mxu0 0
  %962 = vmatpush1.bf16.msra.mxu0 0
  %963 = vmatprep.subr.bf16.mxu0 0
  %964 = vmatpush1.bf16.msra.mxu0 0
  %965 = vmatprep.subr.bf16.mxu0 0
  %966 = vmatpush1.bf16.msra.mxu0 0
  %967 = vmatprep.subr.bf16.mxu0 0
  %968 = vmatpush1.bf16.msra.mxu0 0
  %969 = vmatprep.mubr.bf16.mxu0 0
  %970 = vmatmul.mubr.bf16.gmra.mrb[0].mxu0 %v932
  %v971 = vpop.f32.mrb[0].mxu0
  %v972 = vadd.f32 0.0, %v971
  %v973 = vpop.f32.mrb[0].mxu0
  %v974 = vpop.f32.mrb[0].mxu0
  %v975 = vadd.f32 0.0, %v974
  %v976 = vpop.f32.mrb[0].mxu0
  %977 = vmatprep.mubr.bf16.mxu0 0
  %978 = vmatmul.mubr.bf16.gmra.mrb[0].mxu0 %v935
  %v979 = vpop.f32.mrb[0].mxu0
  %v980 = vpop.f32.mrb[0].mxu0
  %v981 = vadd.f32 0.0, %v980
  %v982 = vpop.f32.mrb[0].mxu0
  %v983 = vpop.f32.mrb[0].mxu0
  %v984 = vadd.f32 0.0, %v983
  %985 = vdwg.mxu0
  %s986 = smul.u32 6, 2
  %s987 = smul.addr %s986, 8
  %s988 = scalar_lea.vmem [#allocation2], %s987
  %v989 = vld [vmem:[%s988] sm:$0xff]
  %v990 = vld [vmem:[%s988 + $0x10] sm:$0xff]
  %v991 = vadd.f32 %v989, %v972
  %v992 = vadd.f32 %v990, %v975
  %s993 = smul.u32 8, 2
  %s994 = smul.addr %s993, 8
  %s995 = scalar_lea.vmem [#allocation2], %s994
  %v996 = vld [vmem:[%s995 + $0x8] sm:$0xff]
  %v997 = vld [vmem:[%s995 + $0x18] sm:$0xff]
  %v998 = vadd.f32 %v996, %v981
  %v999 = vadd.f32 %v997, %v984
  %v1000 = vxor.u32 %v991, 2147483648
  %v1001 = vxor.u32 %v992, 2147483648
  %v1002 = vxor.u32 %v998, 2147483648
  %v1003 = vxor.u32 %v999, 2147483648
  %v1004 = vmul.f32 %v1000, 1.442695
  %v1005 = vpow.pop %v1004
  %v1006 = vmul.f32 %v1001, 1.442695
  %v1007 = vpow.pop %v1006
  %v1008 = vmul.f32 %v1002, 1.442695
  %v1009 = vpow.pop %v1008
  %v1010 = vmul.f32 %v1003, 1.442695
  %v1011 = vpow.pop %v1010
  %v1012 = vadd.f32 %v1005, 1.0
  %v1013 = vadd.f32 %v1007, 1.0
  %v1014 = vadd.f32 %v1009, 1.0
  %v1015 = vadd.f32 %v1011, 1.0
  %v1016 = vrcp.pop %v1012
  %v1017 = vmul.f32 1.0, %v1016
  %v1018 = vrcp.pop %v1013
  %v1019 = vmul.f32 1.0, %v1018
  %v1020 = vrcp.pop %v1014
  %v1021 = vmul.f32 1.0, %v1020
  %v1022 = vrcp.pop %v1015
  %v1023 = vmul.f32 1.0, %v1022
  %v1024 = vtanh.pop %v991
  %v1025 = vtanh.pop %v992
  %v1026 = vtanh.pop %v998
  %v1027 = vtanh.pop %v999
  %v1028 = vmul.f32 %v1017, %v863
  %v1029 = vmul.f32 %v1019, %v864
  %v1030 = vmul.f32 %v1021, %v865
  %v1031 = vmul.f32 %v1023, %v866
  %1036 = vrot.lane.b32.xlu0 %v1024, 64
  %v1037 = vpop.permute.xlu0 %1036
  %1038 = vrot.lane.b32.xlu0 %v1025, 64
  %v1039 = vpop.permute.xlu0 %1038
  %1040 = vrot.lane.b32.xlu0 %v1026, 64
  %v1041 = vpop.permute.xlu0 %1040
  %1042 = vrot.lane.b32.xlu0 %v1027, 64
  %v1043 = vpop.permute.xlu0 %1042
  %v1048 = vmul.f32 %v1017, %v1037
  %v1049 = vmul.f32 %v1019, %v1039
  %v1050 = vmul.f32 %v1021, %v1041
  %v1051 = vmul.f32 %v1023, %v1043
  %1056 = vrot.lane.b32.xlu0 %v1048, 32
  %v1057 = vpop.permute.xlu0 %1056
  %1058 = vrot.lane.b32.xlu0 %v1049, 32
  %v1059 = vpop.permute.xlu0 %1058
  %1060 = vrot.lane.b32.xlu0 %v1050, 32
  %v1061 = vpop.permute.xlu0 %1060
  %1062 = vrot.lane.b32.xlu0 %v1051, 32
  %v1063 = vpop.permute.xlu0 %1062
  %v1068 = vadd.f32 %v1028, %v1057
  %v1069 = vadd.f32 %v1029, %v1059
  %v1070 = vadd.f32 %v1030, %v1061
  %v1071 = vadd.f32 %v1031, %v1063
  %v1072 = vtanh.pop %v1068
  %v1073 = vtanh.pop %v1069
  %v1074 = vtanh.pop %v1070
  %v1075 = vtanh.pop %v1071
  %1080 = vrot.lane.b32.xlu0 %v1072, 64
  %v1081 = vpop.permute.xlu0 %1080
  %1082 = vrot.lane.b32.xlu0 %v1073, 64
  %v1083 = vpop.permute.xlu0 %1082
  %1084 = vrot.lane.b32.xlu0 %v1074, 64
  %v1085 = vpop.permute.xlu0 %1084
  %1086 = vrot.lane.b32.xlu0 %v1075, 64
  %v1087 = vpop.permute.xlu0 %1086
  %v1092 = vmul.f32 %v1017, %v1081
  %v1093 = vmul.f32 %v1019, %v1083
  %v1094 = vmul.f32 %v1021, %v1085
  %v1095 = vmul.f32 %v1023, %v1087
  %v1096 = vpack.c.bf16 %v1093, %v1092
  %1098 = vrot.lane.b32.xlu0 %v1096, 32
  %v1099 = vpop.permute.xlu0 %1098
  %s1101 = scalar_lea.vmem [#allocation3], 24
  %1102 = vst.msk [vmem:[%s1101] sm:$0xff] %vm125, %v1099
  %v1103 = vpack.c.bf16 %v1095, %v1094
  %1105 = vrot.lane.b32.xlu0 %v1103, 64
  %v1106 = vpop.permute.xlu0 %1105
  %s1108 = scalar_lea.vmem [#allocation3], 32
  %1109 = vst.msk [vmem:[%s1108] sm:$0xff] %vm493, %v1106
  %v1110 = vld [vmem:[%s2] sm:$0xff]
  %v1111 = vld [vmem:[%s2 + $0x8] sm:$0xff]
  %v1112 = vld [vmem:[%s2 + $0x10] sm:$0xff]
  %v1113 = vld [vmem:[%s2 + $0x18] sm:$0xff]
  %1114 = vrot.lane.b32.xlu0 %v1103, 32
  %v1115 = vpop.permute.xlu0 %1114
  %v1120 = vunpack.c.l.b16 %v1110
  %v1121 = vunpack.c.h.b16 %v1110
  %v1122 = vunpack.c.l.b16 %v1111
  %v1123 = vunpack.c.h.b16 %v1111
  %v1124 = vunpack.c.l.b16 %v1112
  %v1125 = vunpack.c.h.b16 %v1112
  %v1126 = vunpack.c.l.b16 %v1113
  %v1127 = vunpack.c.h.b16 %v1113
  %v1128 = vpack.c.b16 %v1122, %v1120
  %v1129 = vpack.c.b16 %v1123, %v1121
  %v1130 = vpack.c.b16 %v1126, %v1124
  %v1131 = vpack.c.b16 %v1127, %v1125
  %v1137 = vsel %vm125, %v1099, 0
  %v1140 = vsel %vm125, %v1115, 0
  %1142 = vmatprep.subr.bf16.mxu0 %v1129
  %1143 = vmatpush1.bf16.msra.mxu0 %v1128
  %1144 = vmatprep.subr.bf16.mxu0 %v1131
  %1145 = vmatpush1.bf16.msra.mxu0 %v1130
  %1146 = vmatprep.subr.bf16.mxu0 0
  %1147 = vmatpush1.bf16.msra.mxu0 0
  %1148 = vmatprep.subr.bf16.mxu0 0
  %1149 = vmatpush1.bf16.msra.mxu0 0
  %1150 = vmatprep.subr.bf16.mxu0 0
  %1151 = vmatpush1.bf16.msra.mxu0 0
  %1152 = vmatprep.subr.bf16.mxu0 0
  %1153 = vmatpush1.bf16.msra.mxu0 0
  %1154 = vmatprep.subr.bf16.mxu0 0
  %1155 = vmatpush1.bf16.msra.mxu0 0
  %1156 = vmatprep.subr.bf16.mxu0 0
  %1157 = vmatpush1.bf16.msra.mxu0 0
  %1158 = vmatprep.subr.bf16.mxu0 0
  %1159 = vmatpush1.bf16.msra.mxu0 0
  %1160 = vmatprep.subr.bf16.mxu0 0
  %1161 = vmatpush1.bf16.msra.mxu0 0
  %1162 = vmatprep.subr.bf16.mxu0 0
  %1163 = vmatpush1.bf16.msra.mxu0 0
  %1164 = vmatprep.subr.bf16.mxu0 0
  %1165 = vmatpush1.bf16.msra.mxu0 0
  %1166 = vmatprep.subr.bf16.mxu0 0
  %1167 = vmatpush1.bf16.msra.mxu0 0
  %1168 = vmatprep.subr.bf16.mxu0 0
  %1169 = vmatpush1.bf16.msra.mxu0 0
  %1170 = vmatprep.subr.bf16.mxu0 0
  %1171 = vmatpush1.bf16.msra.mxu0 0
  %1172 = vmatprep.subr.bf16.mxu0 0
  %1173 = vmatpush1.bf16.msra.mxu0 0
  %1174 = vmatprep.mubr.bf16.mxu0 0
  %1175 = vmatmul.mubr.bf16.gmra.mrb[0].mxu0 %v1137
  %v1176 = vpop.f32.mrb[0].mxu0
  %v1177 = vadd.f32 0.0, %v1176
  %v1178 = vpop.f32.mrb[0].mxu0
  %v1179 = vpop.f32.mrb[0].mxu0
  %v1180 = vadd.f32 0.0, %v1179
  %v1181 = vpop.f32.mrb[0].mxu0
  %1182 = vmatprep.mubr.bf16.mxu0 0
  %1183 = vmatmul.mubr.bf16.gmra.mrb[0].mxu0 %v1140
  %v1184 = vpop.f32.mrb[0].mxu0
  %v1185 = vpop.f32.mrb[0].mxu0
  %v1186 = vadd.f32 0.0, %v1185
  %v1187 = vpop.f32.mrb[0].mxu0
  %v1188 = vpop.f32.mrb[0].mxu0
  %v1189 = vadd.f32 0.0, %v1188
  %1190 = vdwg.mxu0
  %v1191 = vld [vmem:[%s995] sm:$0xff]
  %v1192 = vld [vmem:[%s995 + $0x10] sm:$0xff]
  %v1193 = vadd.f32 %v1191, %v1177
  %v1194 = vadd.f32 %v1192, %v1180
  %v1195 = vld [vmem:[%s988 + $0x8] sm:$0xff]
  %v1196 = vld [vmem:[%s988 + $0x18] sm:$0xff]
  %v1197 = vadd.f32 %v1195, %v1186
  %v1198 = vadd.f32 %v1196, %v1189
  %v1199 = vxor.u32 %v1193, 2147483648
  %v1200 = vxor.u32 %v1194, 2147483648
  %v1201 = vxor.u32 %v1197, 2147483648
  %v1202 = vxor.u32 %v1198, 2147483648
  %v1203 = vmul.f32 %v1199, 1.442695
  %v1204 = vpow.pop %v1203
  %v1205 = vmul.f32 %v1200, 1.442695
  %v1206 = vpow.pop %v1205
  %v1207 = vmul.f32 %v1201, 1.442695
  %v1208 = vpow.pop %v1207
  %v1209 = vmul.f32 %v1202, 1.442695
  %v1210 = vpow.pop %v1209
  %v1211 = vadd.f32 %v1204, 1.0
  %v1212 = vadd.f32 %v1206, 1.0
  %v1213 = vadd.f32 %v1208, 1.0
  %v1214 = vadd.f32 %v1210, 1.0
  %v1215 = vrcp.pop %v1211
  %v1216 = vmul.f32 1.0, %v1215
  %v1217 = vrcp.pop %v1212
  %v1218 = vmul.f32 1.0, %v1217
  %v1219 = vrcp.pop %v1213
  %v1220 = vmul.f32 1.0, %v1219
  %v1221 = vrcp.pop %v1214
  %v1222 = vmul.f32 1.0, %v1221
  %v1223 = vtanh.pop %v1193
  %v1224 = vtanh.pop %v1194
  %v1225 = vtanh.pop %v1197
  %v1226 = vtanh.pop %v1198
  %v1227 = vmul.f32 %v1216, %v1068
  %v1228 = vmul.f32 %v1218, %v1069
  %v1229 = vmul.f32 %v1220, %v1070
  %v1230 = vmul.f32 %v1222, %v1071
  %1235 = vrot.lane.b32.xlu0 %v1223, 64
  %v1236 = vpop.permute.xlu0 %1235
  %1237 = vrot.lane.b32.xlu0 %v1224, 64
  %v1238 = vpop.permute.xlu0 %1237
  %1239 = vrot.lane.b32.xlu0 %v1225, 64
  %v1240 = vpop.permute.xlu0 %1239
  %1241 = vrot.lane.b32.xlu0 %v1226, 64
  %v1242 = vpop.permute.xlu0 %1241
  %v1247 = vmul.f32 %v1216, %v1236
  %v1248 = vmul.f32 %v1218, %v1238
  %v1249 = vmul.f32 %v1220, %v1240
  %v1250 = vmul.f32 %v1222, %v1242
  %1255 = vrot.lane.b32.xlu0 %v1247, 32
  %v1256 = vpop.permute.xlu0 %1255
  %1257 = vrot.lane.b32.xlu0 %v1248, 32
  %v1258 = vpop.permute.xlu0 %1257
  %1259 = vrot.lane.b32.xlu0 %v1249, 32
  %v1260 = vpop.permute.xlu0 %1259
  %1261 = vrot.lane.b32.xlu0 %v1250, 32
  %v1262 = vpop.permute.xlu0 %1261
  %v1267 = vadd.f32 %v1227, %v1256
  %v1268 = vadd.f32 %v1228, %v1258
  %v1269 = vadd.f32 %v1229, %v1260
  %v1270 = vadd.f32 %v1230, %v1262
  %v1271 = vtanh.pop %v1267
  %v1272 = vtanh.pop %v1268
  %v1273 = vtanh.pop %v1269
  %v1274 = vtanh.pop %v1270
  %1279 = vrot.lane.b32.xlu0 %v1271, 64
  %v1280 = vpop.permute.xlu0 %1279
  %1281 = vrot.lane.b32.xlu0 %v1272, 64
  %v1282 = vpop.permute.xlu0 %1281
  %1283 = vrot.lane.b32.xlu0 %v1273, 64
  %v1284 = vpop.permute.xlu0 %1283
  %1285 = vrot.lane.b32.xlu0 %v1274, 64
  %v1286 = vpop.permute.xlu0 %1285
  %v1291 = vmul.f32 %v1216, %v1280
  %v1292 = vmul.f32 %v1218, %v1282
  %v1293 = vmul.f32 %v1220, %v1284
  %v1294 = vmul.f32 %v1222, %v1286
  %v1295 = vpack.c.bf16 %v1292, %v1291
  %1297 = vrot.lane.b32.xlu0 %v1295, 32
  %v1298 = vpop.permute.xlu0 %1297
  %1300 = vst.msk [vmem:[%s1108] sm:$0xff] %vm125, %v1298
  %v1301 = vpack.c.bf16 %v1294, %v1293
  %1303 = vrot.lane.b32.xlu0 %v1301, 64
  %v1304 = vpop.permute.xlu0 %1303
  %1306 = vst.msk [vmem:[%s1101] sm:$0xff] %vm493, %v1304
  %v1307 = vld [vmem:[%s2] sm:$0xff]
  %v1308 = vld [vmem:[%s2 + $0x8] sm:$0xff]
  %v1309 = vld [vmem:[%s2 + $0x10] sm:$0xff]
  %v1310 = vld [vmem:[%s2 + $0x18] sm:$0xff]
  %1311 = vrot.lane.b32.xlu0 %v1301, 32
  %v1312 = vpop.permute.xlu0 %1311
  %v1317 = vunpack.c.l.b16 %v1307
  %v1318 = vunpack.c.h.b16 %v1307
  %v1319 = vunpack.c.l.b16 %v1308
  %v1320 = vunpack.c.h.b16 %v1308
  %v1321 = vunpack.c.l.b16 %v1309
  %v1322 = vunpack.c.h.b16 %v1309
  %v1323 = vunpack.c.l.b16 %v1310
  %v1324 = vunpack.c.h.b16 %v1310
  %v1325 = vpack.c.b16 %v1319, %v1317
  %v1326 = vpack.c.b16 %v1320, %v1318
  %v1327 = vpack.c.b16 %v1323, %v1321
  %v1328 = vpack.c.b16 %v1324, %v1322
  %v1334 = vsel %vm125, %v1298, 0
  %v1337 = vsel %vm125, %v1312, 0
  %1339 = vmatprep.subr.bf16.mxu0 %v1326
  %1340 = vmatpush1.bf16.msra.mxu0 %v1325
  %1341 = vmatprep.subr.bf16.mxu0 %v1328
  %1342 = vmatpush1.bf16.msra.mxu0 %v1327
  %1343 = vmatprep.subr.bf16.mxu0 0
  %1344 = vmatpush1.bf16.msra.mxu0 0
  %1345 = vmatprep.subr.bf16.mxu0 0
  %1346 = vmatpush1.bf16.msra.mxu0 0
  %1347 = vmatprep.subr.bf16.mxu0 0
  %1348 = vmatpush1.bf16.msra.mxu0 0
  %1349 = vmatprep.subr.bf16.mxu0 0
  %1350 = vmatpush1.bf16.msra.mxu0 0
  %1351 = vmatprep.subr.bf16.mxu0 0
  %1352 = vmatpush1.bf16.msra.mxu0 0
  %1353 = vmatprep.subr.bf16.mxu0 0
  %1354 = vmatpush1.bf16.msra.mxu0 0
  %1355 = vmatprep.subr.bf16.mxu0 0
  %1356 = vmatpush1.bf16.msra.mxu0 0
  %1357 = vmatprep.subr.bf16.mxu0 0
  %1358 = vmatpush1.bf16.msra.mxu0 0
  %1359 = vmatprep.subr.bf16.mxu0 0
  %1360 = vmatpush1.bf16.msra.mxu0 0
  %1361 = vmatprep.subr.bf16.mxu0 0
  %1362 = vmatpush1.bf16.msra.mxu0 0
  %1363 = vmatprep.subr.bf16.mxu0 0
  %1364 = vmatpush1.bf16.msra.mxu0 0
  %1365 = vmatprep.subr.bf16.mxu0 0
  %1366 = vmatpush1.bf16.msra.mxu0 0
  %1367 = vmatprep.subr.bf16.mxu0 0
  %1368 = vmatpush1.bf16.msra.mxu0 0
  %1369 = vmatprep.subr.bf16.mxu0 0
  %1370 = vmatpush1.bf16.msra.mxu0 0
  %1371 = vmatprep.mubr.bf16.mxu0 0
  %1372 = vmatmul.mubr.bf16.gmra.mrb[0].mxu0 %v1334
  %v1373 = vpop.f32.mrb[0].mxu0
  %v1374 = vadd.f32 0.0, %v1373
  %v1375 = vpop.f32.mrb[0].mxu0
  %v1376 = vpop.f32.mrb[0].mxu0
  %v1377 = vadd.f32 0.0, %v1376
  %v1378 = vpop.f32.mrb[0].mxu0
  %1379 = vmatprep.mubr.bf16.mxu0 0
  %1380 = vmatmul.mubr.bf16.gmra.mrb[0].mxu0 %v1337
  %v1381 = vpop.f32.mrb[0].mxu0
  %v1382 = vpop.f32.mrb[0].mxu0
  %v1383 = vadd.f32 0.0, %v1382
  %v1384 = vpop.f32.mrb[0].mxu0
  %v1385 = vpop.f32.mrb[0].mxu0
  %v1386 = vadd.f32 0.0, %v1385
  %1387 = vdwg.mxu0
  %v1388 = vld [vmem:[%s790] sm:$0xff]
  %v1389 = vld [vmem:[%s790 + $0x10] sm:$0xff]
  %v1390 = vadd.f32 %v1388, %v1374
  %v1391 = vadd.f32 %v1389, %v1377
  %v1392 = vld [vmem:[%s783 + $0x8] sm:$0xff]
  %v1393 = vld [vmem:[%s783 + $0x18] sm:$0xff]
  %v1394 = vadd.f32 %v1392, %v1383
  %v1395 = vadd.f32 %v1393, %v1386
  %v1396 = vxor.u32 %v1390, 2147483648
  %v1397 = vxor.u32 %v1391, 2147483648
  %v1398 = vxor.u32 %v1394, 2147483648
  %v1399 = vxor.u32 %v1395, 2147483648
  %v1400 = vmul.f32 %v1396, 1.442695
  %v1401 = vpow.pop %v1400
  %v1402 = vmul.f32 %v1397, 1.442695
  %v1403 = vpow.pop %v1402
  %v1404 = vmul.f32 %v1398, 1.442695
  %v1405 = vpow.pop %v1404
  %v1406 = vmul.f32 %v1399, 1.442695
  %v1407 = vpow.pop %v1406
  %v1408 = vadd.f32 %v1401, 1.0
  %v1409 = vadd.f32 %v1403, 1.0
  %v1410 = vadd.f32 %v1405, 1.0
  %v1411 = vadd.f32 %v1407, 1.0
  %v1412 = vrcp.pop %v1408
  %v1413 = vmul.f32 1.0, %v1412
  %v1414 = vrcp.pop %v1409
  %v1415 = vmul.f32 1.0, %v1414
  %v1416 = vrcp.pop %v1410
  %v1417 = vmul.f32 1.0, %v1416
  %v1418 = vrcp.pop %v1411
  %v1419 = vmul.f32 1.0, %v1418
  %v1420 = vtanh.pop %v1390
  %v1421 = vtanh.pop %v1391
  %v1422 = vtanh.pop %v1394
  %v1423 = vtanh.pop %v1395
  %v1424 = vmul.f32 %v1413, %v1267
  %v1425 = vmul.f32 %v1415, %v1268
  %v1426 = vmul.f32 %v1417, %v1269
  %v1427 = vmul.f32 %v1419, %v1270
  %1432 = vrot.lane.b32.xlu0 %v1420, 64
  %v1433 = vpop.permute.xlu0 %1432
  %1434 = vrot.lane.b32.xlu0 %v1421, 64
  %v1435 = vpop.permute.xlu0 %1434
  %1436 = vrot.lane.b32.xlu0 %v1422, 64
  %v1437 = vpop.permute.xlu0 %1436
  %1438 = vrot.lane.b32.xlu0 %v1423, 64
  %v1439 = vpop.permute.xlu0 %1438
  %v1444 = vmul.f32 %v1413, %v1433
  %v1445 = vmul.f32 %v1415, %v1435
  %v1446 = vmul.f32 %v1417, %v1437
  %v1447 = vmul.f32 %v1419, %v1439
  %1452 = vrot.lane.b32.xlu0 %v1444, 32
  %v1453 = vpop.permute.xlu0 %1452
  %1454 = vrot.lane.b32.xlu0 %v1445, 32
  %v1455 = vpop.permute.xlu0 %1454
  %1456 = vrot.lane.b32.xlu0 %v1446, 32
  %v1457 = vpop.permute.xlu0 %1456
  %1458 = vrot.lane.b32.xlu0 %v1447, 32
  %v1459 = vpop.permute.xlu0 %1458
  %v1464 = vadd.f32 %v1424, %v1453
  %v1465 = vadd.f32 %v1425, %v1455
  %v1466 = vadd.f32 %v1426, %v1457
  %v1467 = vadd.f32 %v1427, %v1459
  %v1468 = vtanh.pop %v1464
  %v1469 = vtanh.pop %v1465
  %v1470 = vtanh.pop %v1466
  %v1471 = vtanh.pop %v1467
  %1476 = vrot.lane.b32.xlu0 %v1468, 64
  %v1477 = vpop.permute.xlu0 %1476
  %1478 = vrot.lane.b32.xlu0 %v1469, 64
  %v1479 = vpop.permute.xlu0 %1478
  %1480 = vrot.lane.b32.xlu0 %v1470, 64
  %v1481 = vpop.permute.xlu0 %1480
  %1482 = vrot.lane.b32.xlu0 %v1471, 64
  %v1483 = vpop.permute.xlu0 %1482
  %v1488 = vmul.f32 %v1413, %v1477
  %v1489 = vmul.f32 %v1415, %v1479
  %v1490 = vmul.f32 %v1417, %v1481
  %v1491 = vmul.f32 %v1419, %v1483
  %v1492 = vpack.c.bf16 %v1489, %v1488
  %1494 = vrot.lane.b32.xlu0 %v1492, 32
  %v1495 = vpop.permute.xlu0 %1494
  %1497 = vst.msk [vmem:[%s903] sm:$0xff] %vm125, %v1495
  %v1498 = vpack.c.bf16 %v1491, %v1490
  %1500 = vrot.lane.b32.xlu0 %v1498, 64
  %v1501 = vpop.permute.xlu0 %1500
  %1503 = vst.msk [vmem:[%s896] sm:$0xff] %vm493, %v1501
  %v1504 = vld [vmem:[%s2] sm:$0xff]
  %v1505 = vld [vmem:[%s2 + $0x8] sm:$0xff]
  %v1506 = vld [vmem:[%s2 + $0x10] sm:$0xff]
  %v1507 = vld [vmem:[%s2 + $0x18] sm:$0xff]
  %1508 = vrot.lane.b32.xlu0 %v1498, 32
  %v1509 = vpop.permute.xlu0 %1508
  %v1514 = vunpack.c.l.b16 %v1504
  %v1515 = vunpack.c.h.b16 %v1504
  %v1516 = vunpack.c.l.b16 %v1505
  %v1517 = vunpack.c.h.b16 %v1505
  %v1518 = vunpack.c.l.b16 %v1506
  %v1519 = vunpack.c.h.b16 %v1506
  %v1520 = vunpack.c.l.b16 %v1507
  %v1521 = vunpack.c.h.b16 %v1507
  %v1522 = vpack.c.b16 %v1516, %v1514
  %v1523 = vpack.c.b16 %v1517, %v1515
  %v1524 = vpack.c.b16 %v1520, %v1518
  %v1525 = vpack.c.b16 %v1521, %v1519
  %v1531 = vsel %vm125, %v1495, 0
  %v1534 = vsel %vm125, %v1509, 0
  %1536 = vmatprep.subr.bf16.mxu0 %v1523
  %1537 = vmatpush1.bf16.msra.mxu0 %v1522
  %1538 = vmatprep.subr.bf16.mxu0 %v1525
  %1539 = vmatpush1.bf16.msra.mxu0 %v1524
  %1540 = vmatprep.subr.bf16.mxu0 0
  %1541 = vmatpush1.bf16.msra.mxu0 0
  %1542 = vmatprep.subr.bf16.mxu0 0
  %1543 = vmatpush1.bf16.msra.mxu0 0
  %1544 = vmatprep.subr.bf16.mxu0 0
  %1545 = vmatpush1.bf16.msra.mxu0 0
  %1546 = vmatprep.subr.bf16.mxu0 0
  %1547 = vmatpush1.bf16.msra.mxu0 0
  %1548 = vmatprep.subr.bf16.mxu0 0
  %1549 = vmatpush1.bf16.msra.mxu0 0
  %1550 = vmatprep.subr.bf16.mxu0 0
  %1551 = vmatpush1.bf16.msra.mxu0 0
  %1552 = vmatprep.subr.bf16.mxu0 0
  %1553 = vmatpush1.bf16.msra.mxu0 0
  %1554 = vmatprep.subr.bf16.mxu0 0
  %1555 = vmatpush1.bf16.msra.mxu0 0
  %1556 = vmatprep.subr.bf16.mxu0 0
  %1557 = vmatpush1.bf16.msra.mxu0 0
  %1558 = vmatprep.subr.bf16.mxu0 0
  %1559 = vmatpush1.bf16.msra.mxu0 0
  %1560 = vmatprep.subr.bf16.mxu0 0
  %1561 = vmatpush1.bf16.msra.mxu0 0
  %1562 = vmatprep.subr.bf16.mxu0 0
  %1563 = vmatpush1.bf16.msra.mxu0 0
  %1564 = vmatprep.subr.bf16.mxu0 0
  %1565 = vmatpush1.bf16.msra.mxu0 0
  %1566 = vmatprep.subr.bf16.mxu0 0
  %1567 = vmatpush1.bf16.msra.mxu0 0
  %1568 = vmatprep.mubr.bf16.mxu0 0
  %1569 = vmatmul.mubr.bf16.gmra.mrb[0].mxu0 %v1531
  %v1570 = vpop.f32.mrb[0].mxu0
  %v1571 = vadd.f32 0.0, %v1570
  %v1572 = vpop.f32.mrb[0].mxu0
  %v1573 = vpop.f32.mrb[0].mxu0
  %v1574 = vadd.f32 0.0, %v1573
  %v1575 = vpop.f32.mrb[0].mxu0
  %1576 = vmatprep.mubr.bf16.mxu0 0
  %1577 = vmatmul.mubr.bf16.gmra.mrb[0].mxu0 %v1534
  %v1578 = vpop.f32.mrb[0].mxu0
  %v1579 = vpop.f32.mrb[0].mxu0
  %v1580 = vadd.f32 0.0, %v1579
  %v1581 = vpop.f32.mrb[0].mxu0
  %v1582 = vpop.f32.mrb[0].mxu0
  %v1583 = vadd.f32 0.0, %v1582
  %1584 = vdwg.mxu0
  %v1585 = vld [vmem:[%s585] sm:$0xff]
  %v1586 = vld [vmem:[%s585 + $0x10] sm:$0xff]
  %v1587 = vadd.f32 %v1585, %v1571
  %v1588 = vadd.f32 %v1586, %v1574
  %v1589 = vld [vmem:[%s578 + $0x8] sm:$0xff]
  %v1590 = vld [vmem:[%s578 + $0x18] sm:$0xff]
  %v1591 = vadd.f32 %v1589, %v1580
  %v1592 = vadd.f32 %v1590, %v1583
  %v1593 = vxor.u32 %v1587, 2147483648
  %v1594 = vxor.u32 %v1588, 2147483648
  %v1595 = vxor.u32 %v1591, 2147483648
  %v1596 = vxor.u32 %v1592, 2147483648
  %v1597 = vmul.f32 %v1593, 1.442695
  %v1598 = vpow.pop %v1597
  %v1599 = vmul.f32 %v1594, 1.442695
  %v1600 = vpow.pop %v1599
  %v1601 = vmul.f32 %v1595, 1.442695
  %v1602 = vpow.pop %v1601
  %v1603 = vmul.f32 %v1596, 1.442695
  %v1604 = vpow.pop %v1603
  %v1605 = vadd.f32 %v1598, 1.0
  %v1606 = vadd.f32 %v1600, 1.0
  %v1607 = vadd.f32 %v1602, 1.0
  %v1608 = vadd.f32 %v1604, 1.0
  %v1609 = vrcp.pop %v1605
  %v1610 = vmul.f32 1.0, %v1609
  %v1611 = vrcp.pop %v1606
  %v1612 = vmul.f32 1.0, %v1611
  %v1613 = vrcp.pop %v1607
  %v1614 = vmul.f32 1.0, %v1613
  %v1615 = vrcp.pop %v1608
  %v1616 = vmul.f32 1.0, %v1615
  %v1617 = vtanh.pop %v1587
  %v1618 = vtanh.pop %v1588
  %v1619 = vtanh.pop %v1591
  %v1620 = vtanh.pop %v1592
  %v1621 = vmul.f32 %v1610, %v1464
  %v1622 = vmul.f32 %v1612, %v1465
  %v1623 = vmul.f32 %v1614, %v1466
  %v1624 = vmul.f32 %v1616, %v1467
  %1629 = vrot.lane.b32.xlu0 %v1617, 64
  %v1630 = vpop.permute.xlu0 %1629
  %1631 = vrot.lane.b32.xlu0 %v1618, 64
  %v1632 = vpop.permute.xlu0 %1631
  %1633 = vrot.lane.b32.xlu0 %v1619, 64
  %v1634 = vpop.permute.xlu0 %1633
  %1635 = vrot.lane.b32.xlu0 %v1620, 64
  %v1636 = vpop.permute.xlu0 %1635
  %v1641 = vmul.f32 %v1610, %v1630
  %v1642 = vmul.f32 %v1612, %v1632
  %v1643 = vmul.f32 %v1614, %v1634
  %v1644 = vmul.f32 %v1616, %v1636
  %1649 = vrot.lane.b32.xlu0 %v1641, 32
  %v1650 = vpop.permute.xlu0 %1649
  %1651 = vrot.lane.b32.xlu0 %v1642, 32
  %v1652 = vpop.permute.xlu0 %1651
  %1653 = vrot.lane.b32.xlu0 %v1643, 32
  %v1654 = vpop.permute.xlu0 %1653
  %1655 = vrot.lane.b32.xlu0 %v1644, 32
  %v1656 = vpop.permute.xlu0 %1655
  %v1661 = vadd.f32 %v1621, %v1650
  %v1662 = vadd.f32 %v1622, %v1652
  %v1663 = vadd.f32 %v1623, %v1654
  %v1664 = vadd.f32 %v1624, %v1656
  %v1665 = vtanh.pop %v1661
  %v1666 = vtanh.pop %v1662
  %v1667 = vtanh.pop %v1663
  %v1668 = vtanh.pop %v1664
  %1673 = vrot.lane.b32.xlu0 %v1665, 64
  %v1674 = vpop.permute.xlu0 %1673
  %1675 = vrot.lane.b32.xlu0 %v1666, 64
  %v1676 = vpop.permute.xlu0 %1675
  %1677 = vrot.lane.b32.xlu0 %v1667, 64
  %v1678 = vpop.permute.xlu0 %1677
  %1679 = vrot.lane.b32.xlu0 %v1668, 64
  %v1680 = vpop.permute.xlu0 %1679
  %v1685 = vmul.f32 %v1610, %v1674
  %v1686 = vmul.f32 %v1612, %v1676
  %v1687 = vmul.f32 %v1614, %v1678
  %v1688 = vmul.f32 %v1616, %v1680
  %v1689 = vpack.c.bf16 %v1686, %v1685
  %1691 = vrot.lane.b32.xlu0 %v1689, 32
  %v1692 = vpop.permute.xlu0 %1691
  %1694 = vst.msk [vmem:[%s698] sm:$0xff] %vm125, %v1692
  %v1695 = vpack.c.bf16 %v1688, %v1687
  %1697 = vrot.lane.b32.xlu0 %v1695, 64
  %v1698 = vpop.permute.xlu0 %1697
  %1700 = vst.msk [vmem:[%s691] sm:$0xff] %vm493, %v1698
  %v1701 = vld [vmem:[%s2] sm:$0xff]
  %v1702 = vld [vmem:[%s2 + $0x8] sm:$0xff]
  %v1703 = vld [vmem:[%s2 + $0x10] sm:$0xff]
  %v1704 = vld [vmem:[%s2 + $0x18] sm:$0xff]
  %1705 = vrot.lane.b32.xlu0 %v1695, 32
  %v1706 = vpop.permute.xlu0 %1705
  %v1711 = vunpack.c.l.b16 %v1701
  %v1712 = vunpack.c.h.b16 %v1701
  %v1713 = vunpack.c.l.b16 %v1702
  %v1714 = vunpack.c.h.b16 %v1702
  %v1715 = vunpack.c.l.b16 %v1703
  %v1716 = vunpack.c.h.b16 %v1703
  %v1717 = vunpack.c.l.b16 %v1704
  %v1718 = vunpack.c.h.b16 %v1704
  %v1719 = vpack.c.b16 %v1713, %v1711
  %v1720 = vpack.c.b16 %v1714, %v1712
  %v1721 = vpack.c.b16 %v1717, %v1715
  %v1722 = vpack.c.b16 %v1718, %v1716
  %v1728 = vsel %vm125, %v1692, 0
  %v1731 = vsel %vm125, %v1706, 0
  %1733 = vmatprep.subr.bf16.mxu0 %v1720
  %1734 = vmatpush1.bf16.msra.mxu0 %v1719
  %1735 = vmatprep.subr.bf16.mxu0 %v1722
  %1736 = vmatpush1.bf16.msra.mxu0 %v1721
  %1737 = vmatprep.subr.bf16.mxu0 0
  %1738 = vmatpush1.bf16.msra.mxu0 0
  %1739 = vmatprep.subr.bf16.mxu0 0
  %1740 = vmatpush1.bf16.msra.mxu0 0
  %1741 = vmatprep.subr.bf16.mxu0 0
  %1742 = vmatpush1.bf16.msra.mxu0 0
  %1743 = vmatprep.subr.bf16.mxu0 0
  %1744 = vmatpush1.bf16.msra.mxu0 0
  %1745 = vmatprep.subr.bf16.mxu0 0
  %1746 = vmatpush1.bf16.msra.mxu0 0
  %1747 = vmatprep.subr.bf16.mxu0 0
  %1748 = vmatpush1.bf16.msra.mxu0 0
  %1749 = vmatprep.subr.bf16.mxu0 0
  %1750 = vmatpush1.bf16.msra.mxu0 0
  %1751 = vmatprep.subr.bf16.mxu0 0
  %1752 = vmatpush1.bf16.msra.mxu0 0
  %1753 = vmatprep.subr.bf16.mxu0 0
  %1754 = vmatpush1.bf16.msra.mxu0 0
  %1755 = vmatprep.subr.bf16.mxu0 0
  %1756 = vmatpush1.bf16.msra.mxu0 0
  %1757 = vmatprep.subr.bf16.mxu0 0
  %1758 = vmatpush1.bf16.msra.mxu0 0
  %1759 = vmatprep.subr.bf16.mxu0 0
  %1760 = vmatpush1.bf16.msra.mxu0 0
  %1761 = vmatprep.subr.bf16.mxu0 0
  %1762 = vmatpush1.bf16.msra.mxu0 0
  %1763 = vmatprep.subr.bf16.mxu0 0
  %1764 = vmatpush1.bf16.msra.mxu0 0
  %1765 = vmatprep.mubr.bf16.mxu0 0
  %1766 = vmatmul.mubr.bf16.gmra.mrb[0].mxu0 %v1728
  %v1767 = vpop.f32.mrb[0].mxu0
  %v1768 = vadd.f32 0.0, %v1767
  %v1769 = vpop.f32.mrb[0].mxu0
  %v1770 = vpop.f32.mrb[0].mxu0
  %v1771 = vadd.f32 0.0, %v1770
  %v1772 = vpop.f32.mrb[0].mxu0
  %1773 = vmatprep.mubr.bf16.mxu0 0
  %1774 = vmatmul.mubr.bf16.gmra.mrb[0].mxu0 %v1731
  %v1775 = vpop.f32.mrb[0].mxu0
  %v1776 = vpop.f32.mrb[0].mxu0
  %v1777 = vadd.f32 0.0, %v1776
  %v1778 = vpop.f32.mrb[0].mxu0
  %v1779 = vpop.f32.mrb[0].mxu0
  %v1780 = vadd.f32 0.0, %v1779
  %1781 = vdwg.mxu0
  %v1782 = vld [vmem:[%s380] sm:$0xff]
  %v1783 = vld [vmem:[%s380 + $0x10] sm:$0xff]
  %v1784 = vadd.f32 %v1782, %v1768
  %v1785 = vadd.f32 %v1783, %v1771
  %v1786 = vld [vmem:[%s373 + $0x8] sm:$0xff]
  %v1787 = vld [vmem:[%s373 + $0x18] sm:$0xff]
  %v1788 = vadd.f32 %v1786, %v1777
  %v1789 = vadd.f32 %v1787, %v1780
  %v1790 = vxor.u32 %v1784, 2147483648
  %v1791 = vxor.u32 %v1785, 2147483648
  %v1792 = vxor.u32 %v1788, 2147483648
  %v1793 = vxor.u32 %v1789, 2147483648
  %v1794 = vmul.f32 %v1790, 1.442695
  %v1795 = vpow.pop %v1794
  %v1796 = vmul.f32 %v1791, 1.442695
  %v1797 = vpow.pop %v1796
  %v1798 = vmul.f32 %v1792, 1.442695
  %v1799 = vpow.pop %v1798
  %v1800 = vmul.f32 %v1793, 1.442695
  %v1801 = vpow.pop %v1800
  %v1802 = vadd.f32 %v1795, 1.0
  %v1803 = vadd.f32 %v1797, 1.0
  %v1804 = vadd.f32 %v1799, 1.0
  %v1805 = vadd.f32 %v1801, 1.0
  %v1806 = vrcp.pop %v1802
  %v1807 = vmul.f32 1.0, %v1806
  %v1808 = vrcp.pop %v1803
  %v1809 = vmul.f32 1.0, %v1808
  %v1810 = vrcp.pop %v1804
  %v1811 = vmul.f32 1.0, %v1810
  %v1812 = vrcp.pop %v1805
  %v1813 = vmul.f32 1.0, %v1812
  %v1814 = vtanh.pop %v1784
  %v1815 = vtanh.pop %v1785
  %v1816 = vtanh.pop %v1788
  %v1817 = vtanh.pop %v1789
  %v1818 = vmul.f32 %v1807, %v1661
  %v1819 = vmul.f32 %v1809, %v1662
  %v1820 = vmul.f32 %v1811, %v1663
  %v1821 = vmul.f32 %v1813, %v1664
  %1826 = vrot.lane.b32.xlu0 %v1814, 64
  %v1827 = vpop.permute.xlu0 %1826
  %1828 = vrot.lane.b32.xlu0 %v1815, 64
  %v1829 = vpop.permute.xlu0 %1828
  %1830 = vrot.lane.b32.xlu0 %v1816, 64
  %v1831 = vpop.permute.xlu0 %1830
  %1832 = vrot.lane.b32.xlu0 %v1817, 64
  %v1833 = vpop.permute.xlu0 %1832
  %v1838 = vmul.f32 %v1807, %v1827
  %v1839 = vmul.f32 %v1809, %v1829
  %v1840 = vmul.f32 %v1811, %v1831
  %v1841 = vmul.f32 %v1813, %v1833
  %1846 = vrot.lane.b32.xlu0 %v1838, 32
  %v1847 = vpop.permute.xlu0 %1846
  %1848 = vrot.lane.b32.xlu0 %v1839, 32
  %v1849 = vpop.permute.xlu0 %1848
  %1850 = vrot.lane.b32.xlu0 %v1840, 32
  %v1851 = vpop.permute.xlu0 %1850
  %1852 = vrot.lane.b32.xlu0 %v1841, 32
  %v1853 = vpop.permute.xlu0 %1852
  %v1858 = vadd.f32 %v1818, %v1847
  %v1859 = vadd.f32 %v1819, %v1849
  %v1860 = vadd.f32 %v1820, %v1851
  %v1861 = vadd.f32 %v1821, %v1853
  %v1862 = vtanh.pop %v1858
  %v1863 = vtanh.pop %v1859
  %v1864 = vtanh.pop %v1860
  %v1865 = vtanh.pop %v1861
  %1870 = vrot.lane.b32.xlu0 %v1862, 64
  %v1871 = vpop.permute.xlu0 %1870
  %1872 = vrot.lane.b32.xlu0 %v1863, 64
  %v1873 = vpop.permute.xlu0 %1872
  %1874 = vrot.lane.b32.xlu0 %v1864, 64
  %v1875 = vpop.permute.xlu0 %1874
  %1876 = vrot.lane.b32.xlu0 %v1865, 64
  %v1877 = vpop.permute.xlu0 %1876
  %v1882 = vmul.f32 %v1807, %v1871
  %v1883 = vmul.f32 %v1809, %v1873
  %v1884 = vmul.f32 %v1811, %v1875
  %v1885 = vmul.f32 %v1813, %v1877
  %v1886 = vpack.c.bf16 %v1883, %v1882
  %1888 = vrot.lane.b32.xlu0 %v1886, 32
  %v1889 = vpop.permute.xlu0 %1888
  %1891 = vst.msk [vmem:[%s492] sm:$0xff] %vm125, %v1889
  %v1892 = vpack.c.bf16 %v1885, %v1884
  %1894 = vrot.lane.b32.xlu0 %v1892, 64
  %v1895 = vpop.permute.xlu0 %1894
  %1897 = vst.msk [vmem:[#allocation3] sm:$0xff] %vm493, %v1895
  %v1898 = vld [vmem:[#allocation3] sm:$0xff]
  %v1899 = vld [vmem:[#allocation3 + $0x8] sm:$0xff]
  %v1900 = vld [vmem:[#allocation3 + $0x10] sm:$0xff]
  %v1901 = vld [vmem:[#allocation3 + $0x18] sm:$0xff]
  %v1902 = vld [vmem:[#allocation3 + $0x20] sm:$0xff]
  %v1903 = vld [vmem:[#allocation3 + $0x28] sm:$0xff]
  %v1904 = vld [vmem:[#allocation3 + $0x30] sm:$0xff]
  %v1905 = vld [vmem:[#allocation3 + $0x38] sm:$0xff]
  %v1906 = vld [vmem:[%s4] sm:$0xff]
  %v1907 = vld [vmem:[%s4 + $0x8] sm:$0xff]
  %v1908 = vld [vmem:[%s4 + $0x10] sm:$0xff]
  %v1909 = vld [vmem:[%s4 + $0x18] sm:$0xff]
  %v1910 = vld [vmem:[%s4 + $0x20] sm:$0xff]
  %v1911 = vld [vmem:[%s4 + $0x28] sm:$0xff]
  %v1912 = vld [vmem:[%s4 + $0x30] sm:$0xff]
  %v1913 = vld [vmem:[%s4 + $0x38] sm:$0xff]
  %v1914 = vld [vmem:[%s6] sm:$0x3]
  %v1916 = vlaneseq
  %v1917 = vshrl.u32 %v1916, 7
  %v1918 = vsub.s32 0, %v1917
  %v1919 = vrot.slane %v1914, %v1918
  %v1920 = vlaneseq
  %v1921 = vshrl.u32 %v1920, 7
  %v1922 = vsub.s32 1, %v1921
  %v1923 = vrot.slane %v1914, %v1922
  %v1934 = vunpack.c.l.b16 %v1906
  %v1935 = vunpack.c.h.b16 %v1906
  %v1936 = vunpack.c.l.b16 %v1907
  %v1937 = vunpack.c.h.b16 %v1907
  %v1938 = vunpack.c.l.b16 %v1908
  %v1939 = vunpack.c.h.b16 %v1908
  %v1940 = vunpack.c.l.b16 %v1909
  %v1941 = vunpack.c.h.b16 %v1909
  %v1942 = vunpack.c.l.b16 %v1910
  %v1943 = vunpack.c.h.b16 %v1910
  %v1944 = vunpack.c.l.b16 %v1911
  %v1945 = vunpack.c.h.b16 %v1911
  %v1946 = vunpack.c.l.b16 %v1912
  %v1947 = vunpack.c.h.b16 %v1912
  %v1948 = vunpack.c.l.b16 %v1913
  %v1949 = vunpack.c.h.b16 %v1913
  %v1950 = vpack.c.b16 %v1936, %v1934
  %v1951 = vpack.c.b16 %v1937, %v1935
  %v1952 = vpack.c.b16 %v1940, %v1938
  %v1953 = vpack.c.b16 %v1941, %v1939
  %v1954 = vpack.c.b16 %v1944, %v1942
  %v1955 = vpack.c.b16 %v1945, %v1943
  %v1956 = vpack.c.b16 %v1948, %v1946
  %v1957 = vpack.c.b16 %v1949, %v1947
  %vm1966 = vcmask 523264
  %v1968 = vsel %vm1966, %v1898, 0
  %v1971 = vsel %vm1966, %v1899, 0
  %v1974 = vsel %vm1966, %v1900, 0
  %v1977 = vsel %vm1966, %v1901, 0
  %v1980 = vsel %vm1966, %v1902, 0
  %v1983 = vsel %vm1966, %v1903, 0
  %v1986 = vsel %vm1966, %v1904, 0
  %v1989 = vsel %vm1966, %v1905, 0
  %1991 = vmatprep.subr.bf16.mxu0 %v1951
  %1992 = vmatpush1.bf16.msra.mxu0 %v1950
  %1993 = vmatprep.subr.bf16.mxu0 %v1953
  %1994 = vmatpush1.bf16.msra.mxu0 %v1952
  %1995 = vmatprep.subr.bf16.mxu0 %v1955
  %1996 = vmatpush1.bf16.msra.mxu0 %v1954
  %1997 = vmatprep.subr.bf16.mxu0 %v1957
  %1998 = vmatpush1.bf16.msra.mxu0 %v1956
  %1999 = vmatprep.subr.bf16.mxu0 0
  %2000 = vmatpush1.bf16.msra.mxu0 0
  %2001 = vmatprep.subr.bf16.mxu0 0
  %2002 = vmatpush1.bf16.msra.mxu0 0
  %2003 = vmatprep.subr.bf16.mxu0 0
  %2004 = vmatpush1.bf16.msra.mxu0 0
  %2005 = vmatprep.subr.bf16.mxu0 0
  %2006 = vmatpush1.bf16.msra.mxu0 0
  %2007 = vmatprep.subr.bf16.mxu0 0
  %2008 = vmatpush1.bf16.msra.mxu0 0
  %2009 = vmatprep.subr.bf16.mxu0 0
  %2010 = vmatpush1.bf16.msra.mxu0 0
  %2011 = vmatprep.subr.bf16.mxu0 0
  %2012 = vmatpush1.bf16.msra.mxu0 0
  %2013 = vmatprep.subr.bf16.mxu0 0
  %2014 = vmatpush1.bf16.msra.mxu0 0
  %2015 = vmatprep.subr.bf16.mxu0 0
  %2016 = vmatpush1.bf16.msra.mxu0 0
  %2017 = vmatprep.subr.bf16.mxu0 0
  %2018 = vmatpush1.bf16.msra.mxu0 0
  %2019 = vmatprep.subr.bf16.mxu0 0
  %2020 = vmatpush1.bf16.msra.mxu0 0
  %2021 = vmatprep.subr.bf16.mxu0 0
  %2022 = vmatpush1.bf16.msra.mxu0 0
  %2023 = vmatprep.mubr.bf16.mxu0 0
  %2024 = vmatmul.mubr.bf16.gmra.mrb[0].mxu0 %v1968
  %v2025 = vpop.f32.mrb[0].mxu0
  %v2026 = vadd.f32 %v1919, %v2025
  %v2027 = vpop.f32.mrb[0].mxu0
  %v2028 = vadd.f32 %v1923, %v2027
  %v2029 = vpop.f32.mrb[0].mxu0
  %v2030 = vadd.f32 %v1919, %v2029
  %v2031 = vpop.f32.mrb[0].mxu0
  %v2032 = vadd.f32 %v1923, %v2031
  %2033 = vmatprep.mubr.bf16.mxu0 0
  %2034 = vmatmul.mubr.bf16.gmra.mrb[0].mxu0 %v1971
  %v2035 = vpop.f32.mrb[0].mxu0
  %v2036 = vadd.f32 %v1919, %v2035
  %v2037 = vpop.f32.mrb[0].mxu0
  %v2038 = vadd.f32 %v1923, %v2037
  %v2039 = vpop.f32.mrb[0].mxu0
  %v2040 = vadd.f32 %v1919, %v2039
  %v2041 = vpop.f32.mrb[0].mxu0
  %v2042 = vadd.f32 %v1923, %v2041
  %2043 = vmatprep.mubr.bf16.mxu0 0
  %2044 = vmatmul.mubr.bf16.gmra.mrb[0].mxu0 %v1974
  %v2045 = vpop.f32.mrb[0].mxu0
  %v2046 = vadd.f32 %v1919, %v2045
  %v2047 = vpop.f32.mrb[0].mxu0
  %v2048 = vadd.f32 %v1923, %v2047
  %v2049 = vpop.f32.mrb[0].mxu0
  %v2050 = vadd.f32 %v1919, %v2049
  %v2051 = vpop.f32.mrb[0].mxu0
  %v2052 = vadd.f32 %v1923, %v2051
  %2053 = vmatprep.mubr.bf16.mxu0 0
  %2054 = vmatmul.mubr.bf16.gmra.mrb[0].mxu0 %v1977
  %v2055 = vpop.f32.mrb[0].mxu0
  %v2056 = vadd.f32 %v1919, %v2055
  %v2057 = vpop.f32.mrb[0].mxu0
  %v2058 = vadd.f32 %v1923, %v2057
  %v2059 = vpop.f32.mrb[0].mxu0
  %v2060 = vadd.f32 %v1919, %v2059
  %v2061 = vpop.f32.mrb[0].mxu0
  %v2062 = vadd.f32 %v1923, %v2061
  %2063 = vmatprep.mubr.bf16.mxu0 0
  %2064 = vmatmul.mubr.bf16.gmra.mrb[0].mxu0 %v1980
  %v2065 = vpop.f32.mrb[0].mxu0
  %v2066 = vadd.f32 %v1919, %v2065
  %v2067 = vpop.f32.mrb[0].mxu0
  %v2068 = vadd.f32 %v1923, %v2067
  %v2069 = vpop.f32.mrb[0].mxu0
  %v2070 = vadd.f32 %v1919, %v2069
  %v2071 = vpop.f32.mrb[0].mxu0
  %v2072 = vadd.f32 %v1923, %v2071
  %2073 = vmatprep.mubr.bf16.mxu0 0
  %2074 = vmatmul.mubr.bf16.gmra.mrb[0].mxu0 %v1983
  %v2075 = vpop.f32.mrb[0].mxu0
  %v2076 = vadd.f32 %v1919, %v2075
  %v2077 = vpop.f32.mrb[0].mxu0
  %v2078 = vadd.f32 %v1923, %v2077
  %v2079 = vpop.f32.mrb[0].mxu0
  %v2080 = vadd.f32 %v1919, %v2079
  %v2081 = vpop.f32.mrb[0].mxu0
  %v2082 = vadd.f32 %v1923, %v2081
  %2083 = vmatprep.mubr.bf16.mxu0 0
  %2084 = vmatmul.mubr.bf16.gmra.mrb[0].mxu0 %v1986
  %v2085 = vpop.f32.mrb[0].mxu0
  %v2086 = vadd.f32 %v1919, %v2085
  %v2087 = vpop.f32.mrb[0].mxu0
  %v2088 = vadd.f32 %v1923, %v2087
  %v2089 = vpop.f32.mrb[0].mxu0
  %v2090 = vadd.f32 %v1919, %v2089
  %v2091 = vpop.f32.mrb[0].mxu0
  %v2092 = vadd.f32 %v1923, %v2091
  %2093 = vmatprep.mubr.bf16.mxu0 0
  %2094 = vmatmul.mubr.bf16.gmra.mrb[0].mxu0 %v1989
  %v2095 = vpop.f32.mrb[0].mxu0
  %v2096 = vadd.f32 %v1919, %v2095
  %v2097 = vpop.f32.mrb[0].mxu0
  %v2098 = vadd.f32 %v1923, %v2097
  %v2099 = vpop.f32.mrb[0].mxu0
  %v2100 = vadd.f32 %v1919, %v2099
  %v2101 = vpop.f32.mrb[0].mxu0
  %v2102 = vadd.f32 %v1923, %v2101
  %2103 = vdwg.mxu0
  %2104 = vst [vmem:[#allocation2] sm:$0xff] %v2026
  %2105 = vst [vmem:[#allocation2 + $0x8] sm:$0xff] %v2028
  %2106 = vst [vmem:[#allocation2 + $0x10] sm:$0xff] %v2030
  %2107 = vst [vmem:[#allocation2 + $0x18] sm:$0xff] %v2032
  %2108 = vst [vmem:[#allocation2 + $0x20] sm:$0xff] %v2036
  %2109 = vst [vmem:[#allocation2 + $0x28] sm:$0xff] %v2038
  %2110 = vst [vmem:[#allocation2 + $0x30] sm:$0xff] %v2040
  %2111 = vst [vmem:[#allocation2 + $0x38] sm:$0xff] %v2042
  %2112 = vst [vmem:[#allocation2 + $0x40] sm:$0xff] %v2046
  %2113 = vst [vmem:[#allocation2 + $0x48] sm:$0xff] %v2048
  %2114 = vst [vmem:[#allocation2 + $0x50] sm:$0xff] %v2050
  %2115 = vst [vmem:[#allocation2 + $0x58] sm:$0xff] %v2052
  %2116 = vst [vmem:[#allocation2 + $0x60] sm:$0xff] %v2056
  %2117 = vst [vmem:[#allocation2 + $0x68] sm:$0xff] %v2058
  %2118 = vst [vmem:[#allocation2 + $0x70] sm:$0xff] %v2060
  %2119 = vst [vmem:[#allocation2 + $0x78] sm:$0xff] %v2062
  %2120 = vst [vmem:[#allocation2 + $0x80] sm:$0xff] %v2066
  %2121 = vst [vmem:[#allocation2 + $0x88] sm:$0xff] %v2068
  %2122 = vst [vmem:[#allocation2 + $0x90] sm:$0xff] %v2070
  %2123 = vst [vmem:[#allocation2 + $0x98] sm:$0xff] %v2072
  %2124 = vst [vmem:[#allocation2 + $0xa0] sm:$0xff] %v2076
  %2125 = vst [vmem:[#allocation2 + $0xa8] sm:$0xff] %v2078
  %2126 = vst [vmem:[#allocation2 + $0xb0] sm:$0xff] %v2080
  %2127 = vst [vmem:[#allocation2 + $0xb8] sm:$0xff] %v2082
  %2128 = vst [vmem:[#allocation2 + $0xc0] sm:$0xff] %v2086
  %2129 = vst [vmem:[#allocation2 + $0xc8] sm:$0xff] %v2088
  %2130 = vst [vmem:[#allocation2 + $0xd0] sm:$0xff] %v2090
  %2131 = vst [vmem:[#allocation2 + $0xd8] sm:$0xff] %v2092
  %2132 = vst [vmem:[#allocation2 + $0xe0] sm:$0xff] %v2096
  %2133 = vst [vmem:[#allocation2 + $0xe8] sm:$0xff] %v2098
  %2134 = vst [vmem:[#allocation2 + $0xf0] sm:$0xff] %v2100
  %2135 = vst [vmem:[#allocation2 + $0xf8] sm:$0xff] %v2102
  %v2136 = vld [vmem:[%s5] sm:$0xff]
  %v2137 = vld [vmem:[%s5 + $0x8] sm:$0xff]
  %v2138 = vld [vmem:[%s5 + $0x10] sm:$0xff]
  %v2139 = vld [vmem:[%s5 + $0x18] sm:$0xff]
  %v2144 = vunpack.c.l.b16 %v2136
  %v2145 = vunpack.c.h.b16 %v2136
  %v2146 = vunpack.c.l.b16 %v2137
  %v2147 = vunpack.c.h.b16 %v2137
  %v2148 = vunpack.c.l.b16 %v2138
  %v2149 = vunpack.c.h.b16 %v2138
  %v2150 = vunpack.c.l.b16 %v2139
  %v2151 = vunpack.c.h.b16 %v2139
  %v2152 = vpack.c.b16 %v2146, %v2144
  %v2153 = vpack.c.b16 %v2147, %v2145
  %v2154 = vpack.c.b16 %v2150, %v2148
  %v2155 = vpack.c.b16 %v2151, %v2149
  %2160 = vmatprep.subr.bf16.mxu0 %v2153
  %2161 = vmatpush1.bf16.msra.mxu0 %v2152
  %2162 = vmatprep.subr.bf16.mxu0 %v2155
  %2163 = vmatpush1.bf16.msra.mxu0 %v2154
  %2164 = vmatprep.subr.bf16.mxu0 0
  %2165 = vmatpush1.bf16.msra.mxu0 0
  %2166 = vmatprep.subr.bf16.mxu0 0
  %2167 = vmatpush1.bf16.msra.mxu0 0
  %2168 = vmatprep.subr.bf16.mxu0 0
  %2169 = vmatpush1.bf16.msra.mxu0 0
  %2170 = vmatprep.subr.bf16.mxu0 0
  %2171 = vmatpush1.bf16.msra.mxu0 0
  %2172 = vmatprep.subr.bf16.mxu0 0
  %2173 = vmatpush1.bf16.msra.mxu0 0
  %2174 = vmatprep.subr.bf16.mxu0 0
  %2175 = vmatpush1.bf16.msra.mxu0 0
  %2176 = vmatprep.subr.bf16.mxu0 0
  %2177 = vmatpush1.bf16.msra.mxu0 0
  %2178 = vmatprep.subr.bf16.mxu0 0
  %2179 = vmatpush1.bf16.msra.mxu0 0
  %2180 = vmatprep.subr.bf16.mxu0 0
  %2181 = vmatpush1.bf16.msra.mxu0 0
  %2182 = vmatprep.subr.bf16.mxu0 0
  %2183 = vmatpush1.bf16.msra.mxu0 0
  %2184 = vmatprep.subr.bf16.mxu0 0
  %2185 = vmatpush1.bf16.msra.mxu0 0
  %2186 = vmatprep.subr.bf16.mxu0 0
  %2187 = vmatpush1.bf16.msra.mxu0 0
  %2188 = vmatprep.subr.bf16.mxu0 0
  %2189 = vmatpush1.bf16.msra.mxu0 0
  %2190 = vmatprep.subr.bf16.mxu0 0
  %2191 = vmatpush1.bf16.msra.mxu0 0
  %2192 = vmatprep.mubr.bf16.mxu0 0
  %2193 = vmatmul.mubr.bf16.gmra.mrb[0].mxu0 %v320
  %v2194 = vpop.f32.mrb[0].mxu0
  %v2195 = vadd.f32 0.0, %v2194
  %v2196 = vpop.f32.mrb[0].mxu0
  %v2197 = vpop.f32.mrb[0].mxu0
  %v2198 = vadd.f32 0.0, %v2197
  %v2199 = vpop.f32.mrb[0].mxu0
  %2200 = vmatprep.mubr.bf16.mxu0 0
  %2201 = vmatmul.mubr.bf16.gmra.mrb[0].mxu0 %v320
  %v2202 = vpop.f32.mrb[0].mxu0
  %v2203 = vpop.f32.mrb[0].mxu0
  %v2204 = vadd.f32 0.0, %v2203
  %v2205 = vpop.f32.mrb[0].mxu0
  %v2206 = vpop.f32.mrb[0].mxu0
  %v2207 = vadd.f32 0.0, %v2206
  %2208 = vdwg.mxu0
  %v2209 = vld [vmem:[%s373] sm:$0xff]
  %v2210 = vld [vmem:[%s373 + $0x10] sm:$0xff]
  %v2211 = vadd.f32 %v2209, %v2195
  %v2212 = vadd.f32 %v2210, %v2198
  %v2213 = vld [vmem:[%s380 + $0x8] sm:$0xff]
  %v2214 = vld [vmem:[%s380 + $0x18] sm:$0xff]
  %v2215 = vadd.f32 %v2213, %v2204
  %v2216 = vadd.f32 %v2214, %v2207
  %v2217 = vxor.u32 %v2211, 2147483648
  %v2218 = vxor.u32 %v2212, 2147483648
  %v2219 = vxor.u32 %v2215, 2147483648
  %v2220 = vxor.u32 %v2216, 2147483648
  %v2221 = vmul.f32 %v2217, 1.442695
  %v2222 = vpow.pop %v2221
  %v2223 = vmul.f32 %v2218, 1.442695
  %v2224 = vpow.pop %v2223
  %v2225 = vmul.f32 %v2219, 1.442695
  %v2226 = vpow.pop %v2225
  %v2227 = vmul.f32 %v2220, 1.442695
  %v2228 = vpow.pop %v2227
  %v2229 = vadd.f32 %v2222, 1.0
  %v2230 = vadd.f32 %v2224, 1.0
  %v2231 = vadd.f32 %v2226, 1.0
  %v2232 = vadd.f32 %v2228, 1.0
  %v2233 = vrcp.pop %v2229
  %v2234 = vmul.f32 1.0, %v2233
  %v2235 = vrcp.pop %v2230
  %v2236 = vmul.f32 1.0, %v2235
  %v2237 = vrcp.pop %v2231
  %v2238 = vmul.f32 1.0, %v2237
  %v2239 = vrcp.pop %v2232
  %v2240 = vmul.f32 1.0, %v2239
  %v2241 = vtanh.pop %v2211
  %v2242 = vtanh.pop %v2212
  %v2243 = vtanh.pop %v2215
  %v2244 = vtanh.pop %v2216
  %v2245 = vmul.f32 %v2234, 0.0
  %v2246 = vmul.f32 %v2236, 0.0
  %v2247 = vmul.f32 %v2238, 0.0
  %v2248 = vmul.f32 %v2240, 0.0
  %2253 = vrot.lane.b32.xlu0 %v2241, 64
  %v2254 = vpop.permute.xlu0 %2253
  %2255 = vrot.lane.b32.xlu0 %v2242, 64
  %v2256 = vpop.permute.xlu0 %2255
  %2257 = vrot.lane.b32.xlu0 %v2243, 64
  %v2258 = vpop.permute.xlu0 %2257
  %2259 = vrot.lane.b32.xlu0 %v2244, 64
  %v2260 = vpop.permute.xlu0 %2259
  %v2265 = vmul.f32 %v2234, %v2254
  %v2266 = vmul.f32 %v2236, %v2256
  %v2267 = vmul.f32 %v2238, %v2258
  %v2268 = vmul.f32 %v2240, %v2260
  %2273 = vrot.lane.b32.xlu0 %v2265, 32
  %v2274 = vpop.permute.xlu0 %2273
  %2275 = vrot.lane.b32.xlu0 %v2266, 32
  %v2276 = vpop.permute.xlu0 %2275
  %2277 = vrot.lane.b32.xlu0 %v2267, 32
  %v2278 = vpop.permute.xlu0 %2277
  %2279 = vrot.lane.b32.xlu0 %v2268, 32
  %v2280 = vpop.permute.xlu0 %2279
  %v2285 = vadd.f32 %v2245, %v2274
  %v2286 = vadd.f32 %v2246, %v2276
  %v2287 = vadd.f32 %v2247, %v2278
  %v2288 = vadd.f32 %v2248, %v2280
  %v2289 = vtanh.pop %v2285
  %v2290 = vtanh.pop %v2286
  %v2291 = vtanh.pop %v2287
  %v2292 = vtanh.pop %v2288
  %2297 = vrot.lane.b32.xlu0 %v2289, 64
  %v2298 = vpop.permute.xlu0 %2297
  %2299 = vrot.lane.b32.xlu0 %v2290, 64
  %v2300 = vpop.permute.xlu0 %2299
  %2301 = vrot.lane.b32.xlu0 %v2291, 64
  %v2302 = vpop.permute.xlu0 %2301
  %2303 = vrot.lane.b32.xlu0 %v2292, 64
  %v2304 = vpop.permute.xlu0 %2303
  %v2309 = vmul.f32 %v2234, %v2298
  %v2310 = vmul.f32 %v2236, %v2300
  %v2311 = vmul.f32 %v2238, %v2302
  %v2312 = vmul.f32 %v2240, %v2304
  %v2313 = vpack.c.bf16 %v2310, %v2309
  %v2314 = vpack.c.bf16 %v2312, %v2311
  %2317 = vrot.lane.b32.xlu0 %v2313, 32
  %v2318 = vpop.permute.xlu0 %2317
  %2319 = vrot.lane.b32.xlu0 %v2314, 32
  %v2320 = vpop.permute.xlu0 %2319
  %v2322 = vsel %vm125, %v2318, 0
  %v2325 = vsel %vm125, %v2320, 0
  %2327 = vmatprep.subr.bf16.mxu0 %v2153
  %2328 = vmatpush1.bf16.msra.mxu0 %v2152
  %2329 = vmatprep.subr.bf16.mxu0 %v2155
  %2330 = vmatpush1.bf16.msra.mxu0 %v2154
  %2331 = vmatprep.subr.bf16.mxu0 0
  %2332 = vmatpush1.bf16.msra.mxu0 0
  %2333 = vmatprep.subr.bf16.mxu0 0
  %2334 = vmatpush1.bf16.msra.mxu0 0
  %2335 = vmatprep.subr.bf16.mxu0 0
  %2336 = vmatpush1.bf16.msra.mxu0 0
  %2337 = vmatprep.subr.bf16.mxu0 0
  %2338 = vmatpush1.bf16.msra.mxu0 0
  %2339 = vmatprep.subr.bf16.mxu0 0
  %2340 = vmatpush1.bf16.msra.mxu0 0
  %2341 = vmatprep.subr.bf16.mxu0 0
  %2342 = vmatpush1.bf16.msra.mxu0 0
  %2343 = vmatprep.subr.bf16.mxu0 0
  %2344 = vmatpush1.bf16.msra.mxu0 0
  %2345 = vmatprep.subr.bf16.mxu0 0
  %2346 = vmatpush1.bf16.msra.mxu0 0
  %2347 = vmatprep.subr.bf16.mxu0 0
  %2348 = vmatpush1.bf16.msra.mxu0 0
  %2349 = vmatprep.subr.bf16.mxu0 0
  %2350 = vmatpush1.bf16.msra.mxu0 0
  %2351 = vmatprep.subr.bf16.mxu0 0
  %2352 = vmatpush1.bf16.msra.mxu0 0
  %2353 = vmatprep.subr.bf16.mxu0 0
  %2354 = vmatpush1.bf16.msra.mxu0 0
  %2355 = vmatprep.subr.bf16.mxu0 0
  %2356 = vmatpush1.bf16.msra.mxu0 0
  %2357 = vmatprep.subr.bf16.mxu0 0
  %2358 = vmatpush1.bf16.msra.mxu0 0
  %2359 = vmatprep.mubr.bf16.mxu0 0
  %2360 = vmatmul.mubr.bf16.gmra.mrb[0].mxu0 %v2322
  %v2361 = vpop.f32.mrb[0].mxu0
  %v2362 = vadd.f32 0.0, %v2361
  %v2363 = vpop.f32.mrb[0].mxu0
  %v2364 = vpop.f32.mrb[0].mxu0
  %v2365 = vadd.f32 0.0, %v2364
  %v2366 = vpop.f32.mrb[0].mxu0
  %2367 = vmatprep.mubr.bf16.mxu0 0
  %2368 = vmatmul.mubr.bf16.gmra.mrb[0].mxu0 %v2325
  %v2369 = vpop.f32.mrb[0].mxu0
  %v2370 = vpop.f32.mrb[0].mxu0
  %v2371 = vadd.f32 0.0, %v2370
  %v2372 = vpop.f32.mrb[0].mxu0
  %v2373 = vpop.f32.mrb[0].mxu0
  %v2374 = vadd.f32 0.0, %v2373
  %2375 = vdwg.mxu0
  %v2376 = vld [vmem:[%s578] sm:$0xff]
  %v2377 = vld [vmem:[%s578 + $0x10] sm:$0xff]
  %v2378 = vadd.f32 %v2376, %v2362
  %v2379 = vadd.f32 %v2377, %v2365
  %v2380 = vld [vmem:[%s585 + $0x8] sm:$0xff]
  %v2381 = vld [vmem:[%s585 + $0x18] sm:$0xff]
  %v2382 = vadd.f32 %v2380, %v2371
  %v2383 = vadd.f32 %v2381, %v2374
  %v2384 = vxor.u32 %v2378, 2147483648
  %v2385 = vxor.u32 %v2379, 2147483648
  %v2386 = vxor.u32 %v2382, 2147483648
  %v2387 = vxor.u32 %v2383, 2147483648
  %v2388 = vmul.f32 %v2384, 1.442695
  %v2389 = vpow.pop %v2388
  %v2390 = vmul.f32 %v2385, 1.442695
  %v2391 = vpow.pop %v2390
  %v2392 = vmul.f32 %v2386, 1.442695
  %v2393 = vpow.pop %v2392
  %v2394 = vmul.f32 %v2387, 1.442695
  %v2395 = vpow.pop %v2394
  %v2396 = vadd.f32 %v2389, 1.0
  %v2397 = vadd.f32 %v2391, 1.0
  %v2398 = vadd.f32 %v2393, 1.0
  %v2399 = vadd.f32 %v2395, 1.0
  %v2400 = vrcp.pop %v2396
  %v2401 = vmul.f32 1.0, %v2400
  %v2402 = vrcp.pop %v2397
  %v2403 = vmul.f32 1.0, %v2402
  %v2404 = vrcp.pop %v2398
  %v2405 = vmul.f32 1.0, %v2404
  %v2406 = vrcp.pop %v2399
  %v2407 = vmul.f32 1.0, %v2406
  %v2408 = vtanh.pop %v2378
  %v2409 = vtanh.pop %v2379
  %v2410 = vtanh.pop %v2382
  %v2411 = vtanh.pop %v2383
  %v2412 = vmul.f32 %v2401, %v2285
  %v2413 = vmul.f32 %v2403, %v2286
  %v2414 = vmul.f32 %v2405, %v2287
  %v2415 = vmul.f32 %v2407, %v2288
  %2420 = vrot.lane.b32.xlu0 %v2408, 64
  %v2421 = vpop.permute.xlu0 %2420
  %2422 = vrot.lane.b32.xlu0 %v2409, 64
  %v2423 = vpop.permute.xlu0 %2422
  %2424 = vrot.lane.b32.xlu0 %v2410, 64
  %v2425 = vpop.permute.xlu0 %2424
  %2426 = vrot.lane.b32.xlu0 %v2411, 64
  %v2427 = vpop.permute.xlu0 %2426
  %v2432 = vmul.f32 %v2401, %v2421
  %v2433 = vmul.f32 %v2403, %v2423
  %v2434 = vmul.f32 %v2405, %v2425
  %v2435 = vmul.f32 %v2407, %v2427
  %2440 = vrot.lane.b32.xlu0 %v2432, 32
  %v2441 = vpop.permute.xlu0 %2440
  %2442 = vrot.lane.b32.xlu0 %v2433, 32
  %v2443 = vpop.permute.xlu0 %2442
  %2444 = vrot.lane.b32.xlu0 %v2434, 32
  %v2445 = vpop.permute.xlu0 %2444
  %2446 = vrot.lane.b32.xlu0 %v2435, 32
  %v2447 = vpop.permute.xlu0 %2446
  %v2452 = vadd.f32 %v2412, %v2441
  %v2453 = vadd.f32 %v2413, %v2443
  %v2454 = vadd.f32 %v2414, %v2445
  %v2455 = vadd.f32 %v2415, %v2447
  %v2456 = vtanh.pop %v2452
  %v2457 = vtanh.pop %v2453
  %v2458 = vtanh.pop %v2454
  %v2459 = vtanh.pop %v2455
  %2464 = vrot.lane.b32.xlu0 %v2456, 64
  %v2465 = vpop.permute.xlu0 %2464
  %2466 = vrot.lane.b32.xlu0 %v2457, 64
  %v2467 = vpop.permute.xlu0 %2466
  %2468 = vrot.lane.b32.xlu0 %v2458, 64
  %v2469 = vpop.permute.xlu0 %2468
  %2470 = vrot.lane.b32.xlu0 %v2459, 64
  %v2471 = vpop.permute.xlu0 %2470
  %v2476 = vmul.f32 %v2401, %v2465
  %v2477 = vmul.f32 %v2403, %v2467
  %v2478 = vmul.f32 %v2405, %v2469
  %v2479 = vmul.f32 %v2407, %v2471
  %v2480 = vpack.c.bf16 %v2477, %v2476
  %v2481 = vpack.c.bf16 %v2479, %v2478
  %2484 = vrot.lane.b32.xlu0 %v2480, 32
  %v2485 = vpop.permute.xlu0 %2484
  %2486 = vrot.lane.b32.xlu0 %v2481, 32
  %v2487 = vpop.permute.xlu0 %2486
  %v2489 = vsel %vm125, %v2485, 0
  %v2492 = vsel %vm125, %v2487, 0
  %2494 = vmatprep.subr.bf16.mxu0 %v2153
  %2495 = vmatpush1.bf16.msra.mxu0 %v2152
  %2496 = vmatprep.subr.bf16.mxu0 %v2155
  %2497 = vmatpush1.bf16.msra.mxu0 %v2154
  %2498 = vmatprep.subr.bf16.mxu0 0
  %2499 = vmatpush1.bf16.msra.mxu0 0
  %2500 = vmatprep.subr.bf16.mxu0 0
  %2501 = vmatpush1.bf16.msra.mxu0 0
  %2502 = vmatprep.subr.bf16.mxu0 0
  %2503 = vmatpush1.bf16.msra.mxu0 0
  %2504 = vmatprep.subr.bf16.mxu0 0
  %2505 = vmatpush1.bf16.msra.mxu0 0
  %2506 = vmatprep.subr.bf16.mxu0 0
  %2507 = vmatpush1.bf16.msra.mxu0 0
  %2508 = vmatprep.subr.bf16.mxu0 0
  %2509 = vmatpush1.bf16.msra.mxu0 0
  %2510 = vmatprep.subr.bf16.mxu0 0
  %2511 = vmatpush1.bf16.msra.mxu0 0
  %2512 = vmatprep.subr.bf16.mxu0 0
  %2513 = vmatpush1.bf16.msra.mxu0 0
  %2514 = vmatprep.subr.bf16.mxu0 0
  %2515 = vmatpush1.bf16.msra.mxu0 0
  %2516 = vmatprep.subr.bf16.mxu0 0
  %2517 = vmatpush1.bf16.msra.mxu0 0
  %2518 = vmatprep.subr.bf16.mxu0 0
  %2519 = vmatpush1.bf16.msra.mxu0 0
  %2520 = vmatprep.subr.bf16.mxu0 0
  %2521 = vmatpush1.bf16.msra.mxu0 0
  %2522 = vmatprep.subr.bf16.mxu0 0
  %2523 = vmatpush1.bf16.msra.mxu0 0
  %2524 = vmatprep.subr.bf16.mxu0 0
  %2525 = vmatpush1.bf16.msra.mxu0 0
  %2526 = vmatprep.mubr.bf16.mxu0 0
  %2527 = vmatmul.mubr.bf16.gmra.mrb[0].mxu0 %v2489
  %v2528 = vpop.f32.mrb[0].mxu0
  %v2529 = vadd.f32 0.0, %v2528
  %v2530 = vpop.f32.mrb[0].mxu0
  %v2531 = vpop.f32.mrb[0].mxu0
  %v2532 = vadd.f32 0.0, %v2531
  %v2533 = vpop.f32.mrb[0].mxu0
  %2534 = vmatprep.mubr.bf16.mxu0 0
  %2535 = vmatmul.mubr.bf16.gmra.mrb[0].mxu0 %v2492
  %v2536 = vpop.f32.mrb[0].mxu0
  %v2537 = vpop.f32.mrb[0].mxu0
  %v2538 = vadd.f32 0.0, %v2537
  %v2539 = vpop.f32.mrb[0].mxu0
  %v2540 = vpop.f32.mrb[0].mxu0
  %v2541 = vadd.f32 0.0, %v2540
  %2542 = vdwg.mxu0
  %v2543 = vld [vmem:[%s783] sm:$0xff]
  %v2544 = vld [vmem:[%s783 + $0x10] sm:$0xff]
  %v2545 = vadd.f32 %v2543, %v2529
  %v2546 = vadd.f32 %v2544, %v2532
  %v2547 = vld [vmem:[%s790 + $0x8] sm:$0xff]
  %v2548 = vld [vmem:[%s790 + $0x18] sm:$0xff]
  %v2549 = vadd.f32 %v2547, %v2538
  %v2550 = vadd.f32 %v2548, %v2541
  %v2551 = vxor.u32 %v2545, 2147483648
  %v2552 = vxor.u32 %v2546, 2147483648
  %v2553 = vxor.u32 %v2549, 2147483648
  %v2554 = vxor.u32 %v2550, 2147483648
  %v2555 = vmul.f32 %v2551, 1.442695
  %v2556 = vpow.pop %v2555
  %v2557 = vmul.f32 %v2552, 1.442695
  %v2558 = vpow.pop %v2557
  %v2559 = vmul.f32 %v2553, 1.442695
  %v2560 = vpow.pop %v2559
  %v2561 = vmul.f32 %v2554, 1.442695
  %v2562 = vpow.pop %v2561
  %v2563 = vadd.f32 %v2556, 1.0
  %v2564 = vadd.f32 %v2558, 1.0
  %v2565 = vadd.f32 %v2560, 1.0
  %v2566 = vadd.f32 %v2562, 1.0
  %v2567 = vrcp.pop %v2563
  %v2568 = vmul.f32 1.0, %v2567
  %v2569 = vrcp.pop %v2564
  %v2570 = vmul.f32 1.0, %v2569
  %v2571 = vrcp.pop %v2565
  %v2572 = vmul.f32 1.0, %v2571
  %v2573 = vrcp.pop %v2566
  %v2574 = vmul.f32 1.0, %v2573
  %v2575 = vtanh.pop %v2545
  %v2576 = vtanh.pop %v2546
  %v2577 = vtanh.pop %v2549
  %v2578 = vtanh.pop %v2550
  %v2579 = vmul.f32 %v2568, %v2452
  %v2580 = vmul.f32 %v2570, %v2453
  %v2581 = vmul.f32 %v2572, %v2454
  %v2582 = vmul.f32 %v2574, %v2455
  %2587 = vrot.lane.b32.xlu0 %v2575, 64
  %v2588 = vpop.permute.xlu0 %2587
  %2589 = vrot.lane.b32.xlu0 %v2576, 64
  %v2590 = vpop.permute.xlu0 %2589
  %2591 = vrot.lane.b32.xlu0 %v2577, 64
  %v2592 = vpop.permute.xlu0 %2591
  %2593 = vrot.lane.b32.xlu0 %v2578, 64
  %v2594 = vpop.permute.xlu0 %2593
  %v2599 = vmul.f32 %v2568, %v2588
  %v2600 = vmul.f32 %v2570, %v2590
  %v2601 = vmul.f32 %v2572, %v2592
  %v2602 = vmul.f32 %v2574, %v2594
  %2607 = vrot.lane.b32.xlu0 %v2599, 32
  %v2608 = vpop.permute.xlu0 %2607
  %2609 = vrot.lane.b32.xlu0 %v2600, 32
  %v2610 = vpop.permute.xlu0 %2609
  %2611 = vrot.lane.b32.xlu0 %v2601, 32
  %v2612 = vpop.permute.xlu0 %2611
  %2613 = vrot.lane.b32.xlu0 %v2602, 32
  %v2614 = vpop.permute.xlu0 %2613
  %v2619 = vadd.f32 %v2579, %v2608
  %v2620 = vadd.f32 %v2580, %v2610
  %v2621 = vadd.f32 %v2581, %v2612
  %v2622 = vadd.f32 %v2582, %v2614
  %v2623 = vtanh.pop %v2619
  %v2624 = vtanh.pop %v2620
  %v2625 = vtanh.pop %v2621
  %v2626 = vtanh.pop %v2622
  %2631 = vrot.lane.b32.xlu0 %v2623, 64
  %v2632 = vpop.permute.xlu0 %2631
  %2633 = vrot.lane.b32.xlu0 %v2624, 64
  %v2634 = vpop.permute.xlu0 %2633
  %2635 = vrot.lane.b32.xlu0 %v2625, 64
  %v2636 = vpop.permute.xlu0 %2635
  %2637 = vrot.lane.b32.xlu0 %v2626, 64
  %v2638 = vpop.permute.xlu0 %2637
  %v2643 = vmul.f32 %v2568, %v2632
  %v2644 = vmul.f32 %v2570, %v2634
  %v2645 = vmul.f32 %v2572, %v2636
  %v2646 = vmul.f32 %v2574, %v2638
  %v2647 = vpack.c.bf16 %v2644, %v2643
  %v2648 = vpack.c.bf16 %v2646, %v2645
  %2651 = vrot.lane.b32.xlu0 %v2647, 32
  %v2652 = vpop.permute.xlu0 %2651
  %2653 = vrot.lane.b32.xlu0 %v2648, 32
  %v2654 = vpop.permute.xlu0 %2653
  %v2656 = vsel %vm125, %v2652, 0
  %v2659 = vsel %vm125, %v2654, 0
  %2661 = vmatprep.subr.bf16.mxu0 %v2153
  %2662 = vmatpush1.bf16.msra.mxu0 %v2152
  %2663 = vmatprep.subr.bf16.mxu0 %v2155
  %2664 = vmatpush1.bf16.msra.mxu0 %v2154
  %2665 = vmatprep.subr.bf16.mxu0 0
  %2666 = vmatpush1.bf16.msra.mxu0 0
  %2667 = vmatprep.subr.bf16.mxu0 0
  %2668 = vmatpush1.bf16.msra.mxu0 0
  %2669 = vmatprep.subr.bf16.mxu0 0
  %2670 = vmatpush1.bf16.msra.mxu0 0
  %2671 = vmatprep.subr.bf16.mxu0 0
  %2672 = vmatpush1.bf16.msra.mxu0 0
  %2673 = vmatprep.subr.bf16.mxu0 0
  %2674 = vmatpush1.bf16.msra.mxu0 0
  %2675 = vmatprep.subr.bf16.mxu0 0
  %2676 = vmatpush1.bf16.msra.mxu0 0
  %2677 = vmatprep.subr.bf16.mxu0 0
  %2678 = vmatpush1.bf16.msra.mxu0 0
  %2679 = vmatprep.subr.bf16.mxu0 0
  %2680 = vmatpush1.bf16.msra.mxu0 0
  %2681 = vmatprep.subr.bf16.mxu0 0
  %2682 = vmatpush1.bf16.msra.mxu0 0
  %2683 = vmatprep.subr.bf16.mxu0 0
  %2684 = vmatpush1.bf16.msra.mxu0 0
  %2685 = vmatprep.subr.bf16.mxu0 0
  %2686 = vmatpush1.bf16.msra.mxu0 0
  %2687 = vmatprep.subr.bf16.mxu0 0
  %2688 = vmatpush1.bf16.msra.mxu0 0
  %2689 = vmatprep.subr.bf16.mxu0 0
  %2690 = vmatpush1.bf16.msra.mxu0 0
  %2691 = vmatprep.subr.bf16.mxu0 0
  %2692 = vmatpush1.bf16.msra.mxu0 0
  %2693 = vmatprep.mubr.bf16.mxu0 0
  %2694 = vmatmul.mubr.bf16.gmra.mrb[0].mxu0 %v2656
  %v2695 = vpop.f32.mrb[0].mxu0
  %v2696 = vadd.f32 0.0, %v2695
  %v2697 = vpop.f32.mrb[0].mxu0
  %v2698 = vpop.f32.mrb[0].mxu0
  %v2699 = vadd.f32 0.0, %v2698
  %v2700 = vpop.f32.mrb[0].mxu0
  %2701 = vmatprep.mubr.bf16.mxu0 0
  %2702 = vmatmul.mubr.bf16.gmra.mrb[0].mxu0 %v2659
  %v2703 = vpop.f32.mrb[0].mxu0
  %v2704 = vpop.f32.mrb[0].mxu0
  %v2705 = vadd.f32 0.0, %v2704
  %v2706 = vpop.f32.mrb[0].mxu0
  %v2707 = vpop.f32.mrb[0].mxu0
  %v2708 = vadd.f32 0.0, %v2707
  %2709 = vdwg.mxu0
  %v2710 = vld [vmem:[%s988] sm:$0xff]
  %v2711 = vld [vmem:[%s988 + $0x10] sm:$0xff]
  %v2712 = vadd.f32 %v2710, %v2696
  %v2713 = vadd.f32 %v2711, %v2699
  %v2714 = vld [vmem:[%s995 + $0x8] sm:$0xff]
  %v2715 = vld [vmem:[%s995 + $0x18] sm:$0xff]
  %v2716 = vadd.f32 %v2714, %v2705
  %v2717 = vadd.f32 %v2715, %v2708
  %v2718 = vxor.u32 %v2712, 2147483648
  %v2719 = vxor.u32 %v2713, 2147483648
  %v2720 = vxor.u32 %v2716, 2147483648
  %v2721 = vxor.u32 %v2717, 2147483648
  %v2722 = vmul.f32 %v2718, 1.442695
  %v2723 = vpow.pop %v2722
  %v2724 = vmul.f32 %v2719, 1.442695
  %v2725 = vpow.pop %v2724
  %v2726 = vmul.f32 %v2720, 1.442695
  %v2727 = vpow.pop %v2726
  %v2728 = vmul.f32 %v2721, 1.442695
  %v2729 = vpow.pop %v2728
  %v2730 = vadd.f32 %v2723, 1.0
  %v2731 = vadd.f32 %v2725, 1.0
  %v2732 = vadd.f32 %v2727, 1.0
  %v2733 = vadd.f32 %v2729, 1.0
  %v2734 = vrcp.pop %v2730
  %v2735 = vmul.f32 1.0, %v2734
  %v2736 = vrcp.pop %v2731
  %v2737 = vmul.f32 1.0, %v2736
  %v2738 = vrcp.pop %v2732
  %v2739 = vmul.f32 1.0, %v2738
  %v2740 = vrcp.pop %v2733
  %v2741 = vmul.f32 1.0, %v2740
  %v2742 = vtanh.pop %v2712
  %v2743 = vtanh.pop %v2713
  %v2744 = vtanh.pop %v2716
  %v2745 = vtanh.pop %v2717
  %v2746 = vmul.f32 %v2735, %v2619
  %v2747 = vmul.f32 %v2737, %v2620
  %v2748 = vmul.f32 %v2739, %v2621
  %v2749 = vmul.f32 %v2741, %v2622
  %2754 = vrot.lane.b32.xlu0 %v2742, 64
  %v2755 = vpop.permute.xlu0 %2754
  %2756 = vrot.lane.b32.xlu0 %v2743, 64
  %v2757 = vpop.permute.xlu0 %2756
  %2758 = vrot.lane.b32.xlu0 %v2744, 64
  %v2759 = vpop.permute.xlu0 %2758
  %2760 = vrot.lane.b32.xlu0 %v2745, 64
  %v2761 = vpop.permute.xlu0 %2760
  %v2766 = vmul.f32 %v2735, %v2755
  %v2767 = vmul.f32 %v2737, %v2757
  %v2768 = vmul.f32 %v2739, %v2759
  %v2769 = vmul.f32 %v2741, %v2761
  %2774 = vrot.lane.b32.xlu0 %v2766, 32
  %v2775 = vpop.permute.xlu0 %2774
  %2776 = vrot.lane.b32.xlu0 %v2767, 32
  %v2777 = vpop.permute.xlu0 %2776
  %2778 = vrot.lane.b32.xlu0 %v2768, 32
  %v2779 = vpop.permute.xlu0 %2778
  %2780 = vrot.lane.b32.xlu0 %v2769, 32
  %v2781 = vpop.permute.xlu0 %2780
  %v2786 = vadd.f32 %v2746, %v2775
  %v2787 = vadd.f32 %v2747, %v2777
  %v2788 = vadd.f32 %v2748, %v2779
  %v2789 = vadd.f32 %v2749, %v2781
  %v2790 = vtanh.pop %v2786
  %v2791 = vtanh.pop %v2787
  %v2792 = vtanh.pop %v2788
  %v2793 = vtanh.pop %v2789
  %2798 = vrot.lane.b32.xlu0 %v2790, 64
  %v2799 = vpop.permute.xlu0 %2798
  %2800 = vrot.lane.b32.xlu0 %v2791, 64
  %v2801 = vpop.permute.xlu0 %2800
  %2802 = vrot.lane.b32.xlu0 %v2792, 64
  %v2803 = vpop.permute.xlu0 %2802
  %2804 = vrot.lane.b32.xlu0 %v2793, 64
  %v2805 = vpop.permute.xlu0 %2804
  %v2810 = vmul.f32 %v2735, %v2799
  %v2811 = vmul.f32 %v2737, %v2801
  %v2812 = vmul.f32 %v2739, %v2803
  %v2813 = vmul.f32 %v2741, %v2805
  %v2814 = vpack.c.bf16 %v2811, %v2810
  %v2815 = vpack.c.bf16 %v2813, %v2812
  %2818 = vrot.lane.b32.xlu0 %v2814, 32
  %v2819 = vpop.permute.xlu0 %2818
  %2820 = vrot.lane.b32.xlu0 %v2815, 32
  %v2821 = vpop.permute.xlu0 %2820
  %v2823 = vsel %vm125, %v2819, 0
  %v2826 = vsel %vm125, %v2821, 0
  %2828 = vmatprep.subr.bf16.mxu0 %v2153
  %2829 = vmatpush1.bf16.msra.mxu0 %v2152
  %2830 = vmatprep.subr.bf16.mxu0 %v2155
  %2831 = vmatpush1.bf16.msra.mxu0 %v2154
  %2832 = vmatprep.subr.bf16.mxu0 0
  %2833 = vmatpush1.bf16.msra.mxu0 0
  %2834 = vmatprep.subr.bf16.mxu0 0
  %2835 = vmatpush1.bf16.msra.mxu0 0
  %2836 = vmatprep.subr.bf16.mxu0 0
  %2837 = vmatpush1.bf16.msra.mxu0 0
  %2838 = vmatprep.subr.bf16.mxu0 0
  %2839 = vmatpush1.bf16.msra.mxu0 0
  %2840 = vmatprep.subr.bf16.mxu0 0
  %2841 = vmatpush1.bf16.msra.mxu0 0
  %2842 = vmatprep.subr.bf16.mxu0 0
  %2843 = vmatpush1.bf16.msra.mxu0 0
  %2844 = vmatprep.subr.bf16.mxu0 0
  %2845 = vmatpush1.bf16.msra.mxu0 0
  %2846 = vmatprep.subr.bf16.mxu0 0
  %2847 = vmatpush1.bf16.msra.mxu0 0
  %2848 = vmatprep.subr.bf16.mxu0 0
  %2849 = vmatpush1.bf16.msra.mxu0 0
  %2850 = vmatprep.subr.bf16.mxu0 0
  %2851 = vmatpush1.bf16.msra.mxu0 0
  %2852 = vmatprep.subr.bf16.mxu0 0
  %2853 = vmatpush1.bf16.msra.mxu0 0
  %2854 = vmatprep.subr.bf16.mxu0 0
  %2855 = vmatpush1.bf16.msra.mxu0 0
  %2856 = vmatprep.subr.bf16.mxu0 0
  %2857 = vmatpush1.bf16.msra.mxu0 0
  %2858 = vmatprep.subr.bf16.mxu0 0
  %2859 = vmatpush1.bf16.msra.mxu0 0
  %2860 = vmatprep.mubr.bf16.mxu0 0
  %2861 = vmatmul.mubr.bf16.gmra.mrb[0].mxu0 %v2823
  %v2862 = vpop.f32.mrb[0].mxu0
  %v2863 = vadd.f32 0.0, %v2862
  %v2864 = vpop.f32.mrb[0].mxu0
  %v2865 = vpop.f32.mrb[0].mxu0
  %v2866 = vadd.f32 0.0, %v2865
  %v2867 = vpop.f32.mrb[0].mxu0
  %2868 = vmatprep.mubr.bf16.mxu0 0
  %2869 = vmatmul.mubr.bf16.gmra.mrb[0].mxu0 %v2826
  %v2870 = vpop.f32.mrb[0].mxu0
  %v2871 = vpop.f32.mrb[0].mxu0
  %v2872 = vadd.f32 0.0, %v2871
  %v2873 = vpop.f32.mrb[0].mxu0
  %v2874 = vpop.f32.mrb[0].mxu0
  %v2875 = vadd.f32 0.0, %v2874
  %2876 = vdwg.mxu0
  %v2877 = vld [vmem:[%s995] sm:$0xff]
  %v2878 = vld [vmem:[%s995 + $0x10] sm:$0xff]
  %v2879 = vadd.f32 %v2877, %v2863
  %v2880 = vadd.f32 %v2878, %v2866
  %v2881 = vld [vmem:[%s988 + $0x8] sm:$0xff]
  %v2882 = vld [vmem:[%s988 + $0x18] sm:$0xff]
  %v2883 = vadd.f32 %v2881, %v2872
  %v2884 = vadd.f32 %v2882, %v2875
  %v2885 = vxor.u32 %v2879, 2147483648
  %v2886 = vxor.u32 %v2880, 2147483648
  %v2887 = vxor.u32 %v2883, 2147483648
  %v2888 = vxor.u32 %v2884, 2147483648
  %v2889 = vmul.f32 %v2885, 1.442695
  %v2890 = vpow.pop %v2889
  %v2891 = vmul.f32 %v2886, 1.442695
  %v2892 = vpow.pop %v2891
  %v2893 = vmul.f32 %v2887, 1.442695
  %v2894 = vpow.pop %v2893
  %v2895 = vmul.f32 %v2888, 1.442695
  %v2896 = vpow.pop %v2895
  %v2897 = vadd.f32 %v2890, 1.0
  %v2898 = vadd.f32 %v2892, 1.0
  %v2899 = vadd.f32 %v2894, 1.0
  %v2900 = vadd.f32 %v2896, 1.0
  %v2901 = vrcp.pop %v2897
  %v2902 = vmul.f32 1.0, %v2901
  %v2903 = vrcp.pop %v2898
  %v2904 = vmul.f32 1.0, %v2903
  %v2905 = vrcp.pop %v2899
  %v2906 = vmul.f32 1.0, %v2905
  %v2907 = vrcp.pop %v2900
  %v2908 = vmul.f32 1.0, %v2907
  %v2909 = vtanh.pop %v2879
  %v2910 = vtanh.pop %v2880
  %v2911 = vtanh.pop %v2883
  %v2912 = vtanh.pop %v2884
  %v2913 = vmul.f32 %v2902, %v2786
  %v2914 = vmul.f32 %v2904, %v2787
  %v2915 = vmul.f32 %v2906, %v2788
  %v2916 = vmul.f32 %v2908, %v2789
  %2921 = vrot.lane.b32.xlu0 %v2909, 64
  %v2922 = vpop.permute.xlu0 %2921
  %2923 = vrot.lane.b32.xlu0 %v2910, 64
  %v2924 = vpop.permute.xlu0 %2923
  %2925 = vrot.lane.b32.xlu0 %v2911, 64
  %v2926 = vpop.permute.xlu0 %2925
  %2927 = vrot.lane.b32.xlu0 %v2912, 64
  %v2928 = vpop.permute.xlu0 %2927
  %v2933 = vmul.f32 %v2902, %v2922
  %v2934 = vmul.f32 %v2904, %v2924
  %v2935 = vmul.f32 %v2906, %v2926
  %v2936 = vmul.f32 %v2908, %v2928
  %2941 = vrot.lane.b32.xlu0 %v2933, 32
  %v2942 = vpop.permute.xlu0 %2941
  %2943 = vrot.lane.b32.xlu0 %v2934, 32
  %v2944 = vpop.permute.xlu0 %2943
  %2945 = vrot.lane.b32.xlu0 %v2935, 32
  %v2946 = vpop.permute.xlu0 %2945
  %2947 = vrot.lane.b32.xlu0 %v2936, 32
  %v2948 = vpop.permute.xlu0 %2947
  %v2953 = vadd.f32 %v2913, %v2942
  %v2954 = vadd.f32 %v2914, %v2944
  %v2955 = vadd.f32 %v2915, %v2946
  %v2956 = vadd.f32 %v2916, %v2948
  %v2957 = vtanh.pop %v2953
  %v2958 = vtanh.pop %v2954
  %v2959 = vtanh.pop %v2955
  %v2960 = vtanh.pop %v2956
  %2965 = vrot.lane.b32.xlu0 %v2957, 64
  %v2966 = vpop.permute.xlu0 %2965
  %2967 = vrot.lane.b32.xlu0 %v2958, 64
  %v2968 = vpop.permute.xlu0 %2967
  %2969 = vrot.lane.b32.xlu0 %v2959, 64
  %v2970 = vpop.permute.xlu0 %2969
  %2971 = vrot.lane.b32.xlu0 %v2960, 64
  %v2972 = vpop.permute.xlu0 %2971
  %v2977 = vmul.f32 %v2902, %v2966
  %v2978 = vmul.f32 %v2904, %v2968
  %v2979 = vmul.f32 %v2906, %v2970
  %v2980 = vmul.f32 %v2908, %v2972
  %v2981 = vpack.c.bf16 %v2978, %v2977
  %v2982 = vpack.c.bf16 %v2980, %v2979
  %2985 = vrot.lane.b32.xlu0 %v2981, 32
  %v2986 = vpop.permute.xlu0 %2985
  %2987 = vrot.lane.b32.xlu0 %v2982, 32
  %v2988 = vpop.permute.xlu0 %2987
  %v2990 = vsel %vm125, %v2986, 0
  %v2993 = vsel %vm125, %v2988, 0
  %2995 = vmatprep.subr.bf16.mxu0 %v2153
  %2996 = vmatpush1.bf16.msra.mxu0 %v2152
  %2997 = vmatprep.subr.bf16.mxu0 %v2155
  %2998 = vmatpush1.bf16.msra.mxu0 %v2154
  %2999 = vmatprep.subr.bf16.mxu0 0
  %3000 = vmatpush1.bf16.msra.mxu0 0
  %3001 = vmatprep.subr.bf16.mxu0 0
  %3002 = vmatpush1.bf16.msra.mxu0 0
  %3003 = vmatprep.subr.bf16.mxu0 0
  %3004 = vmatpush1.bf16.msra.mxu0 0
  %3005 = vmatprep.subr.bf16.mxu0 0
  %3006 = vmatpush1.bf16.msra.mxu0 0
  %3007 = vmatprep.subr.bf16.mxu0 0
  %3008 = vmatpush1.bf16.msra.mxu0 0
  %3009 = vmatprep.subr.bf16.mxu0 0
  %3010 = vmatpush1.bf16.msra.mxu0 0
  %3011 = vmatprep.subr.bf16.mxu0 0
  %3012 = vmatpush1.bf16.msra.mxu0 0
  %3013 = vmatprep.subr.bf16.mxu0 0
  %3014 = vmatpush1.bf16.msra.mxu0 0
  %3015 = vmatprep.subr.bf16.mxu0 0
  %3016 = vmatpush1.bf16.msra.mxu0 0
  %3017 = vmatprep.subr.bf16.mxu0 0
  %3018 = vmatpush1.bf16.msra.mxu0 0
  %3019 = vmatprep.subr.bf16.mxu0 0
  %3020 = vmatpush1.bf16.msra.mxu0 0
  %3021 = vmatprep.subr.bf16.mxu0 0
  %3022 = vmatpush1.bf16.msra.mxu0 0
  %3023 = vmatprep.subr.bf16.mxu0 0
  %3024 = vmatpush1.bf16.msra.mxu0 0
  %3025 = vmatprep.subr.bf16.mxu0 0
  %3026 = vmatpush1.bf16.msra.mxu0 0
  %3027 = vmatprep.mubr.bf16.mxu0 0
  %3028 = vmatmul.mubr.bf16.gmra.mrb[0].mxu0 %v2990
  %v3029 = vpop.f32.mrb[0].mxu0
  %v3030 = vadd.f32 0.0, %v3029
  %v3031 = vpop.f32.mrb[0].mxu0
  %v3032 = vpop.f32.mrb[0].mxu0
  %v3033 = vadd.f32 0.0, %v3032
  %v3034 = vpop.f32.mrb[0].mxu0
  %3035 = vmatprep.mubr.bf16.mxu0 0
  %3036 = vmatmul.mubr.bf16.gmra.mrb[0].mxu0 %v2993
  %v3037 = vpop.f32.mrb[0].mxu0
  %v3038 = vpop.f32.mrb[0].mxu0
  %v3039 = vadd.f32 0.0, %v3038
  %v3040 = vpop.f32.mrb[0].mxu0
  %v3041 = vpop.f32.mrb[0].mxu0
  %v3042 = vadd.f32 0.0, %v3041
  %3043 = vdwg.mxu0
  %v3044 = vld [vmem:[%s790] sm:$0xff]
  %v3045 = vld [vmem:[%s790 + $0x10] sm:$0xff]
  %v3046 = vadd.f32 %v3044, %v3030
  %v3047 = vadd.f32 %v3045, %v3033
  %v3048 = vld [vmem:[%s783 + $0x8] sm:$0xff]
  %v3049 = vld [vmem:[%s783 + $0x18] sm:$0xff]
  %v3050 = vadd.f32 %v3048, %v3039
  %v3051 = vadd.f32 %v3049, %v3042
  %v3052 = vxor.u32 %v3046, 2147483648
  %v3053 = vxor.u32 %v3047, 2147483648
  %v3054 = vxor.u32 %v3050, 2147483648
  %v3055 = vxor.u32 %v3051, 2147483648
  %v3056 = vmul.f32 %v3052, 1.442695
  %v3057 = vpow.pop %v3056
  %v3058 = vmul.f32 %v3053, 1.442695
  %v3059 = vpow.pop %v3058
  %v3060 = vmul.f32 %v3054, 1.442695
  %v3061 = vpow.pop %v3060
  %v3062 = vmul.f32 %v3055, 1.442695
  %v3063 = vpow.pop %v3062
  %v3064 = vadd.f32 %v3057, 1.0
  %v3065 = vadd.f32 %v3059, 1.0
  %v3066 = vadd.f32 %v3061, 1.0
  %v3067 = vadd.f32 %v3063, 1.0
  %v3068 = vrcp.pop %v3064
  %v3069 = vmul.f32 1.0, %v3068
  %v3070 = vrcp.pop %v3065
  %v3071 = vmul.f32 1.0, %v3070
  %v3072 = vrcp.pop %v3066
  %v3073 = vmul.f32 1.0, %v3072
  %v3074 = vrcp.pop %v3067
  %v3075 = vmul.f32 1.0, %v3074
  %v3076 = vtanh.pop %v3046
  %v3077 = vtanh.pop %v3047
  %v3078 = vtanh.pop %v3050
  %v3079 = vtanh.pop %v3051
  %v3080 = vmul.f32 %v3069, %v2953
  %v3081 = vmul.f32 %v3071, %v2954
  %v3082 = vmul.f32 %v3073, %v2955
  %v3083 = vmul.f32 %v3075, %v2956
  %3088 = vrot.lane.b32.xlu0 %v3076, 64
  %v3089 = vpop.permute.xlu0 %3088
  %3090 = vrot.lane.b32.xlu0 %v3077, 64
  %v3091 = vpop.permute.xlu0 %3090
  %3092 = vrot.lane.b32.xlu0 %v3078, 64
  %v3093 = vpop.permute.xlu0 %3092
  %3094 = vrot.lane.b32.xlu0 %v3079, 64
  %v3095 = vpop.permute.xlu0 %3094
  %v3100 = vmul.f32 %v3069, %v3089
  %v3101 = vmul.f32 %v3071, %v3091
  %v3102 = vmul.f32 %v3073, %v3093
  %v3103 = vmul.f32 %v3075, %v3095
  %3108 = vrot.lane.b32.xlu0 %v3100, 32
  %v3109 = vpop.permute.xlu0 %3108
  %3110 = vrot.lane.b32.xlu0 %v3101, 32
  %v3111 = vpop.permute.xlu0 %3110
  %3112 = vrot.lane.b32.xlu0 %v3102, 32
  %v3113 = vpop.permute.xlu0 %3112
  %3114 = vrot.lane.b32.xlu0 %v3103, 32
  %v3115 = vpop.permute.xlu0 %3114
  %v3120 = vadd.f32 %v3080, %v3109
  %v3121 = vadd.f32 %v3081, %v3111
  %v3122 = vadd.f32 %v3082, %v3113
  %v3123 = vadd.f32 %v3083, %v3115
  %v3124 = vtanh.pop %v3120
  %v3125 = vtanh.pop %v3121
  %v3126 = vtanh.pop %v3122
  %v3127 = vtanh.pop %v3123
  %3132 = vrot.lane.b32.xlu0 %v3124, 64
  %v3133 = vpop.permute.xlu0 %3132
  %3134 = vrot.lane.b32.xlu0 %v3125, 64
  %v3135 = vpop.permute.xlu0 %3134
  %3136 = vrot.lane.b32.xlu0 %v3126, 64
  %v3137 = vpop.permute.xlu0 %3136
  %3138 = vrot.lane.b32.xlu0 %v3127, 64
  %v3139 = vpop.permute.xlu0 %3138
  %v3144 = vmul.f32 %v3069, %v3133
  %v3145 = vmul.f32 %v3071, %v3135
  %v3146 = vmul.f32 %v3073, %v3137
  %v3147 = vmul.f32 %v3075, %v3139
  %v3148 = vpack.c.bf16 %v3145, %v3144
  %v3149 = vpack.c.bf16 %v3147, %v3146
  %3152 = vrot.lane.b32.xlu0 %v3148, 32
  %v3153 = vpop.permute.xlu0 %3152
  %3154 = vrot.lane.b32.xlu0 %v3149, 32
  %v3155 = vpop.permute.xlu0 %3154
  %v3157 = vsel %vm125, %v3153, 0
  %v3160 = vsel %vm125, %v3155, 0
  %3162 = vmatprep.subr.bf16.mxu0 %v2153
  %3163 = vmatpush1.bf16.msra.mxu0 %v2152
  %3164 = vmatprep.subr.bf16.mxu0 %v2155
  %3165 = vmatpush1.bf16.msra.mxu0 %v2154
  %3166 = vmatprep.subr.bf16.mxu0 0
  %3167 = vmatpush1.bf16.msra.mxu0 0
  %3168 = vmatprep.subr.bf16.mxu0 0
  %3169 = vmatpush1.bf16.msra.mxu0 0
  %3170 = vmatprep.subr.bf16.mxu0 0
  %3171 = vmatpush1.bf16.msra.mxu0 0
  %3172 = vmatprep.subr.bf16.mxu0 0
  %3173 = vmatpush1.bf16.msra.mxu0 0
  %3174 = vmatprep.subr.bf16.mxu0 0
  %3175 = vmatpush1.bf16.msra.mxu0 0
  %3176 = vmatprep.subr.bf16.mxu0 0
  %3177 = vmatpush1.bf16.msra.mxu0 0
  %3178 = vmatprep.subr.bf16.mxu0 0
  %3179 = vmatpush1.bf16.msra.mxu0 0
  %3180 = vmatprep.subr.bf16.mxu0 0
  %3181 = vmatpush1.bf16.msra.mxu0 0
  %3182 = vmatprep.subr.bf16.mxu0 0
  %3183 = vmatpush1.bf16.msra.mxu0 0
  %3184 = vmatprep.subr.bf16.mxu0 0
  %3185 = vmatpush1.bf16.msra.mxu0 0
  %3186 = vmatprep.subr.bf16.mxu0 0
  %3187 = vmatpush1.bf16.msra.mxu0 0
  %3188 = vmatprep.subr.bf16.mxu0 0
  %3189 = vmatpush1.bf16.msra.mxu0 0
  %3190 = vmatprep.subr.bf16.mxu0 0
  %3191 = vmatpush1.bf16.msra.mxu0 0
  %3192 = vmatprep.subr.bf16.mxu0 0
  %3193 = vmatpush1.bf16.msra.mxu0 0
  %3194 = vmatprep.mubr.bf16.mxu0 0
  %3195 = vmatmul.mubr.bf16.gmra.mrb[0].mxu0 %v3157
  %v3196 = vpop.f32.mrb[0].mxu0
  %v3197 = vadd.f32 0.0, %v3196
  %v3198 = vpop.f32.mrb[0].mxu0
  %v3199 = vpop.f32.mrb[0].mxu0
  %v3200 = vadd.f32 0.0, %v3199
  %v3201 = vpop.f32.mrb[0].mxu0
  %3202 = vmatprep.mubr.bf16.mxu0 0
  %3203 = vmatmul.mubr.bf16.gmra.mrb[0].mxu0 %v3160
  %v3204 = vpop.f32.mrb[0].mxu0
  %v3205 = vpop.f32.mrb[0].mxu0
  %v3206 = vadd.f32 0.0, %v3205
  %v3207 = vpop.f32.mrb[0].mxu0
  %v3208 = vpop.f32.mrb[0].mxu0
  %v3209 = vadd.f32 0.0, %v3208
  %3210 = vdwg.mxu0
  %v3211 = vld [vmem:[%s585] sm:$0xff]
  %v3212 = vld [vmem:[%s585 + $0x10] sm:$0xff]
  %v3213 = vadd.f32 %v3211, %v3197
  %v3214 = vadd.f32 %v3212, %v3200
  %v3215 = vld [vmem:[%s578 + $0x8] sm:$0xff]
  %v3216 = vld [vmem:[%s578 + $0x18] sm:$0xff]
  %v3217 = vadd.f32 %v3215, %v3206
  %v3218 = vadd.f32 %v3216, %v3209
  %v3219 = vxor.u32 %v3213, 2147483648
  %v3220 = vxor.u32 %v3214, 2147483648
  %v3221 = vxor.u32 %v3217, 2147483648
  %v3222 = vxor.u32 %v3218, 2147483648
  %v3223 = vmul.f32 %v3219, 1.442695
  %v3224 = vpow.pop %v3223
  %v3225 = vmul.f32 %v3220, 1.442695
  %v3226 = vpow.pop %v3225
  %v3227 = vmul.f32 %v3221, 1.442695
  %v3228 = vpow.pop %v3227
  %v3229 = vmul.f32 %v3222, 1.442695
  %v3230 = vpow.pop %v3229
  %v3231 = vadd.f32 %v3224, 1.0
  %v3232 = vadd.f32 %v3226, 1.0
  %v3233 = vadd.f32 %v3228, 1.0
  %v3234 = vadd.f32 %v3230, 1.0
  %v3235 = vrcp.pop %v3231
  %v3236 = vmul.f32 1.0, %v3235
  %v3237 = vrcp.pop %v3232
  %v3238 = vmul.f32 1.0, %v3237
  %v3239 = vrcp.pop %v3233
  %v3240 = vmul.f32 1.0, %v3239
  %v3241 = vrcp.pop %v3234
  %v3242 = vmul.f32 1.0, %v3241
  %v3243 = vtanh.pop %v3213
  %v3244 = vtanh.pop %v3214
  %v3245 = vtanh.pop %v3217
  %v3246 = vtanh.pop %v3218
  %v3247 = vmul.f32 %v3236, %v3120
  %v3248 = vmul.f32 %v3238, %v3121
  %v3249 = vmul.f32 %v3240, %v3122
  %v3250 = vmul.f32 %v3242, %v3123
  %3255 = vrot.lane.b32.xlu0 %v3243, 64
  %v3256 = vpop.permute.xlu0 %3255
  %3257 = vrot.lane.b32.xlu0 %v3244, 64
  %v3258 = vpop.permute.xlu0 %3257
  %3259 = vrot.lane.b32.xlu0 %v3245, 64
  %v3260 = vpop.permute.xlu0 %3259
  %3261 = vrot.lane.b32.xlu0 %v3246, 64
  %v3262 = vpop.permute.xlu0 %3261
  %v3267 = vmul.f32 %v3236, %v3256
  %v3268 = vmul.f32 %v3238, %v3258
  %v3269 = vmul.f32 %v3240, %v3260
  %v3270 = vmul.f32 %v3242, %v3262
  %3275 = vrot.lane.b32.xlu0 %v3267, 32
  %v3276 = vpop.permute.xlu0 %3275
  %3277 = vrot.lane.b32.xlu0 %v3268, 32
  %v3278 = vpop.permute.xlu0 %3277
  %3279 = vrot.lane.b32.xlu0 %v3269, 32
  %v3280 = vpop.permute.xlu0 %3279
  %3281 = vrot.lane.b32.xlu0 %v3270, 32
  %v3282 = vpop.permute.xlu0 %3281
  %v3287 = vadd.f32 %v3247, %v3276
  %v3288 = vadd.f32 %v3248, %v3278
  %v3289 = vadd.f32 %v3249, %v3280
  %v3290 = vadd.f32 %v3250, %v3282
  %v3291 = vtanh.pop %v3287
  %v3292 = vtanh.pop %v3288
  %v3293 = vtanh.pop %v3289
  %v3294 = vtanh.pop %v3290
  %3299 = vrot.lane.b32.xlu0 %v3291, 64
  %v3300 = vpop.permute.xlu0 %3299
  %3301 = vrot.lane.b32.xlu0 %v3292, 64
  %v3302 = vpop.permute.xlu0 %3301
  %3303 = vrot.lane.b32.xlu0 %v3293, 64
  %v3304 = vpop.permute.xlu0 %3303
  %3305 = vrot.lane.b32.xlu0 %v3294, 64
  %v3306 = vpop.permute.xlu0 %3305
  %v3311 = vmul.f32 %v3236, %v3300
  %v3312 = vmul.f32 %v3238, %v3302
  %v3313 = vmul.f32 %v3240, %v3304
  %v3314 = vmul.f32 %v3242, %v3306
  %v3315 = vpack.c.bf16 %v3312, %v3311
  %v3316 = vpack.c.bf16 %v3314, %v3313
  %3319 = vrot.lane.b32.xlu0 %v3315, 32
  %v3320 = vpop.permute.xlu0 %3319
  %3321 = vrot.lane.b32.xlu0 %v3316, 32
  %v3322 = vpop.permute.xlu0 %3321
  %v3324 = vsel %vm125, %v3320, 0
  %v3327 = vsel %vm125, %v3322, 0
  %3329 = vmatprep.subr.bf16.mxu0 %v2153
  %3330 = vmatpush1.bf16.msra.mxu0 %v2152
  %3331 = vmatprep.subr.bf16.mxu0 %v2155
  %3332 = vmatpush1.bf16.msra.mxu0 %v2154
  %3333 = vmatprep.subr.bf16.mxu0 0
  %3334 = vmatpush1.bf16.msra.mxu0 0
  %3335 = vmatprep.subr.bf16.mxu0 0
  %3336 = vmatpush1.bf16.msra.mxu0 0
  %3337 = vmatprep.subr.bf16.mxu0 0
  %3338 = vmatpush1.bf16.msra.mxu0 0
  %3339 = vmatprep.subr.bf16.mxu0 0
  %3340 = vmatpush1.bf16.msra.mxu0 0
  %3341 = vmatprep.subr.bf16.mxu0 0
  %3342 = vmatpush1.bf16.msra.mxu0 0
  %3343 = vmatprep.subr.bf16.mxu0 0
  %3344 = vmatpush1.bf16.msra.mxu0 0
  %3345 = vmatprep.subr.bf16.mxu0 0
  %3346 = vmatpush1.bf16.msra.mxu0 0
  %3347 = vmatprep.subr.bf16.mxu0 0
  %3348 = vmatpush1.bf16.msra.mxu0 0
  %3349 = vmatprep.subr.bf16.mxu0 0
  %3350 = vmatpush1.bf16.msra.mxu0 0
  %3351 = vmatprep.subr.bf16.mxu0 0
  %3352 = vmatpush1.bf16.msra.mxu0 0
  %3353 = vmatprep.subr.bf16.mxu0 0
  %3354 = vmatpush1.bf16.msra.mxu0 0
  %3355 = vmatprep.subr.bf16.mxu0 0
  %3356 = vmatpush1.bf16.msra.mxu0 0
  %3357 = vmatprep.subr.bf16.mxu0 0
  %3358 = vmatpush1.bf16.msra.mxu0 0
  %3359 = vmatprep.subr.bf16.mxu0 0
  %3360 = vmatpush1.bf16.msra.mxu0 0
  %3361 = vmatprep.mubr.bf16.mxu0 0
  %3362 = vmatmul.mubr.bf16.gmra.mrb[0].mxu0 %v3324
  %v3363 = vpop.f32.mrb[0].mxu0
  %v3364 = vadd.f32 0.0, %v3363
  %v3365 = vpop.f32.mrb[0].mxu0
  %v3366 = vpop.f32.mrb[0].mxu0
  %v3367 = vadd.f32 0.0, %v3366
  %v3368 = vpop.f32.mrb[0].mxu0
  %3369 = vmatprep.mubr.bf16.mxu0 0
  %3370 = vmatmul.mubr.bf16.gmra.mrb[0].mxu0 %v3327
  %v3371 = vpop.f32.mrb[0].mxu0
  %v3372 = vpop.f32.mrb[0].mxu0
  %v3373 = vadd.f32 0.0, %v3372
  %v3374 = vpop.f32.mrb[0].mxu0
  %v3375 = vpop.f32.mrb[0].mxu0
  %v3376 = vadd.f32 0.0, %v3375
  %3377 = vdwg.mxu0
  %v3378 = vld [vmem:[%s380] sm:$0xff]
  %v3379 = vld [vmem:[%s380 + $0x10] sm:$0xff]
  %v3380 = vadd.f32 %v3378, %v3364
  %v3381 = vadd.f32 %v3379, %v3367
  %v3382 = vld [vmem:[%s373 + $0x8] sm:$0xff]
  %v3383 = vld [vmem:[%s373 + $0x18] sm:$0xff]
  %v3384 = vadd.f32 %v3382, %v3373
  %v3385 = vadd.f32 %v3383, %v3376
  %v3386 = vxor.u32 %v3380, 2147483648
  %v3387 = vxor.u32 %v3381, 2147483648
  %v3388 = vxor.u32 %v3384, 2147483648
  %v3389 = vxor.u32 %v3385, 2147483648
  %v3390 = vmul.f32 %v3386, 1.442695
  %v3391 = vpow.pop %v3390
  %v3392 = vmul.f32 %v3387, 1.442695
  %v3393 = vpow.pop %v3392
  %v3394 = vmul.f32 %v3388, 1.442695
  %v3395 = vpow.pop %v3394
  %v3396 = vmul.f32 %v3389, 1.442695
  %v3397 = vpow.pop %v3396
  %v3398 = vadd.f32 %v3391, 1.0
  %v3399 = vadd.f32 %v3393, 1.0
  %v3400 = vadd.f32 %v3395, 1.0
  %v3401 = vadd.f32 %v3397, 1.0
  %v3402 = vrcp.pop %v3398
  %v3403 = vmul.f32 1.0, %v3402
  %v3404 = vrcp.pop %v3399
  %v3405 = vmul.f32 1.0, %v3404
  %v3406 = vrcp.pop %v3400
  %v3407 = vmul.f32 1.0, %v3406
  %v3408 = vrcp.pop %v3401
  %v3409 = vmul.f32 1.0, %v3408
  %v3410 = vtanh.pop %v3380
  %v3411 = vtanh.pop %v3381
  %v3412 = vtanh.pop %v3384
  %v3413 = vtanh.pop %v3385
  %v3414 = vmul.f32 %v3403, %v3287
  %v3415 = vmul.f32 %v3405, %v3288
  %v3416 = vmul.f32 %v3407, %v3289
  %v3417 = vmul.f32 %v3409, %v3290
  %3422 = vrot.lane.b32.xlu0 %v3410, 64
  %v3423 = vpop.permute.xlu0 %3422
  %3424 = vrot.lane.b32.xlu0 %v3411, 64
  %v3425 = vpop.permute.xlu0 %3424
  %3426 = vrot.lane.b32.xlu0 %v3412, 64
  %v3427 = vpop.permute.xlu0 %3426
  %3428 = vrot.lane.b32.xlu0 %v3413, 64
  %v3429 = vpop.permute.xlu0 %3428
  %v3434 = vmul.f32 %v3403, %v3423
  %v3435 = vmul.f32 %v3405, %v3425
  %v3436 = vmul.f32 %v3407, %v3427
  %v3437 = vmul.f32 %v3409, %v3429
  %3442 = vrot.lane.b32.xlu0 %v3434, 32
  %v3443 = vpop.permute.xlu0 %3442
  %3444 = vrot.lane.b32.xlu0 %v3435, 32
  %v3445 = vpop.permute.xlu0 %3444
  %3446 = vrot.lane.b32.xlu0 %v3436, 32
  %v3447 = vpop.permute.xlu0 %3446
  %3448 = vrot.lane.b32.xlu0 %v3437, 32
  %v3449 = vpop.permute.xlu0 %3448
  %v3454 = vadd.f32 %v3414, %v3443
  %v3455 = vadd.f32 %v3415, %v3445
  %v3456 = vadd.f32 %v3416, %v3447
  %v3457 = vadd.f32 %v3417, %v3449
  %v3458 = vtanh.pop %v3454
  %v3459 = vtanh.pop %v3455
  %v3460 = vtanh.pop %v3456
  %v3461 = vtanh.pop %v3457
  %3466 = vrot.lane.b32.xlu0 %v3458, 64
  %v3467 = vpop.permute.xlu0 %3466
  %3468 = vrot.lane.b32.xlu0 %v3459, 64
  %v3469 = vpop.permute.xlu0 %3468
  %3470 = vrot.lane.b32.xlu0 %v3460, 64
  %v3471 = vpop.permute.xlu0 %3470
  %3472 = vrot.lane.b32.xlu0 %v3461, 64
  %v3473 = vpop.permute.xlu0 %3472
  %v3478 = vmul.f32 %v3403, %v3467
  %v3479 = vmul.f32 %v3405, %v3469
  %v3480 = vmul.f32 %v3407, %v3471
  %v3481 = vmul.f32 %v3409, %v3473
  %3484 = vrot.lane.b32.xlu0 %v3480, 32
  %v3485 = vpop.permute.xlu0 %3484
  %3486 = vrot.lane.b32.xlu0 %v3481, 32
  %v3487 = vpop.permute.xlu0 %3486
  %3492 = vrot.lane.b32.xlu0 %v3478, 64
  %v3493 = vpop.permute.xlu0 %3492
  %3494 = vrot.lane.b32.xlu0 %v3479, 64
  %v3495 = vpop.permute.xlu0 %3494
  %v3498 = vsel %vm125, %v3485, %v3493
  %v3499 = vsel %vm125, %v3487, %v3495
  %v3500 = vld [vmem:[%s7] sm:$0xff]
  %v3501 = vld [vmem:[%s7 + $0x8] sm:$0xff]
  %v3502 = vld [vmem:[%s7 + $0x10] sm:$0xff]
  %v3503 = vld [vmem:[%s7 + $0x18] sm:$0xff]
  %v3504 = vld [vmem:[%s7 + $0x20] sm:$0xff]
  %v3505 = vld [vmem:[%s7 + $0x28] sm:$0xff]
  %v3506 = vld [vmem:[%s7 + $0x30] sm:$0xff]
  %v3507 = vld [vmem:[%s7 + $0x38] sm:$0xff]
  %v3508 = vld [vmem:[%s8] sm:$0x1]
  %v3510 = vlaneseq
  %v3511 = vshrl.u32 %v3510, 7
  %v3512 = vsub.s32 0, %v3511
  %v3513 = vrot.slane %v3508, %v3512
  %v3516 = vsel %vm1966, %v3498, 0
  %v3519 = vsel %vm1966, %v3499, 0
  %3521 = vmatprep.subr.mxu0 0.0
  %3522 = vmatpush1.msra.mxu0 %v3500
  %3523 = vmatprep.subr.mxu0 0.0
  %3524 = vmatpush1.msra.mxu0 %v3501
  %3525 = vmatprep.subr.mxu0 0.0
  %3526 = vmatpush1.msra.mxu0 %v3502
  %3527 = vmatprep.subr.mxu0 0.0
  %3528 = vmatpush1.msra.mxu0 %v3503
  %3529 = vmatprep.subr.mxu0 0.0
  %3530 = vmatpush1.msra.mxu0 %v3504
  %3531 = vmatprep.subr.mxu0 0.0
  %3532 = vmatpush1.msra.mxu0 %v3505
  %3533 = vmatprep.subr.mxu0 0.0
  %3534 = vmatpush1.msra.mxu0 %v3506
  %3535 = vmatprep.subr.mxu0 0.0
  %3536 = vmatpush1.msra.mxu0 %v3507
  %3537 = vmatprep.subr.mxu0 0.0
  %3538 = vmatpush1.msra.mxu0 0.0
  %3539 = vmatprep.subr.mxu0 0.0
  %3540 = vmatpush1.msra.mxu0 0.0
  %3541 = vmatprep.subr.mxu0 0.0
  %3542 = vmatpush1.msra.mxu0 0.0
  %3543 = vmatprep.subr.mxu0 0.0
  %3544 = vmatpush1.msra.mxu0 0.0
  %3545 = vmatprep.subr.mxu0 0.0
  %3546 = vmatpush1.msra.mxu0 0.0
  %3547 = vmatprep.subr.mxu0 0.0
  %3548 = vmatpush1.msra.mxu0 0.0
  %3549 = vmatprep.subr.mxu0 0.0
  %3550 = vmatpush1.msra.mxu0 0.0
  %3551 = vmatprep.subr.mxu0 0.0
  %3552 = vmatpush1.msra.mxu0 0.0
  %3553 = vmatprep.subr.mxu0 0.0
  %3554 = vmatpush1.msra.mxu0 0.0
  %3555 = vmatprep.subr.mxu0 0.0
  %3556 = vmatpush1.msra.mxu0 0.0
  %3557 = vmatprep.subr.mxu0 0.0
  %3558 = vmatpush1.msra.mxu0 0.0
  %3559 = vmatprep.subr.mxu0 0.0
  %3560 = vmatpush1.msra.mxu0 0.0
  %3561 = vmatprep.subr.mxu0 0.0
  %3562 = vmatpush1.msra.mxu0 0.0
  %3563 = vmatprep.subr.mxu0 0.0
  %3564 = vmatpush1.msra.mxu0 0.0
  %3565 = vmatprep.subr.mxu0 0.0
  %3566 = vmatpush1.msra.mxu0 0.0
  %3567 = vmatprep.subr.mxu0 0.0
  %3568 = vmatpush1.msra.mxu0 0.0
  %3569 = vmatprep.subr.mxu0 0.0
  %3570 = vmatpush1.msra.mxu0 0.0
  %3571 = vmatprep.subr.mxu0 0.0
  %3572 = vmatpush1.msra.mxu0 0.0
  %3573 = vmatprep.subr.mxu0 0.0
  %3574 = vmatpush1.msra.mxu0 0.0
  %3575 = vmatprep.subr.mxu0 0.0
  %3576 = vmatpush1.msra.mxu0 0.0
  %3577 = vmatprep.subr.mxu0 0.0
  %3578 = vmatpush1.msra.mxu0 0.0
  %3579 = vmatprep.subr.mxu0 0.0
  %3580 = vmatpush1.msra.mxu0 0.0
  %3581 = vmatprep.subr.mxu0 0.0
  %3582 = vmatpush1.msra.mxu0 0.0
  %3583 = vmatprep.subr.mxu0 0.0
  %3584 = vmatpush1.msra.mxu0 0.0
  %3585 = vmatprep.mubr.f32.mxu0 0.0
  %3586 = vmatmul.mubr.f32.gmra.mrb[0].mxu0 %v3516
  %v3587 = vpop.f32.mrb[0].mxu0
  %v3588 = vadd.f32 %v3513, %v3587
  %v3589 = vpop.f32.mrb[0].mxu0
  %3590 = vmatprep.mubr.f32.mxu0 0.0
  %3591 = vmatmul.mubr.f32.gmra.mrb[0].mxu0 %v3519
  %v3592 = vpop.f32.mrb[0].mxu0
  %v3593 = vadd.f32 %v3513, %v3592
  %v3594 = vpop.f32.mrb[0].mxu0
  %3595 = vdwg.mxu0
  %3596 = vst [vmem:[%s9] sm:$0xff] %v3588
  %3597 = vst [vmem:[%s9 + $0x8] sm:$0xff] %v3593
  // Predicated region
  $region38: #{bilstm_forward.1} parent=0 // pred_check
    _
  $region39: #{bilstm_forward.1} parent=0 // pred_check_branch
    %3599 = sbr.rel (0) target = $region41
  $region40: #{bilstm_forward.1} parent=0 // pred_region
    _
  $region41: #{bilstm_forward.1} parent=0 // pred_fallthru
    _
  // Predicated region
  $region42: #{bilstm_forward.1} parent=0 // pred_check
    _
  $region43: #{bilstm_forward.1} parent=0 // pred_check_branch
    %3601 = sbr.rel (0) target = $region45
  $region44: #{bilstm_forward.1} parent=0 // pred_region
    _
  $region45: #{bilstm_forward.1} parent=0 // pred_fallthru
    _

</llo_original>
